<compile_context>
chip_gen: v7x
topology: tpu7x:2x2x1
jax: 0.10.0
libtpu: 0.0.40
codegen_flags: <defaults>
</compile_context>

<pallas_src>
import numpy as np
import jax
import jax.numpy as jnp
from jax import lax
from jax.experimental import pallas as pl
from jax.experimental.pallas import tpu as pltpu


BLOCK_B = 8      # images per grid step
FEAT = 84        # num_ftrs of simple-cnn header


# ------------------------------ Pallas kernel -------------------------------

def fused_forward_kernel(x_ref,                      # (BB*32, 96)  f32
                         a1_ref, pc1_ref, sr1_ref,   # conv1 bands / pool1 sel
                         a2_ref, pc2_ref, sr2_ref,   # conv2 bands / pool2 sel
                         fc1_ref, sf_ref,            # fc1 bands / row pick
                         fc2_ref, l1_ref, l2_ref,    # dense tail
                         bias_ref,                   # (1, 1024) packed biases
                         out_ref):                   # (BB, 128)  h | f | pad
    f32, bf16 = jnp.float32, jnp.bfloat16
    n1 = x_ref.shape[0]              # BLOCK_B * 32
    od = l2_ref.shape[1]

    # ---- conv1 (5x5, 3->6, VALID): 5 banded matmuls over the whole slab.
    #      Band i needs rows r+i, expressed as a sublane roll of the f32 input.
    x = x_ref[...]
    y = jnp.dot(x.astype(bf16), a1_ref[0], preferred_element_type=f32)
    for i in range(1, 5):
        xs = pltpu.roll(x, n1 - i, axis=0).astype(bf16)      # row r -> x[r+i]
        y = y + jnp.dot(xs, a1_ref[i], preferred_element_type=f32)
    y = jnp.maximum(y + bias_ref[:, 0:168], 0.0)             # (BB*32, 168)

    # ---- pool1 (2x2 max): columns via even/odd selector matmuls + max,
    #      rows via sublane roll + max + per-image even-row selector matmul.
    yb = y.astype(bf16)
    c1 = jnp.maximum(
        jnp.dot(yb, pc1_ref[0], preferred_element_type=f32),
        jnp.dot(yb, pc1_ref[1], preferred_element_type=f32))   # (BB*32, 84)
    r1 = jnp.maximum(c1, pltpu.roll(c1, n1 - 1, axis=0))
    p1 = jnp.dot(sr1_ref[...], r1.astype(bf16),
                 preferred_element_type=f32)                   # (BB*14, 84)

    # ---- conv2 (5x5, 6->16) ------------------------------------------------
    n2 = p1.shape[0]
    y2 = jnp.dot(p1.astype(bf16), a2_ref[0], preferred_element_type=f32)
    for i in range(1, 5):
        ps = pltpu.roll(p1, n2 - i, axis=0).astype(bf16)
        y2 = y2 + jnp.dot(ps, a2_ref[i], preferred_element_type=f32)
    y2 = jnp.maximum(y2 + bias_ref[:, 256:416], 0.0)          # (BB*14, 160)

    # ---- pool2 -------------------------------------------------------------
    y2b = y2.astype(bf16)
    c2 = jnp.maximum(
        jnp.dot(y2b, pc2_ref[0], preferred_element_type=f32),
        jnp.dot(y2b, pc2_ref[1], preferred_element_type=f32))  # (BB*14, 80)
    r2 = jnp.maximum(c2, pltpu.roll(c2, n2 - 1, axis=0))
    p2 = jnp.dot(sr2_ref[...], r2.astype(bf16),
                 preferred_element_type=f32)                   # (BB*5, 80)

    # ---- fc1 (400->120): banded over the 5 pooled rows per image, then a
    #      per-image row pick; torch's NCHW .view(-1,400) permutation is
    #      folded into the fc1 weight packing.
    n3 = p2.shape[0]
    z = jnp.dot(p2.astype(bf16), fc1_ref[0], preferred_element_type=f32)
    for r in range(1, 5):
        zs = pltpu.roll(p2, n3 - r, axis=0).astype(bf16)
        z = z + jnp.dot(zs, fc1_ref[r], preferred_element_type=f32)
    z = jnp.dot(sf_ref[...], z.astype(bf16),
                preferred_element_type=f32)                    # (BB, 120)
    z = jnp.maximum(z + bias_ref[:, 512:632], 0.0)

    # ---- fc2 / l1 / l2 / L2-normalize, batched over the BB images ----------
    feat = jnp.maximum(
        jnp.dot(z.astype(bf16), fc2_ref[...], preferred_element_type=f32)
        + bias_ref[:, 640:724], 0.0)                           # (BB, 84)
    h = jnp.maximum(
        jnp.dot(feat.astype(bf16), l1_ref[...], preferred_element_type=f32)
        + bias_ref[:, 768:852], 0.0)                           # (BB, 84)
    f = (jnp.dot(h.astype(bf16), l2_ref[...], preferred_element_type=f32)
         + bias_ref[:, 896:896 + od])                          # (BB, od)
    # torch: f / norm(f).clamp(min=1e-12)  ==  f * rsqrt(max(sum(f^2), 1e-24))
    inv = lax.rsqrt(jnp.maximum(jnp.sum(f * f, axis=1, keepdims=True), 1e-24))

    # lane-dense output slab:  h | normalized f | zero pad
    out_ref[:, 0:FEAT] = h
    out_ref[:, FEAT:FEAT + od] = f * inv
    pad = out_ref.shape[1] - FEAT - od
    if pad > 0:
        out_ref[:, FEAT + od:] = jnp.zeros((out_ref.shape[0], pad), f32)


# ----------------------- host-side parameter packing ------------------------

def _band_matrix(w_hwio, w_in, w_out):
    """w_hwio: (5,5,Cin,Cout) -> (5, w_in*Cin, w_out*Cout) banded matrices so
    that conv = sum_i  x[rows+i, :] @ A_i  in the (H, W*C) slab layout."""
    k, _, cin, cout = w_hwio.shape
    sel = np.zeros((k, w_in, w_out), np.float32)
    for j in range(k):
        for ow in range(w_out):
            sel[j, ow + j, ow] = 1.0
    a = jnp.einsum("ijcK,jwo->iwcoK", w_hwio, jnp.asarray(sel))
    return a.reshape(k, w_in * cin, w_out * cout)


def _pool_col_selectors(w_conv, c):
    """(2, w_conv*c, (w_conv//2)*c) 0/1 selectors of even / odd conv columns."""
    w_pool = w_conv // 2
    sel = np.zeros((2, w_conv * c, w_pool * c), np.float32)
    for pw in range(w_pool):
        for ch in range(c):
            sel[0, (2 * pw) * c + ch, pw * c + ch] = 1.0
            sel[1, (2 * pw + 1) * c + ch, pw * c + ch] = 1.0
    return sel


def _pool_row_selector(bb, rows_in, h_pool):
    """(bb*h_pool, bb*rows_in) 0/1 selector picking row b*rows_in + 2*ph."""
    s = np.zeros((bb * h_pool, bb * rows_in), np.float32)
    for b in range(bb):
        for ph in range(h_pool):
            s[b * h_pool + ph, b * rows_in + 2 * ph] = 1.0
    return s


def _fc_row_selector(bb, rows_per_img):
    """(bb, bb*rows_per_img) 0/1 selector picking row b*rows_per_img."""
    s = np.zeros((bb, bb * rows_per_img), np.float32)
    for b in range(bb):
        s[b, b * rows_per_img] = 1.0
    return s


def _pack_fc1(fc1_w):
    """fc1_w: (400,120), rows in torch NCHW flatten order co*25 + h*5 + pw.
    -> (5, 80, 120) indexed [h, pw*16+co, n] to match the kernel's p2 layout."""
    w = fc1_w.reshape(16, 5, 5, 120)         # (co, h, pw, n)
    w = jnp.transpose(w, (1, 2, 0, 3))       # (h, pw, co, n)
    return w.reshape(5, 80, 120)


def init_params(key, out_dim=32, n_classes=10):
    def uinit(k, shape, fan_in):
        bound = 1.0 / np.sqrt(fan_in)
        return jax.random.uniform(k, shape, jnp.float32, -bound, bound)

    ks = jax.random.split(key, 13)
    p = {}
    p["conv1_w"] = uinit(ks[0], (5, 5, 3, 6), 3 * 5 * 5)      # HWIO
    p["conv1_b"] = uinit(ks[1], (6,), 3 * 5 * 5)
    p["conv2_w"] = uinit(ks[2], (5, 5, 6, 16), 6 * 5 * 5)
    p["conv2_b"] = uinit(ks[3], (16,), 6 * 5 * 5)
    p["fc1_w"] = uinit(ks[4], (400, 120), 400)   # rows in torch NCHW flatten order
    p["fc1_b"] = uinit(ks[5], (120,), 400)
    p["fc2_w"] = uinit(ks[6], (120, 84), 120)
    p["fc2_b"] = uinit(ks[7], (84,), 120)
    p["l1_w"] = uinit(ks[8], (84, 84), 84)
    p["l1_b"] = uinit(ks[9], (84,), 84)
    p["l2_w"] = uinit(ks[10], (84, out_dim), 84)
    p["l2_b"] = uinit(ks[11], (out_dim,), 84)

    # Proto_Classifier (ETF prototypes) + scaling_train: built for __init__
    # fidelity only -- NOT used in ModelFedCon_ETF.forward(x).
    a = jax.random.uniform(ks[12], (out_dim, n_classes), jnp.float32)
    P, _ = jnp.linalg.qr(a)
    I = jnp.eye(n_classes, dtype=jnp.float32)
    one = jnp.ones((n_classes, n_classes), dtype=jnp.float32)
    p["proto"] = np.sqrt(n_classes / (n_classes - 1)) * (P @ (I - one / n_classes))
    p["scaling_train"] = jnp.float32(1.0)
    return p


def pack_params(p, block_b=BLOCK_B):
    bf16 = jnp.bfloat16
    out_dim = p["l2_w"].shape[1]
    assert out_dim <= 128
    kp = {}
    kp["a1"] = _band_matrix(p["conv1_w"], 32, 28).astype(bf16)          # (5,96,168)
    kp["pc1"] = jnp.asarray(_pool_col_selectors(28, 6), bf16)           # (2,168,84)
    kp["sr1"] = jnp.asarray(_pool_row_selector(block_b, 32, 14), bf16)  # (BB*14,BB*32)
    kp["a2"] = _band_matrix(p["conv2_w"], 14, 10).astype(bf16)          # (5,84,160)
    kp["pc2"] = jnp.asarray(_pool_col_selectors(10, 16), bf16)          # (2,160,80)
    kp["sr2"] = jnp.asarray(_pool_row_selector(block_b, 14, 5), bf16)   # (BB*5,BB*14)
    kp["fc1"] = _pack_fc1(p["fc1_w"]).astype(bf16)                      # (5,80,120)
    kp["sf"] = jnp.asarray(_fc_row_selector(block_b, 5), bf16)          # (BB,BB*5)
    kp["fc2"] = p["fc2_w"].astype(bf16)                                 # (120,84)
    kp["l1"] = p["l1_w"].astype(bf16)                                   # (84,84)
    kp["l2"] = p["l2_w"].astype(bf16)                                   # (84,OD)

    # all biases packed into one (1, 1024) f32 operand, 128-aligned segments
    bias = np.zeros((1, 1024), np.float32)
    bias[0, 0:168] = np.tile(np.asarray(p["conv1_b"]), 28)
    bias[0, 256:416] = np.tile(np.asarray(p["conv2_b"]), 10)
    bias[0, 512:632] = np.asarray(p["fc1_b"])
    bias[0, 640:724] = np.asarray(p["fc2_b"])
    bias[0, 768:852] = np.asarray(p["l1_b"])
    bias[0, 896:896 + out_dim] = np.asarray(p["l2_b"])
    kp["bias"] = jnp.asarray(bias)
    return kp


# ------------------------------ forward (jit) --------------------------------

def _full_spec(shape):
    n = len(shape)
    return pl.BlockSpec(shape, lambda i, _n=n: (0,) * _n)


def forward(packed, x_nchw):
    B = x_nchw.shape[0]
    od = packed["l2"].shape[1]
    BB = BLOCK_B
    Bp = ((B + BB - 1) // BB) * BB
    out_w = ((FEAT + od + 127) // 128) * 128

    # NCHW -> (H, W*C) slab per image (lane = w*3 + c), stacked along rows.
    x = jnp.transpose(x_nchw, (0, 2, 3, 1)).reshape(B, 32, 96)
    if Bp != B:
        x = jnp.pad(x, ((0, Bp - B), (0, 0), (0, 0)))
    x2d = x.reshape(Bp * 32, 96).astype(jnp.float32)

    in_specs = [
        pl.BlockSpec((BB * 32, 96), lambda i: (i, 0)),
        _full_spec(packed["a1"].shape), _full_spec(packed["pc1"].shape),
        _full_spec(packed["sr1"].shape),
        _full_spec(packed["a2"].shape), _full_spec(packed["pc2"].shape),
        _full_spec(packed["sr2"].shape),
        _full_spec(packed["fc1"].shape), _full_spec(packed["sf"].shape),
        _full_spec(packed["fc2"].shape), _full_spec(packed["l1"].shape),
        _full_spec(packed["l2"].shape),
        _full_spec(packed["bias"].shape),
    ]
    out_specs = pl.BlockSpec((BB, out_w), lambda i: (i, 0))

    out = pl.pallas_call(
        fused_forward_kernel,
        out_shape=jax.ShapeDtypeStruct((Bp, out_w), jnp.float32),
        grid=(Bp // BB,),
        in_specs=in_specs,
        out_specs=out_specs,
        compiler_params=pltpu.CompilerParams(
            dimension_semantics=("parallel",),
            vmem_limit_bytes=32 * 1024 * 1024),
    )(x2d, packed["a1"], packed["pc1"], packed["sr1"],
      packed["a2"], packed["pc2"], packed["sr2"],
      packed["fc1"], packed["sf"], packed["fc2"], packed["l1"], packed["l2"],
      packed["bias"])

    h = out[:B, 0:FEAT]
    f = out[:B, FEAT:FEAT + od]
    # TODO(synk): torch's h.squeeze() would drop the batch dim for B==1 and the
    # subsequent norm(dim=1) would fail; we keep the batch dim (B>1 training).
    return h, f, f


# ----------------------- pure-JAX reference (for check) ----------------------

def forward_reference(params, x_nchw):
    x = jnp.transpose(x_nchw, (0, 2, 3, 1))                       # NHWC
    y = lax.conv_general_dilated(x, params["conv1_w"], (1, 1), "VALID",
                                 dimension_numbers=("NHWC", "HWIO", "NHWC"))
    y = jnp.maximum(y + params["conv1_b"], 0.0)
    y = lax.reduce_window(y, -jnp.inf, lax.max, (1, 2, 2, 1), (1, 2, 2, 1), "VALID")
    y = lax.conv_general_dilated(y, params["conv2_w"], (1, 1), "VALID",
                                 dimension_numbers=("NHWC", "HWIO", "NHWC"))
    y = jnp.maximum(y + params["conv2_b"], 0.0)
    y = lax.reduce_window(y, -jnp.inf, lax.max, (1, 2, 2, 1), (1, 2, 2, 1), "VALID")
    B = y.shape[0]
    y = jnp.transpose(y, (0, 3, 1, 2)).reshape(B, 400)            # torch .view order
    y = jnp.maximum(y @ params["fc1_w"] + params["fc1_b"], 0.0)
    feat = jnp.maximum(y @ params["fc2_w"] + params["fc2_b"], 0.0)
    h = jnp.maximum(feat @ params["l1_w"] + params["l1_b"], 0.0)
    f = h @ params["l2_w"] + params["l2_b"]
    nrm = jnp.maximum(jnp.linalg.norm(f, axis=1, keepdims=True), 1e-12)
    return h, f / nrm


# ----------------------------------- main ------------------------------------

if __name__ == "__main__":
    key = jax.random.PRNGKey(0)
    kx, kp = jax.random.split(key)

    B, out_dim, n_classes = 16, 32, 10          # 2 grid steps of BLOCK_B=8
    x = jax.random.normal(kx, (B, 3, 32, 32), dtype=jnp.float32)  # NCHW input

    params = init_params(kp, out_dim=out_dim, n_classes=n_classes)
    packed = pack_params(params)

    fwd = jax.jit(forward)
    h, f, f2 = fwd(packed, x)
    jax.block_until_ready((h, f, f2))

    assert h.shape == (B, 84) and f.shape == (B, out_dim)

    h_ref, f_ref = forward_reference(params, x)
    # bf16 matmul operands (f32 accumulation): allow ~2% tolerance.
    np.testing.assert_allclose(np.asarray(h), np.asarray(h_ref), rtol=2e-2, atol=2e-2)
    np.testing.assert_allclose(np.asarray(f), np.asarray(f_ref), rtol=2e-2, atol=2e-2)
    np.testing.assert_allclose(np.linalg.norm(np.asarray(f), axis=1),
                               np.ones(B), rtol=1e-3, atol=1e-3)

    print("KERNEL_OK")
</pallas_src>

<mosaic_0001>
module attributes {stable_mosaic.version = 11 : i64} {
  func.func @fused_forward_kernel(%arg0: i32, %arg1: memref<256x96xf32, #tpu.memory_space<vmem>>, %arg2: memref<5x96x168xbf16, #tpu.memory_space<vmem>>, %arg3: memref<2x168x84xbf16, #tpu.memory_space<vmem>>, %arg4: memref<112x256xbf16, #tpu.memory_space<vmem>>, %arg5: memref<5x84x160xbf16, #tpu.memory_space<vmem>>, %arg6: memref<2x160x80xbf16, #tpu.memory_space<vmem>>, %arg7: memref<40x112xbf16, #tpu.memory_space<vmem>>, %arg8: memref<5x80x120xbf16, #tpu.memory_space<vmem>>, %arg9: memref<8x40xbf16, #tpu.memory_space<vmem>>, %arg10: memref<120x84xbf16, #tpu.memory_space<vmem>>, %arg11: memref<84x84xbf16, #tpu.memory_space<vmem>>, %arg12: memref<84x32xbf16, #tpu.memory_space<vmem>>, %arg13: memref<1x1024xf32, #tpu.memory_space<vmem>>, %arg14: memref<8x128xf32, #tpu.memory_space<vmem>>) attributes {dimension_semantics = [#tpu.dimension_semantics<parallel>], iteration_bounds = array<i64: 2>, scalar_prefetch = 0 : i64, scratch_operands = 0 : i64, tpu.core_type = #tpu.core_type<tc>, window_params = [{transform_indices = @transform_0, window_bounds = array<i64: 256, 96>}, {pipeline_mode = #tpu.pipeline_mode<synchronous>, transform_indices = @transform_1, window_bounds = array<i64: 5, 96, 168>}, {pipeline_mode = #tpu.pipeline_mode<synchronous>, transform_indices = @transform_2, window_bounds = array<i64: 2, 168, 84>}, {pipeline_mode = #tpu.pipeline_mode<synchronous>, transform_indices = @transform_3, window_bounds = array<i64: 112, 256>}, {pipeline_mode = #tpu.pipeline_mode<synchronous>, transform_indices = @transform_4, window_bounds = array<i64: 5, 84, 160>}, {pipeline_mode = #tpu.pipeline_mode<synchronous>, transform_indices = @transform_5, window_bounds = array<i64: 2, 160, 80>}, {pipeline_mode = #tpu.pipeline_mode<synchronous>, transform_indices = @transform_6, window_bounds = array<i64: 40, 112>}, {pipeline_mode = #tpu.pipeline_mode<synchronous>, transform_indices = @transform_7, window_bounds = array<i64: 5, 80, 120>}, {pipeline_mode = #tpu.pipeline_mode<synchronous>, transform_indices = @transform_8, window_bounds = array<i64: 8, 40>}, {pipeline_mode = #tpu.pipeline_mode<synchronous>, transform_indices = @transform_9, window_bounds = array<i64: 120, 84>}, {pipeline_mode = #tpu.pipeline_mode<synchronous>, transform_indices = @transform_10, window_bounds = array<i64: 84, 84>}, {pipeline_mode = #tpu.pipeline_mode<synchronous>, transform_indices = @transform_11, window_bounds = array<i64: 84, 32>}, {pipeline_mode = #tpu.pipeline_mode<synchronous>, transform_indices = @transform_12, window_bounds = array<i64: 1, 1024>}, {transform_indices = @transform_13, window_bounds = array<i64: 8, 128>}]} {
    %c0 = arith.constant 0 : index
    %c0_0 = arith.constant 0 : index
    %0 = vector.load %arg1[%c0, %c0_0] : memref<256x96xf32, #tpu.memory_space<vmem>>, vector<256x96xf32>
    %1 = arith.truncf %0 : vector<256x96xf32> to vector<256x96xbf16>
    %c0_1 = arith.constant 0 : index
    %c0_2 = arith.constant 0 : index
    %c0_3 = arith.constant 0 : index
    %2 = vector.load %arg2[%c0_1, %c0_2, %c0_3] : memref<5x96x168xbf16, #tpu.memory_space<vmem>>, vector<1x96x168xbf16>
    %3 = vector.shape_cast %2 : vector<1x96x168xbf16> to vector<96x168xbf16>
    %cst = arith.constant dense<0.000000e+00> : vector<256x168xf32>
    %4 = tpu.matmul %1, %3, %cst {dimension_numbers = #tpu.dot_dimension_numbers<[1], [0], [0], [1], [0, 0, 1, 1], [], []>} : vector<256x96xbf16>, vector<96x168xbf16>, vector<256x168xf32> -> vector<256x168xf32>
    %c255_i32 = arith.constant 255 : i32
    %5 = tpu.dynamic_rotate %0 by %c255_i32 dim 0 : vector<256x96xf32>, i32 -> vector<256x96xf32>
    %6 = arith.truncf %5 : vector<256x96xf32> to vector<256x96xbf16>
    %c1 = arith.constant 1 : index
    %c0_4 = arith.constant 0 : index
    %c0_5 = arith.constant 0 : index
    %7 = vector.load %arg2[%c1, %c0_4, %c0_5] : memref<5x96x168xbf16, #tpu.memory_space<vmem>>, vector<1x96x168xbf16>
    %8 = vector.shape_cast %7 : vector<1x96x168xbf16> to vector<96x168xbf16>
    %cst_6 = arith.constant dense<0.000000e+00> : vector<256x168xf32>
    %9 = tpu.matmul %6, %8, %cst_6 {dimension_numbers = #tpu.dot_dimension_numbers<[1], [0], [0], [1], [0, 0, 1, 1], [], []>} : vector<256x96xbf16>, vector<96x168xbf16>, vector<256x168xf32> -> vector<256x168xf32>
    %10 = arith.addf %4, %9 : vector<256x168xf32>
    %c254_i32 = arith.constant 254 : i32
    %11 = tpu.dynamic_rotate %0 by %c254_i32 dim 0 : vector<256x96xf32>, i32 -> vector<256x96xf32>
    %12 = arith.truncf %11 : vector<256x96xf32> to vector<256x96xbf16>
    %c2 = arith.constant 2 : index
    %c0_7 = arith.constant 0 : index
    %c0_8 = arith.constant 0 : index
    %13 = vector.load %arg2[%c2, %c0_7, %c0_8] : memref<5x96x168xbf16, #tpu.memory_space<vmem>>, vector<1x96x168xbf16>
    %14 = vector.shape_cast %13 : vector<1x96x168xbf16> to vector<96x168xbf16>
    %cst_9 = arith.constant dense<0.000000e+00> : vector<256x168xf32>
    %15 = tpu.matmul %12, %14, %cst_9 {dimension_numbers = #tpu.dot_dimension_numbers<[1], [0], [0], [1], [0, 0, 1, 1], [], []>} : vector<256x96xbf16>, vector<96x168xbf16>, vector<256x168xf32> -> vector<256x168xf32>
    %16 = arith.addf %10, %15 : vector<256x168xf32>
    %c253_i32 = arith.constant 253 : i32
    %17 = tpu.dynamic_rotate %0 by %c253_i32 dim 0 : vector<256x96xf32>, i32 -> vector<256x96xf32>
    %18 = arith.truncf %17 : vector<256x96xf32> to vector<256x96xbf16>
    %c3 = arith.constant 3 : index
    %c0_10 = arith.constant 0 : index
    %c0_11 = arith.constant 0 : index
    %19 = vector.load %arg2[%c3, %c0_10, %c0_11] : memref<5x96x168xbf16, #tpu.memory_space<vmem>>, vector<1x96x168xbf16>
    %20 = vector.shape_cast %19 : vector<1x96x168xbf16> to vector<96x168xbf16>
    %cst_12 = arith.constant dense<0.000000e+00> : vector<256x168xf32>
    %21 = tpu.matmul %18, %20, %cst_12 {dimension_numbers = #tpu.dot_dimension_numbers<[1], [0], [0], [1], [0, 0, 1, 1], [], []>} : vector<256x96xbf16>, vector<96x168xbf16>, vector<256x168xf32> -> vector<256x168xf32>
    %22 = arith.addf %16, %21 : vector<256x168xf32>
    %c252_i32 = arith.constant 252 : i32
    %23 = tpu.dynamic_rotate %0 by %c252_i32 dim 0 : vector<256x96xf32>, i32 -> vector<256x96xf32>
    %24 = arith.truncf %23 : vector<256x96xf32> to vector<256x96xbf16>
    %c4 = arith.constant 4 : index
    %c0_13 = arith.constant 0 : index
    %c0_14 = arith.constant 0 : index
    %25 = vector.load %arg2[%c4, %c0_13, %c0_14] : memref<5x96x168xbf16, #tpu.memory_space<vmem>>, vector<1x96x168xbf16>
    %26 = vector.shape_cast %25 : vector<1x96x168xbf16> to vector<96x168xbf16>
    %cst_15 = arith.constant dense<0.000000e+00> : vector<256x168xf32>
    %27 = tpu.matmul %24, %26, %cst_15 {dimension_numbers = #tpu.dot_dimension_numbers<[1], [0], [0], [1], [0, 0, 1, 1], [], []>} : vector<256x96xbf16>, vector<96x168xbf16>, vector<256x168xf32> -> vector<256x168xf32>
    %28 = arith.addf %22, %27 : vector<256x168xf32>
    %c0_16 = arith.constant 0 : index
    %c0_17 = arith.constant 0 : index
    %29 = vector.load %arg13[%c0_16, %c0_17] : memref<1x1024xf32, #tpu.memory_space<vmem>>, vector<1x168xf32>
    %30 = vector.broadcast %29 : vector<1x168xf32> to vector<256x168xf32>
    %31 = arith.addf %28, %30 : vector<256x168xf32>
    %cst_18 = arith.constant 0.000000e+00 : f32
    %32 = vector.broadcast %cst_18 : f32 to vector<256x168xf32>
    %33 = arith.maximumf %31, %32 : vector<256x168xf32>
    %34 = arith.truncf %33 : vector<256x168xf32> to vector<256x168xbf16>
    %c0_19 = arith.constant 0 : index
    %c0_20 = arith.constant 0 : index
    %c0_21 = arith.constant 0 : index
    %35 = vector.load %arg3[%c0_19, %c0_20, %c0_21] : memref<2x168x84xbf16, #tpu.memory_space<vmem>>, vector<1x168x84xbf16>
    %36 = vector.shape_cast %35 : vector<1x168x84xbf16> to vector<168x84xbf16>
    %cst_22 = arith.constant dense<0.000000e+00> : vector<256x84xf32>
    %37 = tpu.matmul %34, %36, %cst_22 {dimension_numbers = #tpu.dot_dimension_numbers<[1], [0], [0], [1], [0, 0, 1, 1], [], []>} : vector<256x168xbf16>, vector<168x84xbf16>, vector<256x84xf32> -> vector<256x84xf32>
    %c1_23 = arith.constant 1 : index
    %c0_24 = arith.constant 0 : index
    %c0_25 = arith.constant 0 : index
    %38 = vector.load %arg3[%c1_23, %c0_24, %c0_25] : memref<2x168x84xbf16, #tpu.memory_space<vmem>>, vector<1x168x84xbf16>
    %39 = vector.shape_cast %38 : vector<1x168x84xbf16> to vector<168x84xbf16>
    %cst_26 = arith.constant dense<0.000000e+00> : vector<256x84xf32>
    %40 = tpu.matmul %34, %39, %cst_26 {dimension_numbers = #tpu.dot_dimension_numbers<[1], [0], [0], [1], [0, 0, 1, 1], [], []>} : vector<256x168xbf16>, vector<168x84xbf16>, vector<256x84xf32> -> vector<256x84xf32>
    %41 = arith.maximumf %37, %40 : vector<256x84xf32>
    %c255_i32_27 = arith.constant 255 : i32
    %42 = tpu.dynamic_rotate %41 by %c255_i32_27 dim 0 : vector<256x84xf32>, i32 -> vector<256x84xf32>
    %43 = arith.maximumf %41, %42 : vector<256x84xf32>
    %c0_28 = arith.constant 0 : index
    %c0_29 = arith.constant 0 : index
    %44 = vector.load %arg4[%c0_28, %c0_29] : memref<112x256xbf16, #tpu.memory_space<vmem>>, vector<112x256xbf16>
    %45 = arith.truncf %43 : vector<256x84xf32> to vector<256x84xbf16>
    %cst_30 = arith.constant dense<0.000000e+00> : vector<112x84xf32>
    %46 = tpu.matmul %44, %45, %cst_30 {dimension_numbers = #tpu.dot_dimension_numbers<[1], [0], [0], [1], [0, 0, 1, 1], [], []>} : vector<112x256xbf16>, vector<256x84xbf16>, vector<112x84xf32> -> vector<112x84xf32>
    %47 = arith.truncf %46 : vector<112x84xf32> to vector<112x84xbf16>
    %c0_31 = arith.constant 0 : index
    %c0_32 = arith.constant 0 : index
    %c0_33 = arith.constant 0 : index
    %48 = vector.load %arg5[%c0_31, %c0_32, %c0_33] : memref<5x84x160xbf16, #tpu.memory_space<vmem>>, vector<1x84x160xbf16>
    %49 = vector.shape_cast %48 : vector<1x84x160xbf16> to vector<84x160xbf16>
    %cst_34 = arith.constant dense<0.000000e+00> : vector<112x160xf32>
    %50 = tpu.matmul %47, %49, %cst_34 {dimension_numbers = #tpu.dot_dimension_numbers<[1], [0], [0], [1], [0, 0, 1, 1], [], []>} : vector<112x84xbf16>, vector<84x160xbf16>, vector<112x160xf32> -> vector<112x160xf32>
    %c111_i32 = arith.constant 111 : i32
    %51 = tpu.dynamic_rotate %46 by %c111_i32 dim 0 : vector<112x84xf32>, i32 -> vector<112x84xf32>
    %52 = arith.truncf %51 : vector<112x84xf32> to vector<112x84xbf16>
    %c1_35 = arith.constant 1 : index
    %c0_36 = arith.constant 0 : index
    %c0_37 = arith.constant 0 : index
    %53 = vector.load %arg5[%c1_35, %c0_36, %c0_37] : memref<5x84x160xbf16, #tpu.memory_space<vmem>>, vector<1x84x160xbf16>
    %54 = vector.shape_cast %53 : vector<1x84x160xbf16> to vector<84x160xbf16>
    %cst_38 = arith.constant dense<0.000000e+00> : vector<112x160xf32>
    %55 = tpu.matmul %52, %54, %cst_38 {dimension_numbers = #tpu.dot_dimension_numbers<[1], [0], [0], [1], [0, 0, 1, 1], [], []>} : vector<112x84xbf16>, vector<84x160xbf16>, vector<112x160xf32> -> vector<112x160xf32>
    %56 = arith.addf %50, %55 : vector<112x160xf32>
    %c110_i32 = arith.constant 110 : i32
    %57 = tpu.dynamic_rotate %46 by %c110_i32 dim 0 : vector<112x84xf32>, i32 -> vector<112x84xf32>
    %58 = arith.truncf %57 : vector<112x84xf32> to vector<112x84xbf16>
    %c2_39 = arith.constant 2 : index
    %c0_40 = arith.constant 0 : index
    %c0_41 = arith.constant 0 : index
    %59 = vector.load %arg5[%c2_39, %c0_40, %c0_41] : memref<5x84x160xbf16, #tpu.memory_space<vmem>>, vector<1x84x160xbf16>
    %60 = vector.shape_cast %59 : vector<1x84x160xbf16> to vector<84x160xbf16>
    %cst_42 = arith.constant dense<0.000000e+00> : vector<112x160xf32>
    %61 = tpu.matmul %58, %60, %cst_42 {dimension_numbers = #tpu.dot_dimension_numbers<[1], [0], [0], [1], [0, 0, 1, 1], [], []>} : vector<112x84xbf16>, vector<84x160xbf16>, vector<112x160xf32> -> vector<112x160xf32>
    %62 = arith.addf %56, %61 : vector<112x160xf32>
    %c109_i32 = arith.constant 109 : i32
    %63 = tpu.dynamic_rotate %46 by %c109_i32 dim 0 : vector<112x84xf32>, i32 -> vector<112x84xf32>
    %64 = arith.truncf %63 : vector<112x84xf32> to vector<112x84xbf16>
    %c3_43 = arith.constant 3 : index
    %c0_44 = arith.constant 0 : index
    %c0_45 = arith.constant 0 : index
    %65 = vector.load %arg5[%c3_43, %c0_44, %c0_45] : memref<5x84x160xbf16, #tpu.memory_space<vmem>>, vector<1x84x160xbf16>
    %66 = vector.shape_cast %65 : vector<1x84x160xbf16> to vector<84x160xbf16>
    %cst_46 = arith.constant dense<0.000000e+00> : vector<112x160xf32>
    %67 = tpu.matmul %64, %66, %cst_46 {dimension_numbers = #tpu.dot_dimension_numbers<[1], [0], [0], [1], [0, 0, 1, 1], [], []>} : vector<112x84xbf16>, vector<84x160xbf16>, vector<112x160xf32> -> vector<112x160xf32>
    %68 = arith.addf %62, %67 : vector<112x160xf32>
    %c108_i32 = arith.constant 108 : i32
    %69 = tpu.dynamic_rotate %46 by %c108_i32 dim 0 : vector<112x84xf32>, i32 -> vector<112x84xf32>
    %70 = arith.truncf %69 : vector<112x84xf32> to vector<112x84xbf16>
    %c4_47 = arith.constant 4 : index
    %c0_48 = arith.constant 0 : index
    %c0_49 = arith.constant 0 : index
    %71 = vector.load %arg5[%c4_47, %c0_48, %c0_49] : memref<5x84x160xbf16, #tpu.memory_space<vmem>>, vector<1x84x160xbf16>
    %72 = vector.shape_cast %71 : vector<1x84x160xbf16> to vector<84x160xbf16>
    %cst_50 = arith.constant dense<0.000000e+00> : vector<112x160xf32>
    %73 = tpu.matmul %70, %72, %cst_50 {dimension_numbers = #tpu.dot_dimension_numbers<[1], [0], [0], [1], [0, 0, 1, 1], [], []>} : vector<112x84xbf16>, vector<84x160xbf16>, vector<112x160xf32> -> vector<112x160xf32>
    %74 = arith.addf %68, %73 : vector<112x160xf32>
    %c0_51 = arith.constant 0 : index
    %c256 = arith.constant 256 : index
    %75 = vector.load %arg13[%c0_51, %c256] : memref<1x1024xf32, #tpu.memory_space<vmem>>, vector<1x160xf32>
    %76 = vector.broadcast %75 : vector<1x160xf32> to vector<112x160xf32>
    %77 = arith.addf %74, %76 : vector<112x160xf32>
    %cst_52 = arith.constant 0.000000e+00 : f32
    %78 = vector.broadcast %cst_52 : f32 to vector<112x160xf32>
    %79 = arith.maximumf %77, %78 : vector<112x160xf32>
    %80 = arith.truncf %79 : vector<112x160xf32> to vector<112x160xbf16>
    %c0_53 = arith.constant 0 : index
    %c0_54 = arith.constant 0 : index
    %c0_55 = arith.constant 0 : index
    %81 = vector.load %arg6[%c0_53, %c0_54, %c0_55] : memref<2x160x80xbf16, #tpu.memory_space<vmem>>, vector<1x160x80xbf16>
    %82 = vector.shape_cast %81 : vector<1x160x80xbf16> to vector<160x80xbf16>
    %cst_56 = arith.constant dense<0.000000e+00> : vector<112x80xf32>
    %83 = tpu.matmul %80, %82, %cst_56 {dimension_numbers = #tpu.dot_dimension_numbers<[1], [0], [0], [1], [0, 0, 1, 1], [], []>} : vector<112x160xbf16>, vector<160x80xbf16>, vector<112x80xf32> -> vector<112x80xf32>
    %c1_57 = arith.constant 1 : index
    %c0_58 = arith.constant 0 : index
    %c0_59 = arith.constant 0 : index
    %84 = vector.load %arg6[%c1_57, %c0_58, %c0_59] : memref<2x160x80xbf16, #tpu.memory_space<vmem>>, vector<1x160x80xbf16>
    %85 = vector.shape_cast %84 : vector<1x160x80xbf16> to vector<160x80xbf16>
    %cst_60 = arith.constant dense<0.000000e+00> : vector<112x80xf32>
    %86 = tpu.matmul %80, %85, %cst_60 {dimension_numbers = #tpu.dot_dimension_numbers<[1], [0], [0], [1], [0, 0, 1, 1], [], []>} : vector<112x160xbf16>, vector<160x80xbf16>, vector<112x80xf32> -> vector<112x80xf32>
    %87 = arith.maximumf %83, %86 : vector<112x80xf32>
    %c111_i32_61 = arith.constant 111 : i32
    %88 = tpu.dynamic_rotate %87 by %c111_i32_61 dim 0 : vector<112x80xf32>, i32 -> vector<112x80xf32>
    %89 = arith.maximumf %87, %88 : vector<112x80xf32>
    %c0_62 = arith.constant 0 : index
    %c0_63 = arith.constant 0 : index
    %90 = vector.load %arg7[%c0_62, %c0_63] : memref<40x112xbf16, #tpu.memory_space<vmem>>, vector<40x112xbf16>
    %91 = arith.truncf %89 : vector<112x80xf32> to vector<112x80xbf16>
    %cst_64 = arith.constant dense<0.000000e+00> : vector<40x80xf32>
    %92 = tpu.matmul %90, %91, %cst_64 {dimension_numbers = #tpu.dot_dimension_numbers<[1], [0], [0], [1], [0, 0, 1, 1], [], []>} : vector<40x112xbf16>, vector<112x80xbf16>, vector<40x80xf32> -> vector<40x80xf32>
    %93 = arith.truncf %92 : vector<40x80xf32> to vector<40x80xbf16>
    %c0_65 = arith.constant 0 : index
    %c0_66 = arith.constant 0 : index
    %c0_67 = arith.constant 0 : index
    %94 = vector.load %arg8[%c0_65, %c0_66, %c0_67] : memref<5x80x120xbf16, #tpu.memory_space<vmem>>, vector<1x80x120xbf16>
    %95 = vector.shape_cast %94 : vector<1x80x120xbf16> to vector<80x120xbf16>
    %cst_68 = arith.constant dense<0.000000e+00> : vector<40x120xf32>
    %96 = tpu.matmul %93, %95, %cst_68 {dimension_numbers = #tpu.dot_dimension_numbers<[1], [0], [0], [1], [0, 0, 1, 1], [], []>} : vector<40x80xbf16>, vector<80x120xbf16>, vector<40x120xf32> -> vector<40x120xf32>
    %c39_i32 = arith.constant 39 : i32
    %97 = tpu.dynamic_rotate %92 by %c39_i32 dim 0 : vector<40x80xf32>, i32 -> vector<40x80xf32>
    %98 = arith.truncf %97 : vector<40x80xf32> to vector<40x80xbf16>
    %c1_69 = arith.constant 1 : index
    %c0_70 = arith.constant 0 : index
    %c0_71 = arith.constant 0 : index
    %99 = vector.load %arg8[%c1_69, %c0_70, %c0_71] : memref<5x80x120xbf16, #tpu.memory_space<vmem>>, vector<1x80x120xbf16>
    %100 = vector.shape_cast %99 : vector<1x80x120xbf16> to vector<80x120xbf16>
    %cst_72 = arith.constant dense<0.000000e+00> : vector<40x120xf32>
    %101 = tpu.matmul %98, %100, %cst_72 {dimension_numbers = #tpu.dot_dimension_numbers<[1], [0], [0], [1], [0, 0, 1, 1], [], []>} : vector<40x80xbf16>, vector<80x120xbf16>, vector<40x120xf32> -> vector<40x120xf32>
    %102 = arith.addf %96, %101 : vector<40x120xf32>
    %c38_i32 = arith.constant 38 : i32
    %103 = tpu.dynamic_rotate %92 by %c38_i32 dim 0 : vector<40x80xf32>, i32 -> vector<40x80xf32>
    %104 = arith.truncf %103 : vector<40x80xf32> to vector<40x80xbf16>
    %c2_73 = arith.constant 2 : index
    %c0_74 = arith.constant 0 : index
    %c0_75 = arith.constant 0 : index
    %105 = vector.load %arg8[%c2_73, %c0_74, %c0_75] : memref<5x80x120xbf16, #tpu.memory_space<vmem>>, vector<1x80x120xbf16>
    %106 = vector.shape_cast %105 : vector<1x80x120xbf16> to vector<80x120xbf16>
    %cst_76 = arith.constant dense<0.000000e+00> : vector<40x120xf32>
    %107 = tpu.matmul %104, %106, %cst_76 {dimension_numbers = #tpu.dot_dimension_numbers<[1], [0], [0], [1], [0, 0, 1, 1], [], []>} : vector<40x80xbf16>, vector<80x120xbf16>, vector<40x120xf32> -> vector<40x120xf32>
    %108 = arith.addf %102, %107 : vector<40x120xf32>
    %c37_i32 = arith.constant 37 : i32
    %109 = tpu.dynamic_rotate %92 by %c37_i32 dim 0 : vector<40x80xf32>, i32 -> vector<40x80xf32>
    %110 = arith.truncf %109 : vector<40x80xf32> to vector<40x80xbf16>
    %c3_77 = arith.constant 3 : index
    %c0_78 = arith.constant 0 : index
    %c0_79 = arith.constant 0 : index
    %111 = vector.load %arg8[%c3_77, %c0_78, %c0_79] : memref<5x80x120xbf16, #tpu.memory_space<vmem>>, vector<1x80x120xbf16>
    %112 = vector.shape_cast %111 : vector<1x80x120xbf16> to vector<80x120xbf16>
    %cst_80 = arith.constant dense<0.000000e+00> : vector<40x120xf32>
    %113 = tpu.matmul %110, %112, %cst_80 {dimension_numbers = #tpu.dot_dimension_numbers<[1], [0], [0], [1], [0, 0, 1, 1], [], []>} : vector<40x80xbf16>, vector<80x120xbf16>, vector<40x120xf32> -> vector<40x120xf32>
    %114 = arith.addf %108, %113 : vector<40x120xf32>
    %c36_i32 = arith.constant 36 : i32
    %115 = tpu.dynamic_rotate %92 by %c36_i32 dim 0 : vector<40x80xf32>, i32 -> vector<40x80xf32>
    %116 = arith.truncf %115 : vector<40x80xf32> to vector<40x80xbf16>
    %c4_81 = arith.constant 4 : index
    %c0_82 = arith.constant 0 : index
    %c0_83 = arith.constant 0 : index
    %117 = vector.load %arg8[%c4_81, %c0_82, %c0_83] : memref<5x80x120xbf16, #tpu.memory_space<vmem>>, vector<1x80x120xbf16>
    %118 = vector.shape_cast %117 : vector<1x80x120xbf16> to vector<80x120xbf16>
    %cst_84 = arith.constant dense<0.000000e+00> : vector<40x120xf32>
    %119 = tpu.matmul %116, %118, %cst_84 {dimension_numbers = #tpu.dot_dimension_numbers<[1], [0], [0], [1], [0, 0, 1, 1], [], []>} : vector<40x80xbf16>, vector<80x120xbf16>, vector<40x120xf32> -> vector<40x120xf32>
    %120 = arith.addf %114, %119 : vector<40x120xf32>
    %c0_85 = arith.constant 0 : index
    %c0_86 = arith.constant 0 : index
    %121 = vector.load %arg9[%c0_85, %c0_86] : memref<8x40xbf16, #tpu.memory_space<vmem>>, vector<8x40xbf16>
    %122 = arith.truncf %120 : vector<40x120xf32> to vector<40x120xbf16>
    %cst_87 = arith.constant dense<0.000000e+00> : vector<8x120xf32>
    %123 = tpu.matmul %121, %122, %cst_87 {dimension_numbers = #tpu.dot_dimension_numbers<[1], [0], [0], [1], [0, 0, 1, 1], [], []>} : vector<8x40xbf16>, vector<40x120xbf16>, vector<8x120xf32> -> vector<8x120xf32>
    %c0_88 = arith.constant 0 : index
    %c512 = arith.constant 512 : index
    %124 = vector.load %arg13[%c0_88, %c512] : memref<1x1024xf32, #tpu.memory_space<vmem>>, vector<1x120xf32>
    %125 = vector.broadcast %124 : vector<1x120xf32> to vector<8x120xf32>
    %126 = arith.addf %123, %125 : vector<8x120xf32>
    %cst_89 = arith.constant 0.000000e+00 : f32
    %127 = vector.broadcast %cst_89 : f32 to vector<8x120xf32>
    %128 = arith.maximumf %126, %127 : vector<8x120xf32>
    %129 = arith.truncf %128 : vector<8x120xf32> to vector<8x120xbf16>
    %c0_90 = arith.constant 0 : index
    %c0_91 = arith.constant 0 : index
    %130 = vector.load %arg10[%c0_90, %c0_91] : memref<120x84xbf16, #tpu.memory_space<vmem>>, vector<120x84xbf16>
    %cst_92 = arith.constant dense<0.000000e+00> : vector<8x84xf32>
    %131 = tpu.matmul %129, %130, %cst_92 {dimension_numbers = #tpu.dot_dimension_numbers<[1], [0], [0], [1], [0, 0, 1, 1], [], []>} : vector<8x120xbf16>, vector<120x84xbf16>, vector<8x84xf32> -> vector<8x84xf32>
    %c0_93 = arith.constant 0 : index
    %c640 = arith.constant 640 : index
    %132 = vector.load %arg13[%c0_93, %c640] : memref<1x1024xf32, #tpu.memory_space<vmem>>, vector<1x84xf32>
    %133 = vector.broadcast %132 : vector<1x84xf32> to vector<8x84xf32>
    %134 = arith.addf %131, %133 : vector<8x84xf32>
    %cst_94 = arith.constant 0.000000e+00 : f32
    %135 = vector.broadcast %cst_94 : f32 to vector<8x84xf32>
    %136 = arith.maximumf %134, %135 : vector<8x84xf32>
    %137 = arith.truncf %136 : vector<8x84xf32> to vector<8x84xbf16>
    %c0_95 = arith.constant 0 : index
    %c0_96 = arith.constant 0 : index
    %138 = vector.load %arg11[%c0_95, %c0_96] : memref<84x84xbf16, #tpu.memory_space<vmem>>, vector<84x84xbf16>
    %cst_97 = arith.constant dense<0.000000e+00> : vector<8x84xf32>
    %139 = tpu.matmul %137, %138, %cst_97 {dimension_numbers = #tpu.dot_dimension_numbers<[1], [0], [0], [1], [0, 0, 1, 1], [], []>} : vector<8x84xbf16>, vector<84x84xbf16>, vector<8x84xf32> -> vector<8x84xf32>
    %c0_98 = arith.constant 0 : index
    %c768 = arith.constant 768 : index
    %140 = vector.load %arg13[%c0_98, %c768] : memref<1x1024xf32, #tpu.memory_space<vmem>>, vector<1x84xf32>
    %141 = vector.broadcast %140 : vector<1x84xf32> to vector<8x84xf32>
    %142 = arith.addf %139, %141 : vector<8x84xf32>
    %cst_99 = arith.constant 0.000000e+00 : f32
    %143 = vector.broadcast %cst_99 : f32 to vector<8x84xf32>
    %144 = arith.maximumf %142, %143 : vector<8x84xf32>
    %145 = arith.truncf %144 : vector<8x84xf32> to vector<8x84xbf16>
    %c0_100 = arith.constant 0 : index
    %c0_101 = arith.constant 0 : index
    %146 = vector.load %arg12[%c0_100, %c0_101] : memref<84x32xbf16, #tpu.memory_space<vmem>>, vector<84x32xbf16>
    %cst_102 = arith.constant dense<0.000000e+00> : vector<8x32xf32>
    %147 = tpu.matmul %145, %146, %cst_102 {dimension_numbers = #tpu.dot_dimension_numbers<[1], [0], [0], [1], [0, 0, 1, 1], [], []>} : vector<8x84xbf16>, vector<84x32xbf16>, vector<8x32xf32> -> vector<8x32xf32>
    %c0_103 = arith.constant 0 : index
    %c896 = arith.constant 896 : index
    %148 = vector.load %arg13[%c0_103, %c896] : memref<1x1024xf32, #tpu.memory_space<vmem>>, vector<1x32xf32>
    %149 = vector.broadcast %148 : vector<1x32xf32> to vector<8x32xf32>
    %150 = arith.addf %147, %149 : vector<8x32xf32>
    %151 = arith.mulf %150, %150 : vector<8x32xf32>
    %cst_104 = arith.constant dense<0.000000e+00> : vector<8xf32>
    %152 = vector.multi_reduction <add>, %151, %cst_104 [1] : vector<8x32xf32> to vector<8xf32>
    %153 = vector.shape_cast %152 : vector<8xf32> to vector<8x1xf32>
    %cst_105 = arith.constant 1.000000e-24 : f32
    %154 = vector.broadcast %cst_105 : f32 to vector<8x1xf32>
    %155 = arith.maximumf %153, %154 : vector<8x1xf32>
    %156 = math.rsqrt %155 : vector<8x1xf32>
    %c0_106 = arith.constant 0 : index
    %c0_107 = arith.constant 0 : index
    %157 = vector.load %arg14[%c0_106, %c0_107] : memref<8x128xf32, #tpu.memory_space<vmem>>, vector<8x84xf32>
    tpu.vector_store %arg14[%c0_106, %c0_107], %144 {strides = array<i32>} : memref<8x128xf32, #tpu.memory_space<vmem>>, vector<8x84xf32>,
    %158 = vector.broadcast %156 : vector<8x1xf32> to vector<8x32xf32>
    %159 = arith.mulf %150, %158 : vector<8x32xf32>
    %c0_108 = arith.constant 0 : index
    %c84 = arith.constant 84 : index
    %160 = vector.load %arg14[%c0_108, %c84] : memref<8x128xf32, #tpu.memory_space<vmem>>, vector<8x32xf32>
    tpu.vector_store %arg14[%c0_108, %c84], %159 {strides = array<i32>} : memref<8x128xf32, #tpu.memory_space<vmem>>, vector<8x32xf32>,
    %cst_109 = arith.constant 0.000000e+00 : f32
    %161 = vector.broadcast %cst_109 : f32 to vector<8x12xf32>
    %c0_110 = arith.constant 0 : index
    %c116 = arith.constant 116 : index
    %162 = vector.load %arg14[%c0_110, %c116] : memref<8x128xf32, #tpu.memory_space<vmem>>, vector<8x12xf32>
    tpu.vector_store %arg14[%c0_110, %c116], %161 {strides = array<i32>} : memref<8x128xf32, #tpu.memory_space<vmem>>, vector<8x12xf32>,
    return
  }
  func.func @transform_0(%arg0: i32) -> (i32, i32) {
    %c0_i32 = arith.constant 0 : i32
    %c0_i32_0 = arith.constant 0 : i32
    return %arg0, %c0_i32 : i32, i32
  }
  func.func @transform_1(%arg0: i32) -> (i32, i32, i32) {
    %c0_i32 = arith.constant 0 : i32
    %c0_i32_0 = arith.constant 0 : i32
    %c0_i32_1 = arith.constant 0 : i32
    %c0_i32_2 = arith.constant 0 : i32
    return %c0_i32, %c0_i32_0, %c0_i32_1 : i32, i32, i32
  }
  func.func @transform_2(%arg0: i32) -> (i32, i32, i32) {
    %c0_i32 = arith.constant 0 : i32
    %c0_i32_0 = arith.constant 0 : i32
    %c0_i32_1 = arith.constant 0 : i32
    %c0_i32_2 = arith.constant 0 : i32
    return %c0_i32, %c0_i32_0, %c0_i32_1 : i32, i32, i32
  }
  func.func @transform_3(%arg0: i32) -> (i32, i32) {
    %c0_i32 = arith.constant 0 : i32
    %c0_i32_0 = arith.constant 0 : i32
    %c0_i32_1 = arith.constant 0 : i32
    return %c0_i32, %c0_i32_0 : i32, i32
  }
  func.func @transform_4(%arg0: i32) -> (i32, i32, i32) {
    %c0_i32 = arith.constant 0 : i32
    %c0_i32_0 = arith.constant 0 : i32
    %c0_i32_1 = arith.constant 0 : i32
    %c0_i32_2 = arith.constant 0 : i32
    return %c0_i32, %c0_i32_0, %c0_i32_1 : i32, i32, i32
  }
  func.func @transform_5(%arg0: i32) -> (i32, i32, i32) {
    %c0_i32 = arith.constant 0 : i32
    %c0_i32_0 = arith.constant 0 : i32
    %c0_i32_1 = arith.constant 0 : i32
    %c0_i32_2 = arith.constant 0 : i32
    return %c0_i32, %c0_i32_0, %c0_i32_1 : i32, i32, i32
  }
  func.func @transform_6(%arg0: i32) -> (i32, i32) {
    %c0_i32 = arith.constant 0 : i32
    %c0_i32_0 = arith.constant 0 : i32
    %c0_i32_1 = arith.constant 0 : i32
    return %c0_i32, %c0_i32_0 : i32, i32
  }
  func.func @transform_7(%arg0: i32) -> (i32, i32, i32) {
    %c0_i32 = arith.constant 0 : i32
    %c0_i32_0 = arith.constant 0 : i32
    %c0_i32_1 = arith.constant 0 : i32
    %c0_i32_2 = arith.constant 0 : i32
    return %c0_i32, %c0_i32_0, %c0_i32_1 : i32, i32, i32
  }
  func.func @transform_8(%arg0: i32) -> (i32, i32) {
    %c0_i32 = arith.constant 0 : i32
    %c0_i32_0 = arith.constant 0 : i32
    %c0_i32_1 = arith.constant 0 : i32
    return %c0_i32, %c0_i32_0 : i32, i32
  }
  func.func @transform_9(%arg0: i32) -> (i32, i32) {
    %c0_i32 = arith.constant 0 : i32
    %c0_i32_0 = arith.constant 0 : i32
    %c0_i32_1 = arith.constant 0 : i32
    return %c0_i32, %c0_i32_0 : i32, i32
  }
  func.func @transform_10(%arg0: i32) -> (i32, i32) {
    %c0_i32 = arith.constant 0 : i32
    %c0_i32_0 = arith.constant 0 : i32
    %c0_i32_1 = arith.constant 0 : i32
    return %c0_i32, %c0_i32_0 : i32, i32
  }
  func.func @transform_11(%arg0: i32) -> (i32, i32) {
    %c0_i32 = arith.constant 0 : i32
    %c0_i32_0 = arith.constant 0 : i32
    %c0_i32_1 = arith.constant 0 : i32
    return %c0_i32, %c0_i32_0 : i32, i32
  }
  func.func @transform_12(%arg0: i32) -> (i32, i32) {
    %c0_i32 = arith.constant 0 : i32
    %c0_i32_0 = arith.constant 0 : i32
    %c0_i32_1 = arith.constant 0 : i32
    return %c0_i32, %c0_i32_0 : i32, i32
  }
  func.func @transform_13(%arg0: i32) -> (i32, i32) {
    %c0_i32 = arith.constant 0 : i32
    %c0_i32_0 = arith.constant 0 : i32
    return %arg0, %c0_i32 : i32, i32
  }
}

</mosaic_0001>

<llo_original>
// kernel: forward.1
$region0: #{forward.1}
  #allocation0 [shape = 'u32[]', space=smem, size = 0x4, offset = 0x4, fixed_abs, tag = 'smem constant byte address 0x4 - core index']
  #allocation1 [shape = 'u32[144,128]{1,0:T(1,128)}', space=vmem, size = 0x12000, scoped, tag = 'internal scratch']
  %s0 = inlined_call_operand.vmem [shape: f32[512,96], index: 0, kind: input, shape index: {}]
  %s1 = inlined_call_operand.vmem [shape: bf16[5,96,168], index: 1, kind: input, shape index: {}]
  %s2 = inlined_call_operand.vmem [shape: bf16[2,168,84], index: 2, kind: input, shape index: {}]
  %s3 = inlined_call_operand.vmem [shape: bf16[112,256], index: 3, kind: input, shape index: {}]
  %s4 = inlined_call_operand.vmem [shape: bf16[5,84,160], index: 4, kind: input, shape index: {}]
  %s5 = inlined_call_operand.vmem [shape: bf16[2,160,80], index: 5, kind: input, shape index: {}]
  %s6 = inlined_call_operand.vmem [shape: bf16[40,112], index: 6, kind: input, shape index: {}]
  %s7 = inlined_call_operand.vmem [shape: bf16[5,80,120], index: 7, kind: input, shape index: {}]
  %s8 = inlined_call_operand.vmem [shape: bf16[8,40], index: 8, kind: input, shape index: {}]
  %s9 = inlined_call_operand.vmem [shape: bf16[120,84], index: 9, kind: input, shape index: {}]
  %s10 = inlined_call_operand.vmem [shape: bf16[84,84], index: 10, kind: input, shape index: {}]
  %s11 = inlined_call_operand.vmem [shape: bf16[84,32], index: 11, kind: input, shape index: {}]
  %s12 = inlined_call_operand.vmem [shape: f32[1,1024], index: 12, kind: input, shape index: {}]
  %s13 = inlined_call_operand.vmem [shape: f32[16,128], index: 13, kind: output, shape index: {}]
  %s14 = sld [smem:[#allocation0]]
  $region85: #{forward.1} parent=0
    _
  %s16 = ssub.s32 1, %s14
  %s17 = scalar_select 0, %s16, %s14
  loop: start=0, step=1, limit=4
  $region2: #{forward.1} parent=0 // loop_pre_header
    _
  $region3: #{forward.1} parent=0 // loop_header
    %s19 = sphi 0, %s23
    %p20 = scmp.ge.s32.totalorder %s19, 4
    %s29 = sphi 0, %s31
    %s32 = sphi 0, %s29
    %s33 = sphi 0, %s32
    %s49 = sphi 0, %s33
    %s53 = sphi 0, %s53
    %s55 = sphi 0, %s53
    %s56 = sphi 0, %s55
    %s70 = sphi 0, %s56
    %s74 = sphi 0, %s74
    %s76 = sphi 0, %s74
    %s77 = sphi 0, %s76
    %s91 = sphi 0, %s77
    %s95 = sphi 0, %s95
    %s97 = sphi 0, %s95
    %s98 = sphi 0, %s97
    %s112 = sphi 0, %s98
    %s116 = sphi 0, %s116
    %s118 = sphi 0, %s116
    %s119 = sphi 0, %s118
    %s133 = sphi 0, %s119
    %s137 = sphi 0, %s137
    %s139 = sphi 0, %s137
    %s140 = sphi 0, %s139
    %s154 = sphi 0, %s140
    %s158 = sphi 0, %s158
    %s160 = sphi 0, %s158
    %s161 = sphi 0, %s160
    %s175 = sphi 0, %s161
    %s179 = sphi 0, %s179
    %s181 = sphi 0, %s179
    %s182 = sphi 0, %s181
    %s196 = sphi 0, %s182
    %s200 = sphi 0, %s200
    %s202 = sphi 0, %s200
    %s203 = sphi 0, %s202
    %s217 = sphi 0, %s203
    %s221 = sphi 0, %s221
    %s223 = sphi 0, %s221
    %s224 = sphi 0, %s223
    %s238 = sphi 0, %s224
    %s242 = sphi 0, %s242
    %s244 = sphi 0, %s242
    %s245 = sphi 0, %s244
    %s259 = sphi 0, %s245
    %s263 = sphi 0, %s263
    %s265 = sphi 0, %s263
    %s266 = sphi 0, %s265
    %s280 = sphi 0, %s266
    %s284 = sphi 0, %s284
    %s286 = sphi 0, %s284
    %s287 = sphi 0, %s286
    %s301 = sphi 0, %s287
    %s307 = sphi 0, %s309
    %s310 = sphi 0, %s307
    %s311 = sphi 0, %s310
    %s327 = sphi 0, %s311
  $region4: #{forward.1} parent=0 // loop_header_branch
    %22 = sbr.rel (%p20) target = $region8
  $region5: #{forward.1} parent=0 // loop_body
    %s24 = ssub.s32 %s19, 1
    %s25 = ssub.s32 %s19, 2
    %s26 = sadd.s32 %s19, 1
    %s27 = ssub.s32 %s19, %s26
    %p28 = scmp.eq.s32.totalorder %s27, 0
    %s30 = sadd.s32 %s29, 1
    %s31 = scalar_select %p28, %s29, %s30
    %p34 = pneg %p28
    %p35 = scmp.eq.s32.totalorder %s19, 1
    %p36 = por %p34, %p35
    %p37 = scmp.ne.s32.totalorder %s29, %s32
    %p38 = scmp.eq.s32.totalorder %s19, 0
    %p39 = por %p37, %p38
    %p40 = scmp.ne.s32.totalorder %s29, %s32
    %p41 = scmp.eq.s32.totalorder %s24, 1
    %p42 = por %p40, %p41
    %p43 = scmp.ne.s32.totalorder %s32, %s33
    %p44 = scmp.eq.s32.totalorder %s24, 0
    %p45 = por %p43, %p44
    %p46 = scmp.ne.s32.totalorder %s32, %s33
    %p47 = scmp.eq.s32.totalorder %s25, 1
    %p48 = por %p46, %p47
    %p50 = scmp.ne.s32.totalorder %s33, %s49
    %p51 = scmp.eq.s32.totalorder %s25, 0
    %p52 = por %p50, %p51
    %s54 = sadd.s32 %s53, 1
    %p57 = scmp.eq.s32.totalorder %s19, 1
    %p58 = scmp.ne.s32.totalorder %s53, %s55
    %p59 = scmp.eq.s32.totalorder %s19, 0
    %p60 = por %p58, %p59
    %p61 = scmp.ne.s32.totalorder %s53, %s55
    %p62 = scmp.eq.s32.totalorder %s24, 1
    %p63 = por %p61, %p62
    %p64 = scmp.ne.s32.totalorder %s55, %s56
    %p65 = scmp.eq.s32.totalorder %s24, 0
    %p66 = por %p64, %p65
    %p67 = scmp.ne.s32.totalorder %s55, %s56
    %p68 = scmp.eq.s32.totalorder %s25, 1
    %p69 = por %p67, %p68
    %p71 = scmp.ne.s32.totalorder %s56, %s70
    %p72 = scmp.eq.s32.totalorder %s25, 0
    %p73 = por %p71, %p72
    %s75 = sadd.s32 %s74, 1
    %p78 = scmp.eq.s32.totalorder %s19, 1
    %p79 = scmp.ne.s32.totalorder %s74, %s76
    %p80 = scmp.eq.s32.totalorder %s19, 0
    %p81 = por %p79, %p80
    %p82 = scmp.ne.s32.totalorder %s74, %s76
    %p83 = scmp.eq.s32.totalorder %s24, 1
    %p84 = por %p82, %p83
    %p85 = scmp.ne.s32.totalorder %s76, %s77
    %p86 = scmp.eq.s32.totalorder %s24, 0
    %p87 = por %p85, %p86
    %p88 = scmp.ne.s32.totalorder %s76, %s77
    %p89 = scmp.eq.s32.totalorder %s25, 1
    %p90 = por %p88, %p89
    %p92 = scmp.ne.s32.totalorder %s77, %s91
    %p93 = scmp.eq.s32.totalorder %s25, 0
    %p94 = por %p92, %p93
    %s96 = sadd.s32 %s95, 1
    %p99 = scmp.eq.s32.totalorder %s19, 1
    %p100 = scmp.ne.s32.totalorder %s95, %s97
    %p101 = scmp.eq.s32.totalorder %s19, 0
    %p102 = por %p100, %p101
    %p103 = scmp.ne.s32.totalorder %s95, %s97
    %p104 = scmp.eq.s32.totalorder %s24, 1
    %p105 = por %p103, %p104
    %p106 = scmp.ne.s32.totalorder %s97, %s98
    %p107 = scmp.eq.s32.totalorder %s24, 0
    %p108 = por %p106, %p107
    %p109 = scmp.ne.s32.totalorder %s97, %s98
    %p110 = scmp.eq.s32.totalorder %s25, 1
    %p111 = por %p109, %p110
    %p113 = scmp.ne.s32.totalorder %s98, %s112
    %p114 = scmp.eq.s32.totalorder %s25, 0
    %p115 = por %p113, %p114
    %s117 = sadd.s32 %s116, 1
    %p120 = scmp.eq.s32.totalorder %s19, 1
    %p121 = scmp.ne.s32.totalorder %s116, %s118
    %p122 = scmp.eq.s32.totalorder %s19, 0
    %p123 = por %p121, %p122
    %p124 = scmp.ne.s32.totalorder %s116, %s118
    %p125 = scmp.eq.s32.totalorder %s24, 1
    %p126 = por %p124, %p125
    %p127 = scmp.ne.s32.totalorder %s118, %s119
    %p128 = scmp.eq.s32.totalorder %s24, 0
    %p129 = por %p127, %p128
    %p130 = scmp.ne.s32.totalorder %s118, %s119
    %p131 = scmp.eq.s32.totalorder %s25, 1
    %p132 = por %p130, %p131
    %p134 = scmp.ne.s32.totalorder %s119, %s133
    %p135 = scmp.eq.s32.totalorder %s25, 0
    %p136 = por %p134, %p135
    %s138 = sadd.s32 %s137, 1
    %p141 = scmp.eq.s32.totalorder %s19, 1
    %p142 = scmp.ne.s32.totalorder %s137, %s139
    %p143 = scmp.eq.s32.totalorder %s19, 0
    %p144 = por %p142, %p143
    %p145 = scmp.ne.s32.totalorder %s137, %s139
    %p146 = scmp.eq.s32.totalorder %s24, 1
    %p147 = por %p145, %p146
    %p148 = scmp.ne.s32.totalorder %s139, %s140
    %p149 = scmp.eq.s32.totalorder %s24, 0
    %p150 = por %p148, %p149
    %p151 = scmp.ne.s32.totalorder %s139, %s140
    %p152 = scmp.eq.s32.totalorder %s25, 1
    %p153 = por %p151, %p152
    %p155 = scmp.ne.s32.totalorder %s140, %s154
    %p156 = scmp.eq.s32.totalorder %s25, 0
    %p157 = por %p155, %p156
    %s159 = sadd.s32 %s158, 1
    %p162 = scmp.eq.s32.totalorder %s19, 1
    %p163 = scmp.ne.s32.totalorder %s158, %s160
    %p164 = scmp.eq.s32.totalorder %s19, 0
    %p165 = por %p163, %p164
    %p166 = scmp.ne.s32.totalorder %s158, %s160
    %p167 = scmp.eq.s32.totalorder %s24, 1
    %p168 = por %p166, %p167
    %p169 = scmp.ne.s32.totalorder %s160, %s161
    %p170 = scmp.eq.s32.totalorder %s24, 0
    %p171 = por %p169, %p170
    %p172 = scmp.ne.s32.totalorder %s160, %s161
    %p173 = scmp.eq.s32.totalorder %s25, 1
    %p174 = por %p172, %p173
    %p176 = scmp.ne.s32.totalorder %s161, %s175
    %p177 = scmp.eq.s32.totalorder %s25, 0
    %p178 = por %p176, %p177
    %s180 = sadd.s32 %s179, 1
    %p183 = scmp.eq.s32.totalorder %s19, 1
    %p184 = scmp.ne.s32.totalorder %s179, %s181
    %p185 = scmp.eq.s32.totalorder %s19, 0
    %p186 = por %p184, %p185
    %p187 = scmp.ne.s32.totalorder %s179, %s181
    %p188 = scmp.eq.s32.totalorder %s24, 1
    %p189 = por %p187, %p188
    %p190 = scmp.ne.s32.totalorder %s181, %s182
    %p191 = scmp.eq.s32.totalorder %s24, 0
    %p192 = por %p190, %p191
    %p193 = scmp.ne.s32.totalorder %s181, %s182
    %p194 = scmp.eq.s32.totalorder %s25, 1
    %p195 = por %p193, %p194
    %p197 = scmp.ne.s32.totalorder %s182, %s196
    %p198 = scmp.eq.s32.totalorder %s25, 0
    %p199 = por %p197, %p198
    %s201 = sadd.s32 %s200, 1
    %p204 = scmp.eq.s32.totalorder %s19, 1
    %p205 = scmp.ne.s32.totalorder %s200, %s202
    %p206 = scmp.eq.s32.totalorder %s19, 0
    %p207 = por %p205, %p206
    %p208 = scmp.ne.s32.totalorder %s200, %s202
    %p209 = scmp.eq.s32.totalorder %s24, 1
    %p210 = por %p208, %p209
    %p211 = scmp.ne.s32.totalorder %s202, %s203
    %p212 = scmp.eq.s32.totalorder %s24, 0
    %p213 = por %p211, %p212
    %p214 = scmp.ne.s32.totalorder %s202, %s203
    %p215 = scmp.eq.s32.totalorder %s25, 1
    %p216 = por %p214, %p215
    %p218 = scmp.ne.s32.totalorder %s203, %s217
    %p219 = scmp.eq.s32.totalorder %s25, 0
    %p220 = por %p218, %p219
    %s222 = sadd.s32 %s221, 1
    %p225 = scmp.eq.s32.totalorder %s19, 1
    %p226 = scmp.ne.s32.totalorder %s221, %s223
    %p227 = scmp.eq.s32.totalorder %s19, 0
    %p228 = por %p226, %p227
    %p229 = scmp.ne.s32.totalorder %s221, %s223
    %p230 = scmp.eq.s32.totalorder %s24, 1
    %p231 = por %p229, %p230
    %p232 = scmp.ne.s32.totalorder %s223, %s224
    %p233 = scmp.eq.s32.totalorder %s24, 0
    %p234 = por %p232, %p233
    %p235 = scmp.ne.s32.totalorder %s223, %s224
    %p236 = scmp.eq.s32.totalorder %s25, 1
    %p237 = por %p235, %p236
    %p239 = scmp.ne.s32.totalorder %s224, %s238
    %p240 = scmp.eq.s32.totalorder %s25, 0
    %p241 = por %p239, %p240
    %s243 = sadd.s32 %s242, 1
    %p246 = scmp.eq.s32.totalorder %s19, 1
    %p247 = scmp.ne.s32.totalorder %s242, %s244
    %p248 = scmp.eq.s32.totalorder %s19, 0
    %p249 = por %p247, %p248
    %p250 = scmp.ne.s32.totalorder %s242, %s244
    %p251 = scmp.eq.s32.totalorder %s24, 1
    %p252 = por %p250, %p251
    %p253 = scmp.ne.s32.totalorder %s244, %s245
    %p254 = scmp.eq.s32.totalorder %s24, 0
    %p255 = por %p253, %p254
    %p256 = scmp.ne.s32.totalorder %s244, %s245
    %p257 = scmp.eq.s32.totalorder %s25, 1
    %p258 = por %p256, %p257
    %p260 = scmp.ne.s32.totalorder %s245, %s259
    %p261 = scmp.eq.s32.totalorder %s25, 0
    %p262 = por %p260, %p261
    %s264 = sadd.s32 %s263, 1
    %p267 = scmp.eq.s32.totalorder %s19, 1
    %p268 = scmp.ne.s32.totalorder %s263, %s265
    %p269 = scmp.eq.s32.totalorder %s19, 0
    %p270 = por %p268, %p269
    %p271 = scmp.ne.s32.totalorder %s263, %s265
    %p272 = scmp.eq.s32.totalorder %s24, 1
    %p273 = por %p271, %p272
    %p274 = scmp.ne.s32.totalorder %s265, %s266
    %p275 = scmp.eq.s32.totalorder %s24, 0
    %p276 = por %p274, %p275
    %p277 = scmp.ne.s32.totalorder %s265, %s266
    %p278 = scmp.eq.s32.totalorder %s25, 1
    %p279 = por %p277, %p278
    %p281 = scmp.ne.s32.totalorder %s266, %s280
    %p282 = scmp.eq.s32.totalorder %s25, 0
    %p283 = por %p281, %p282
    %s285 = sadd.s32 %s284, 1
    %p288 = scmp.eq.s32.totalorder %s19, 1
    %p289 = scmp.ne.s32.totalorder %s284, %s286
    %p290 = scmp.eq.s32.totalorder %s19, 0
    %p291 = por %p289, %p290
    %p292 = scmp.ne.s32.totalorder %s284, %s286
    %p293 = scmp.eq.s32.totalorder %s24, 1
    %p294 = por %p292, %p293
    %p295 = scmp.ne.s32.totalorder %s286, %s287
    %p296 = scmp.eq.s32.totalorder %s24, 0
    %p297 = por %p295, %p296
    %p298 = scmp.ne.s32.totalorder %s286, %s287
    %p299 = scmp.eq.s32.totalorder %s25, 1
    %p300 = por %p298, %p299
    %p302 = scmp.ne.s32.totalorder %s287, %s301
    %p303 = scmp.eq.s32.totalorder %s25, 0
    %p304 = por %p302, %p303
    %s305 = ssub.s32 %s19, %s26
    %p306 = scmp.eq.s32.totalorder %s305, 0
    %s308 = sadd.s32 %s307, 1
    %s309 = scalar_select %p306, %s307, %s308
    %p312 = pneg %p306
    %p313 = scmp.eq.s32.totalorder %s19, 1
    %p314 = por %p312, %p313
    %p315 = scmp.ne.s32.totalorder %s307, %s310
    %p316 = scmp.eq.s32.totalorder %s19, 0
    %p317 = por %p315, %p316
    %p318 = scmp.ne.s32.totalorder %s307, %s310
    %p319 = scmp.eq.s32.totalorder %s24, 1
    %p320 = por %p318, %p319
    %p321 = scmp.ne.s32.totalorder %s310, %s311
    %p322 = scmp.eq.s32.totalorder %s24, 0
    %p323 = por %p321, %p322
    %p324 = scmp.ne.s32.totalorder %s310, %s311
    %p325 = scmp.eq.s32.totalorder %s25, 1
    %p326 = por %p324, %p325
    %p328 = scmp.ne.s32.totalorder %s311, %s327
    %p329 = scmp.eq.s32.totalorder %s25, 0
    %p330 = por %p328, %p329
    %p331 = scmp.le.s32.totalorder 1, %s19
    %p332 = scmp.lt.s32.totalorder %s19, 3
    %p333 = pnand %p331, %p332
    %p334 = pneg %p333
    // Predicated region
    $region9: #{forward.1} parent=5 // pred_check
      _
    $region10: #{forward.1} parent=5 // pred_check_branch
      %336 = sbr.rel (%p333) target = $region12
    $region11: #{forward.1} parent=5 // pred_region
      %s337 = ssub.s32 %s19, 1
      // Predicated region
      $region13: #{forward.1} parent=11 // pred_check
        %p338 = pneg %p66
      $region14: #{forward.1} parent=11 // pred_check_branch
        %340 = sbr.rel (%p338) target = $region16
      $region15: #{forward.1} parent=11 // pred_region
        _
      $region16: #{forward.1} parent=11 // pred_fallthru
        _
      // Predicated region
      $region17: #{forward.1} parent=11 // pred_check
        %p341 = pneg %p87
      $region18: #{forward.1} parent=11 // pred_check_branch
        %343 = sbr.rel (%p341) target = $region20
      $region19: #{forward.1} parent=11 // pred_region
        _
      $region20: #{forward.1} parent=11 // pred_fallthru
        _
      // Predicated region
      $region21: #{forward.1} parent=11 // pred_check
        %p344 = pneg %p108
      $region22: #{forward.1} parent=11 // pred_check_branch
        %346 = sbr.rel (%p344) target = $region24
      $region23: #{forward.1} parent=11 // pred_region
        _
      $region24: #{forward.1} parent=11 // pred_fallthru
        _
      // Predicated region
      $region25: #{forward.1} parent=11 // pred_check
        %p347 = pneg %p129
      $region26: #{forward.1} parent=11 // pred_check_branch
        %349 = sbr.rel (%p347) target = $region28
      $region27: #{forward.1} parent=11 // pred_region
        _
      $region28: #{forward.1} parent=11 // pred_fallthru
        _
      // Predicated region
      $region29: #{forward.1} parent=11 // pred_check
        %p350 = pneg %p150
      $region30: #{forward.1} parent=11 // pred_check_branch
        %352 = sbr.rel (%p350) target = $region32
      $region31: #{forward.1} parent=11 // pred_region
        _
      $region32: #{forward.1} parent=11 // pred_fallthru
        _
      // Predicated region
      $region33: #{forward.1} parent=11 // pred_check
        %p353 = pneg %p171
      $region34: #{forward.1} parent=11 // pred_check_branch
        %355 = sbr.rel (%p353) target = $region36
      $region35: #{forward.1} parent=11 // pred_region
        _
      $region36: #{forward.1} parent=11 // pred_fallthru
        _
      // Predicated region
      $region37: #{forward.1} parent=11 // pred_check
        %p356 = pneg %p192
      $region38: #{forward.1} parent=11 // pred_check_branch
        %358 = sbr.rel (%p356) target = $region40
      $region39: #{forward.1} parent=11 // pred_region
        _
      $region40: #{forward.1} parent=11 // pred_fallthru
        _
      // Predicated region
      $region41: #{forward.1} parent=11 // pred_check
        %p359 = pneg %p213
      $region42: #{forward.1} parent=11 // pred_check_branch
        %361 = sbr.rel (%p359) target = $region44
      $region43: #{forward.1} parent=11 // pred_region
        _
      $region44: #{forward.1} parent=11 // pred_fallthru
        _
      // Predicated region
      $region45: #{forward.1} parent=11 // pred_check
        %p362 = pneg %p234
      $region46: #{forward.1} parent=11 // pred_check_branch
        %364 = sbr.rel (%p362) target = $region48
      $region47: #{forward.1} parent=11 // pred_region
        _
      $region48: #{forward.1} parent=11 // pred_fallthru
        _
      // Predicated region
      $region49: #{forward.1} parent=11 // pred_check
        %p365 = pneg %p255
      $region50: #{forward.1} parent=11 // pred_check_branch
        %367 = sbr.rel (%p365) target = $region52
      $region51: #{forward.1} parent=11 // pred_region
        _
      $region52: #{forward.1} parent=11 // pred_fallthru
        _
      // Predicated region
      $region53: #{forward.1} parent=11 // pred_check
        %p368 = pneg %p276
      $region54: #{forward.1} parent=11 // pred_check_branch
        %370 = sbr.rel (%p368) target = $region56
      $region55: #{forward.1} parent=11 // pred_region
        _
      $region56: #{forward.1} parent=11 // pred_fallthru
        _
      // Predicated region
      $region57: #{forward.1} parent=11 // pred_check
        %p371 = pneg %p297
      $region58: #{forward.1} parent=11 // pred_check_branch
        %373 = sbr.rel (%p371) target = $region60
      $region59: #{forward.1} parent=11 // pred_region
        _
      $region60: #{forward.1} parent=11 // pred_fallthru
        _
    $region12: #{forward.1} parent=5 // pred_fallthru
      _
    %p374 = scmp.lt.s32.totalorder %s19, 2
    // Predicated region
    $region61: #{forward.1} parent=5 // pred_check
      %p375 = pneg %p374
    $region62: #{forward.1} parent=5 // pred_check_branch
      %377 = sbr.rel (%p375) target = $region64
    $region63: #{forward.1} parent=5 // pred_region
      // Predicated region
      $region65: #{forward.1} parent=63 // pred_check
        %p378 = pneg %p39
      $region66: #{forward.1} parent=63 // pred_check_branch
        %380 = sbr.rel (%p378) target = $region68
      $region67: #{forward.1} parent=63 // pred_region
        %s381 = smul.u32 32, %s19
        %p382 = scmp.lt.s32.totalorder %s381, 63
        %s383 = scalar_select %p382, %s381, 63
        %s384 = smul.addr %s383, 8
        %s385 = scalar_lea.vmem %s0, %s384
        %s386 = smul.u32 32, %s19
      $region68: #{forward.1} parent=63 // pred_fallthru
        _
    $region64: #{forward.1} parent=5 // pred_fallthru
      _
    %p387 = scmp.le.s32.totalorder 1, %s19
    %p388 = scmp.lt.s32.totalorder %s19, 3
    %p389 = pnand %p387, %p388
    %p390 = pneg %p389
    // Predicated region
    $region69: #{forward.1} parent=5 // pred_check
      _
    $region70: #{forward.1} parent=5 // pred_check_branch
      %392 = sbr.rel (%p389) target = $region72
    $region71: #{forward.1} parent=5 // pred_region
      %s393 = ssub.s32 %s19, 1
      %s394 = smul.u32 32, %s24
      %p395 = scmp.lt.s32.totalorder %s394, 63
      %s396 = scalar_select %p395, %s394, 63
      %s397 = smul.addr %s396, 8
      %s398 = scalar_lea.vmem %s0, %s397
      %p399 = pneg %p45
      %p400 = pneg %p42
      %p401 = pneg %p66
      %p402 = pneg %p63
      %p403 = pneg %p87
      %p404 = pneg %p84
      %p405 = pneg %p108
      %p406 = pneg %p105
      %p407 = pneg %p129
      %p408 = pneg %p126
      %p409 = pneg %p150
      %p410 = pneg %p147
      %p411 = pneg %p171
      %p412 = pneg %p168
      %p413 = pneg %p192
      %p414 = pneg %p189
      %p415 = pneg %p213
      %p416 = pneg %p210
      %p417 = pneg %p234
      %p418 = pneg %p231
      %p419 = pneg %p255
      %p420 = pneg %p252
      %p421 = pneg %p276
      %p422 = pneg %p273
      %p423 = pneg %p297
      %p424 = pneg %p294
      %p425 = pneg %p323
      %p426 = pneg %p320
      %p427 = scmp.lt.s32.totalorder %s24, 1
      %s428 = scalar_select %p427, %s24, 1
      %s429 = smul.addr %s428, 8
      %s430 = scalar_lea.vmem %s13, %s429
      %s431 = smul.u32 32, %s24
      %p432 = scmp.lt.s32.totalorder %s431, 63
      %s433 = scalar_select %p432, %s431, 63
      %s434 = smul.addr %s433, 8
      %s435 = scalar_lea.vmem %s0, %s434
      %s436 = smul.u32 32, %s24
      %p437 = scmp.lt.s32.totalorder %s24, 1
      %s438 = scalar_select %p437, %s24, 1
      %s439 = smul.addr %s438, 8
      %s440 = scalar_lea.vmem %s13, %s439
      %v442 = vld [vmem:[%s435] sm:$0xff]
      %v443 = vld [vmem:[%s435 + $0x8] sm:$0xff]
      %v444 = vld [vmem:[%s435 + $0x10] sm:$0xff]
      %v445 = vld [vmem:[%s435 + $0x18] sm:$0xff]
      %v446 = vld [vmem:[%s435 + $0x20] sm:$0xff]
      %v447 = vld [vmem:[%s435 + $0x28] sm:$0xff]
      %v448 = vld [vmem:[%s435 + $0x30] sm:$0xff]
      %v449 = vld [vmem:[%s435 + $0x38] sm:$0xff]
      %v450 = vld [vmem:[%s435 + $0x40] sm:$0xff]
      %v451 = vld [vmem:[%s435 + $0x48] sm:$0xff]
      %v452 = vld [vmem:[%s435 + $0x50] sm:$0xff]
      %v453 = vld [vmem:[%s435 + $0x58] sm:$0xff]
      %v454 = vld [vmem:[%s435 + $0x60] sm:$0xff]
      %v455 = vld [vmem:[%s435 + $0x68] sm:$0xff]
      %v456 = vld [vmem:[%s435 + $0x70] sm:$0xff]
      %v457 = vld [vmem:[%s435 + $0x78] sm:$0xff]
      %v458 = vld [vmem:[%s435 + $0x80] sm:$0xff]
      %v459 = vld [vmem:[%s435 + $0x88] sm:$0xff]
      %v460 = vld [vmem:[%s435 + $0x90] sm:$0xff]
      %v461 = vld [vmem:[%s435 + $0x98] sm:$0xff]
      %v462 = vld [vmem:[%s435 + $0xa0] sm:$0xff]
      %v463 = vld [vmem:[%s435 + $0xa8] sm:$0xff]
      %v464 = vld [vmem:[%s435 + $0xb0] sm:$0xff]
      %v465 = vld [vmem:[%s435 + $0xb8] sm:$0xff]
      %v466 = vld [vmem:[%s435 + $0xc0] sm:$0xff]
      %v467 = vld [vmem:[%s435 + $0xc8] sm:$0xff]
      %v468 = vld [vmem:[%s435 + $0xd0] sm:$0xff]
      %v469 = vld [vmem:[%s435 + $0xd8] sm:$0xff]
      %v470 = vld [vmem:[%s435 + $0xe0] sm:$0xff]
      %v471 = vld [vmem:[%s435 + $0xe8] sm:$0xff]
      %v472 = vld [vmem:[%s435 + $0xf0] sm:$0xff]
      %v473 = vld [vmem:[%s435 + $0xf8] sm:$0xff]
      %v474 = vpack.c.bf16 %v443, %v442
      %v475 = vpack.c.bf16 %v445, %v444
      %v476 = vpack.c.bf16 %v447, %v446
      %v477 = vpack.c.bf16 %v449, %v448
      %v478 = vpack.c.bf16 %v451, %v450
      %v479 = vpack.c.bf16 %v453, %v452
      %v480 = vpack.c.bf16 %v455, %v454
      %v481 = vpack.c.bf16 %v457, %v456
      %v482 = vpack.c.bf16 %v459, %v458
      %v483 = vpack.c.bf16 %v461, %v460
      %v484 = vpack.c.bf16 %v463, %v462
      %v485 = vpack.c.bf16 %v465, %v464
      %v486 = vpack.c.bf16 %v467, %v466
      %v487 = vpack.c.bf16 %v469, %v468
      %v488 = vpack.c.bf16 %v471, %v470
      %v489 = vpack.c.bf16 %v473, %v472
      %v490 = vld [vmem:[%s1] sm:$0xff]
      %v491 = vld [vmem:[%s1 + $0x8] sm:$0xff]
      %v492 = vld [vmem:[%s1 + $0x10] sm:$0xff]
      %v493 = vld [vmem:[%s1 + $0x18] sm:$0xff]
      %v494 = vld [vmem:[%s1 + $0x20] sm:$0xff]
      %v495 = vld [vmem:[%s1 + $0x28] sm:$0xff]
      %v496 = vld [vmem:[%s1 + $0x30] sm:$0xff]
      %v497 = vld [vmem:[%s1 + $0x38] sm:$0xff]
      %v498 = vld [vmem:[%s1 + $0x40] sm:$0xff]
      %v499 = vld [vmem:[%s1 + $0x48] sm:$0xff]
      %v500 = vld [vmem:[%s1 + $0x50] sm:$0xff]
      %v501 = vld [vmem:[%s1 + $0x58] sm:$0xff]
      %v502 = vrot.slane %v442, 1
      %v503 = vrot.slane %v443, 1
      %v504 = vrot.slane %v444, 1
      %v505 = vrot.slane %v445, 1
      %v506 = vrot.slane %v446, 1
      %v507 = vrot.slane %v447, 1
      %v508 = vrot.slane %v448, 1
      %v509 = vrot.slane %v449, 1
      %v510 = vrot.slane %v450, 1
      %v511 = vrot.slane %v451, 1
      %v512 = vrot.slane %v452, 1
      %v513 = vrot.slane %v453, 1
      %v514 = vrot.slane %v454, 1
      %v515 = vrot.slane %v455, 1
      %v516 = vrot.slane %v456, 1
      %v517 = vrot.slane %v457, 1
      %v518 = vrot.slane %v458, 1
      %v519 = vrot.slane %v459, 1
      %v520 = vrot.slane %v460, 1
      %v521 = vrot.slane %v461, 1
      %v522 = vrot.slane %v462, 1
      %v523 = vrot.slane %v463, 1
      %v524 = vrot.slane %v464, 1
      %v525 = vrot.slane %v465, 1
      %v526 = vrot.slane %v466, 1
      %v527 = vrot.slane %v467, 1
      %v528 = vrot.slane %v468, 1
      %v529 = vrot.slane %v469, 1
      %v530 = vrot.slane %v470, 1
      %v531 = vrot.slane %v471, 1
      %v532 = vrot.slane %v472, 1
      %v533 = vrot.slane %v473, 1
      %v534 = vlaneseq
      %v535 = vshrl.u32 %v534, 7
      %vm536 = vcmp.lt.s32.totalorder %v535, 7
      %v537 = vsel %vm536, %v532, %v533
      %v538 = vsel %vm536, %v531, %v532
      %v539 = vsel %vm536, %v530, %v531
      %v540 = vsel %vm536, %v529, %v530
      %v541 = vsel %vm536, %v528, %v529
      %v542 = vsel %vm536, %v527, %v528
      %v543 = vsel %vm536, %v526, %v527
      %v544 = vsel %vm536, %v525, %v526
      %v545 = vsel %vm536, %v524, %v525
      %v546 = vsel %vm536, %v523, %v524
      %v547 = vsel %vm536, %v522, %v523
      %v548 = vsel %vm536, %v521, %v522
      %v549 = vsel %vm536, %v520, %v521
      %v550 = vsel %vm536, %v519, %v520
      %v551 = vsel %vm536, %v518, %v519
      %v552 = vsel %vm536, %v517, %v518
      %v553 = vsel %vm536, %v516, %v517
      %v554 = vsel %vm536, %v515, %v516
      %v555 = vsel %vm536, %v514, %v515
      %v556 = vsel %vm536, %v513, %v514
      %v557 = vsel %vm536, %v512, %v513
      %v558 = vsel %vm536, %v511, %v512
      %v559 = vsel %vm536, %v510, %v511
      %v560 = vsel %vm536, %v509, %v510
      %v561 = vsel %vm536, %v508, %v509
      %v562 = vsel %vm536, %v507, %v508
      %v563 = vsel %vm536, %v506, %v507
      %v564 = vsel %vm536, %v505, %v506
      %v565 = vsel %vm536, %v504, %v505
      %v566 = vsel %vm536, %v503, %v504
      %v567 = vsel %vm536, %v502, %v503
      %v568 = vsel %vm536, %v533, %v502
      %v569 = vpack.c.bf16 %v566, %v567
      %v570 = vpack.c.bf16 %v564, %v565
      %v571 = vpack.c.bf16 %v562, %v563
      %v572 = vpack.c.bf16 %v560, %v561
      %v573 = vpack.c.bf16 %v558, %v559
      %v574 = vpack.c.bf16 %v556, %v557
      %v575 = vpack.c.bf16 %v554, %v555
      %v576 = vpack.c.bf16 %v552, %v553
      %v577 = vpack.c.bf16 %v550, %v551
      %v578 = vpack.c.bf16 %v548, %v549
      %v579 = vpack.c.bf16 %v546, %v547
      %v580 = vpack.c.bf16 %v544, %v545
      %v581 = vpack.c.bf16 %v542, %v543
      %v582 = vpack.c.bf16 %v540, %v541
      %v583 = vpack.c.bf16 %v538, %v539
      %v584 = vpack.c.bf16 %v568, %v537
      %s585 = scalar_lea.vmem %s1, 96
      %v586 = vld [vmem:[%s585] sm:$0xff]
      %v587 = vld [vmem:[%s585 + $0x8] sm:$0xff]
      %v588 = vld [vmem:[%s585 + $0x10] sm:$0xff]
      %v589 = vld [vmem:[%s585 + $0x18] sm:$0xff]
      %v590 = vld [vmem:[%s585 + $0x20] sm:$0xff]
      %v591 = vld [vmem:[%s585 + $0x28] sm:$0xff]
      %v592 = vld [vmem:[%s585 + $0x30] sm:$0xff]
      %v593 = vld [vmem:[%s585 + $0x38] sm:$0xff]
      %v594 = vld [vmem:[%s585 + $0x40] sm:$0xff]
      %v595 = vld [vmem:[%s585 + $0x48] sm:$0xff]
      %v596 = vld [vmem:[%s585 + $0x50] sm:$0xff]
      %v597 = vld [vmem:[%s585 + $0x58] sm:$0xff]
      %v610 = vunpack.c.l.b16 %v586
      %v611 = vunpack.c.h.b16 %v586
      %v612 = vunpack.c.l.b16 %v587
      %v613 = vunpack.c.h.b16 %v587
      %v614 = vunpack.c.l.b16 %v588
      %v615 = vunpack.c.h.b16 %v588
      %v616 = vunpack.c.l.b16 %v589
      %v617 = vunpack.c.h.b16 %v589
      %v618 = vunpack.c.l.b16 %v590
      %v619 = vunpack.c.h.b16 %v590
      %v620 = vunpack.c.l.b16 %v591
      %v621 = vunpack.c.h.b16 %v591
      %v622 = vunpack.c.l.b16 %v592
      %v623 = vunpack.c.h.b16 %v592
      %v624 = vunpack.c.l.b16 %v593
      %v625 = vunpack.c.h.b16 %v593
      %v626 = vunpack.c.l.b16 %v594
      %v627 = vunpack.c.h.b16 %v594
      %v628 = vunpack.c.l.b16 %v595
      %v629 = vunpack.c.h.b16 %v595
      %v630 = vunpack.c.l.b16 %v596
      %v631 = vunpack.c.h.b16 %v596
      %v632 = vunpack.c.l.b16 %v597
      %v633 = vunpack.c.h.b16 %v597
      %v634 = vpack.c.b16 %v612, %v610
      %v635 = vpack.c.b16 %v613, %v611
      %v636 = vpack.c.b16 %v616, %v614
      %v637 = vpack.c.b16 %v617, %v615
      %v638 = vpack.c.b16 %v620, %v618
      %v639 = vpack.c.b16 %v621, %v619
      %v640 = vpack.c.b16 %v624, %v622
      %v641 = vpack.c.b16 %v625, %v623
      %v642 = vpack.c.b16 %v628, %v626
      %v643 = vpack.c.b16 %v629, %v627
      %v644 = vpack.c.b16 %v632, %v630
      %v645 = vpack.c.b16 %v633, %v631
      %vm658 = vcmask 785408
      %v660 = vsel %vm658, %v569, 0
      %v663 = vsel %vm658, %v570, 0
      %v666 = vsel %vm658, %v571, 0
      %v669 = vsel %vm658, %v572, 0
      %v672 = vsel %vm658, %v573, 0
      %v675 = vsel %vm658, %v574, 0
      %v678 = vsel %vm658, %v575, 0
      %v681 = vsel %vm658, %v576, 0
      %v684 = vsel %vm658, %v577, 0
      %v687 = vsel %vm658, %v578, 0
      %v690 = vsel %vm658, %v579, 0
      %v693 = vsel %vm658, %v580, 0
      %v696 = vsel %vm658, %v581, 0
      %v699 = vsel %vm658, %v582, 0
      %v702 = vsel %vm658, %v583, 0
      %v705 = vsel %vm658, %v584, 0
      %707 = vmatprep.subr.bf16.mxu0 %v635
      %708 = vmatpush1.bf16.msra.mxu0 %v634
      %709 = vmatprep.subr.bf16.mxu0 %v637
      %710 = vmatpush1.bf16.msra.mxu0 %v636
      %711 = vmatprep.subr.bf16.mxu0 %v639
      %712 = vmatpush1.bf16.msra.mxu0 %v638
      %713 = vmatprep.subr.bf16.mxu0 %v641
      %714 = vmatpush1.bf16.msra.mxu0 %v640
      %715 = vmatprep.subr.bf16.mxu0 %v643
      %716 = vmatpush1.bf16.msra.mxu0 %v642
      %717 = vmatprep.subr.bf16.mxu0 %v645
      %718 = vmatpush1.bf16.msra.mxu0 %v644
      %719 = vmatprep.subr.bf16.mxu0 0
      %720 = vmatpush1.bf16.msra.mxu0 0
      %721 = vmatprep.subr.bf16.mxu0 0
      %722 = vmatpush1.bf16.msra.mxu0 0
      %723 = vmatprep.subr.bf16.mxu0 0
      %724 = vmatpush1.bf16.msra.mxu0 0
      %725 = vmatprep.subr.bf16.mxu0 0
      %726 = vmatpush1.bf16.msra.mxu0 0
      %727 = vmatprep.subr.bf16.mxu0 0
      %728 = vmatpush1.bf16.msra.mxu0 0
      %729 = vmatprep.subr.bf16.mxu0 0
      %730 = vmatpush1.bf16.msra.mxu0 0
      %731 = vmatprep.subr.bf16.mxu0 0
      %732 = vmatpush1.bf16.msra.mxu0 0
      %733 = vmatprep.subr.bf16.mxu0 0
      %734 = vmatpush1.bf16.msra.mxu0 0
      %735 = vmatprep.subr.bf16.mxu0 0
      %736 = vmatpush1.bf16.msra.mxu0 0
      %737 = vmatprep.subr.bf16.mxu0 0
      %738 = vmatpush1.bf16.msra.mxu0 0
      %739 = vmatprep.mubr.bf16.mxu0 0
      %740 = vmatmul.mubr.bf16.gmra.mrb[0].mxu0 %v660
      %v741 = vpop.f32.mrb[0].mxu0
      %v742 = vadd.f32 0.0, %v741
      %v743 = vpop.f32.mrb[0].mxu0
      %v744 = vadd.f32 0.0, %v743
      %v745 = vpop.f32.mrb[0].mxu0
      %v746 = vadd.f32 0.0, %v745
      %v747 = vpop.f32.mrb[0].mxu0
      %v748 = vadd.f32 0.0, %v747
      %749 = vmatprep.mubr.bf16.mxu0 0
      %750 = vmatmul.mubr.bf16.gmra.mrb[0].mxu0 %v663
      %v751 = vpop.f32.mrb[0].mxu0
      %v752 = vadd.f32 0.0, %v751
      %v753 = vpop.f32.mrb[0].mxu0
      %v754 = vadd.f32 0.0, %v753
      %v755 = vpop.f32.mrb[0].mxu0
      %v756 = vadd.f32 0.0, %v755
      %v757 = vpop.f32.mrb[0].mxu0
      %v758 = vadd.f32 0.0, %v757
      %759 = vmatprep.mubr.bf16.mxu0 0
      %760 = vmatmul.mubr.bf16.gmra.mrb[0].mxu0 %v666
      %v761 = vpop.f32.mrb[0].mxu0
      %v762 = vadd.f32 0.0, %v761
      %v763 = vpop.f32.mrb[0].mxu0
      %v764 = vadd.f32 0.0, %v763
      %v765 = vpop.f32.mrb[0].mxu0
      %v766 = vadd.f32 0.0, %v765
      %v767 = vpop.f32.mrb[0].mxu0
      %v768 = vadd.f32 0.0, %v767
      %769 = vmatprep.mubr.bf16.mxu0 0
      %770 = vmatmul.mubr.bf16.gmra.mrb[0].mxu0 %v669
      %v771 = vpop.f32.mrb[0].mxu0
      %v772 = vadd.f32 0.0, %v771
      %v773 = vpop.f32.mrb[0].mxu0
      %v774 = vadd.f32 0.0, %v773
      %v775 = vpop.f32.mrb[0].mxu0
      %v776 = vadd.f32 0.0, %v775
      %v777 = vpop.f32.mrb[0].mxu0
      %v778 = vadd.f32 0.0, %v777
      %779 = vmatprep.mubr.bf16.mxu0 0
      %780 = vmatmul.mubr.bf16.gmra.mrb[0].mxu0 %v672
      %v781 = vpop.f32.mrb[0].mxu0
      %v782 = vadd.f32 0.0, %v781
      %v783 = vpop.f32.mrb[0].mxu0
      %v784 = vadd.f32 0.0, %v783
      %v785 = vpop.f32.mrb[0].mxu0
      %v786 = vadd.f32 0.0, %v785
      %v787 = vpop.f32.mrb[0].mxu0
      %v788 = vadd.f32 0.0, %v787
      %789 = vmatprep.mubr.bf16.mxu0 0
      %790 = vmatmul.mubr.bf16.gmra.mrb[0].mxu0 %v675
      %v791 = vpop.f32.mrb[0].mxu0
      %v792 = vadd.f32 0.0, %v791
      %v793 = vpop.f32.mrb[0].mxu0
      %v794 = vadd.f32 0.0, %v793
      %v795 = vpop.f32.mrb[0].mxu0
      %v796 = vadd.f32 0.0, %v795
      %v797 = vpop.f32.mrb[0].mxu0
      %v798 = vadd.f32 0.0, %v797
      %799 = vmatprep.mubr.bf16.mxu0 0
      %800 = vmatmul.mubr.bf16.gmra.mrb[0].mxu0 %v678
      %v801 = vpop.f32.mrb[0].mxu0
      %v802 = vadd.f32 0.0, %v801
      %v803 = vpop.f32.mrb[0].mxu0
      %v804 = vadd.f32 0.0, %v803
      %v805 = vpop.f32.mrb[0].mxu0
      %v806 = vadd.f32 0.0, %v805
      %v807 = vpop.f32.mrb[0].mxu0
      %v808 = vadd.f32 0.0, %v807
      %809 = vmatprep.mubr.bf16.mxu0 0
      %810 = vmatmul.mubr.bf16.gmra.mrb[0].mxu0 %v681
      %v811 = vpop.f32.mrb[0].mxu0
      %v812 = vadd.f32 0.0, %v811
      %v813 = vpop.f32.mrb[0].mxu0
      %v814 = vadd.f32 0.0, %v813
      %v815 = vpop.f32.mrb[0].mxu0
      %v816 = vadd.f32 0.0, %v815
      %v817 = vpop.f32.mrb[0].mxu0
      %v818 = vadd.f32 0.0, %v817
      %819 = vmatprep.mubr.bf16.mxu0 0
      %820 = vmatmul.mubr.bf16.gmra.mrb[0].mxu0 %v684
      %v821 = vpop.f32.mrb[0].mxu0
      %v822 = vadd.f32 0.0, %v821
      %v823 = vpop.f32.mrb[0].mxu0
      %v824 = vadd.f32 0.0, %v823
      %v825 = vpop.f32.mrb[0].mxu0
      %v826 = vadd.f32 0.0, %v825
      %v827 = vpop.f32.mrb[0].mxu0
      %v828 = vadd.f32 0.0, %v827
      %829 = vmatprep.mubr.bf16.mxu0 0
      %830 = vmatmul.mubr.bf16.gmra.mrb[0].mxu0 %v687
      %v831 = vpop.f32.mrb[0].mxu0
      %v832 = vadd.f32 0.0, %v831
      %v833 = vpop.f32.mrb[0].mxu0
      %v834 = vadd.f32 0.0, %v833
      %v835 = vpop.f32.mrb[0].mxu0
      %v836 = vadd.f32 0.0, %v835
      %v837 = vpop.f32.mrb[0].mxu0
      %v838 = vadd.f32 0.0, %v837
      %839 = vmatprep.mubr.bf16.mxu0 0
      %840 = vmatmul.mubr.bf16.gmra.mrb[0].mxu0 %v690
      %v841 = vpop.f32.mrb[0].mxu0
      %v842 = vadd.f32 0.0, %v841
      %v843 = vpop.f32.mrb[0].mxu0
      %v844 = vadd.f32 0.0, %v843
      %v845 = vpop.f32.mrb[0].mxu0
      %v846 = vadd.f32 0.0, %v845
      %v847 = vpop.f32.mrb[0].mxu0
      %v848 = vadd.f32 0.0, %v847
      %849 = vmatprep.mubr.bf16.mxu0 0
      %850 = vmatmul.mubr.bf16.gmra.mrb[0].mxu0 %v693
      %v851 = vpop.f32.mrb[0].mxu0
      %v852 = vadd.f32 0.0, %v851
      %v853 = vpop.f32.mrb[0].mxu0
      %v854 = vadd.f32 0.0, %v853
      %v855 = vpop.f32.mrb[0].mxu0
      %v856 = vadd.f32 0.0, %v855
      %v857 = vpop.f32.mrb[0].mxu0
      %v858 = vadd.f32 0.0, %v857
      %859 = vmatprep.mubr.bf16.mxu0 0
      %860 = vmatmul.mubr.bf16.gmra.mrb[0].mxu0 %v696
      %v861 = vpop.f32.mrb[0].mxu0
      %v862 = vadd.f32 0.0, %v861
      %v863 = vpop.f32.mrb[0].mxu0
      %v864 = vadd.f32 0.0, %v863
      %v865 = vpop.f32.mrb[0].mxu0
      %v866 = vadd.f32 0.0, %v865
      %v867 = vpop.f32.mrb[0].mxu0
      %v868 = vadd.f32 0.0, %v867
      %869 = vmatprep.mubr.bf16.mxu0 0
      %870 = vmatmul.mubr.bf16.gmra.mrb[0].mxu0 %v699
      %v871 = vpop.f32.mrb[0].mxu0
      %v872 = vadd.f32 0.0, %v871
      %v873 = vpop.f32.mrb[0].mxu0
      %v874 = vadd.f32 0.0, %v873
      %v875 = vpop.f32.mrb[0].mxu0
      %v876 = vadd.f32 0.0, %v875
      %v877 = vpop.f32.mrb[0].mxu0
      %v878 = vadd.f32 0.0, %v877
      %879 = vmatprep.mubr.bf16.mxu0 0
      %880 = vmatmul.mubr.bf16.gmra.mrb[0].mxu0 %v702
      %v881 = vpop.f32.mrb[0].mxu0
      %v882 = vadd.f32 0.0, %v881
      %v883 = vpop.f32.mrb[0].mxu0
      %v884 = vadd.f32 0.0, %v883
      %v885 = vpop.f32.mrb[0].mxu0
      %v886 = vadd.f32 0.0, %v885
      %v887 = vpop.f32.mrb[0].mxu0
      %v888 = vadd.f32 0.0, %v887
      %889 = vmatprep.mubr.bf16.mxu0 0
      %890 = vmatmul.mubr.bf16.gmra.mrb[0].mxu0 %v705
      %v891 = vpop.f32.mrb[0].mxu0
      %v892 = vadd.f32 0.0, %v891
      %v893 = vpop.f32.mrb[0].mxu0
      %v894 = vadd.f32 0.0, %v893
      %v895 = vpop.f32.mrb[0].mxu0
      %v896 = vadd.f32 0.0, %v895
      %v897 = vpop.f32.mrb[0].mxu0
      %v898 = vadd.f32 0.0, %v897
      %899 = vdwg.mxu0
      %v912 = vunpack.c.l.b16 %v490
      %v913 = vunpack.c.h.b16 %v490
      %v914 = vunpack.c.l.b16 %v491
      %v915 = vunpack.c.h.b16 %v491
      %v916 = vunpack.c.l.b16 %v492
      %v917 = vunpack.c.h.b16 %v492
      %v918 = vunpack.c.l.b16 %v493
      %v919 = vunpack.c.h.b16 %v493
      %v920 = vunpack.c.l.b16 %v494
      %v921 = vunpack.c.h.b16 %v494
      %v922 = vunpack.c.l.b16 %v495
      %v923 = vunpack.c.h.b16 %v495
      %v924 = vunpack.c.l.b16 %v496
      %v925 = vunpack.c.h.b16 %v496
      %v926 = vunpack.c.l.b16 %v497
      %v927 = vunpack.c.h.b16 %v497
      %v928 = vunpack.c.l.b16 %v498
      %v929 = vunpack.c.h.b16 %v498
      %v930 = vunpack.c.l.b16 %v499
      %v931 = vunpack.c.h.b16 %v499
      %v932 = vunpack.c.l.b16 %v500
      %v933 = vunpack.c.h.b16 %v500
      %v934 = vunpack.c.l.b16 %v501
      %v935 = vunpack.c.h.b16 %v501
      %v936 = vpack.c.b16 %v914, %v912
      %v937 = vpack.c.b16 %v915, %v913
      %v938 = vpack.c.b16 %v918, %v916
      %v939 = vpack.c.b16 %v919, %v917
      %v940 = vpack.c.b16 %v922, %v920
      %v941 = vpack.c.b16 %v923, %v921
      %v942 = vpack.c.b16 %v926, %v924
      %v943 = vpack.c.b16 %v927, %v925
      %v944 = vpack.c.b16 %v930, %v928
      %v945 = vpack.c.b16 %v931, %v929
      %v946 = vpack.c.b16 %v934, %v932
      %v947 = vpack.c.b16 %v935, %v933
      %v961 = vsel %vm658, %v474, 0
      %v964 = vsel %vm658, %v475, 0
      %v967 = vsel %vm658, %v476, 0
      %v970 = vsel %vm658, %v477, 0
      %v973 = vsel %vm658, %v478, 0
      %v976 = vsel %vm658, %v479, 0
      %v979 = vsel %vm658, %v480, 0
      %v982 = vsel %vm658, %v481, 0
      %v985 = vsel %vm658, %v482, 0
      %v988 = vsel %vm658, %v483, 0
      %v991 = vsel %vm658, %v484, 0
      %v994 = vsel %vm658, %v485, 0
      %v997 = vsel %vm658, %v486, 0
      %v1000 = vsel %vm658, %v487, 0
      %v1003 = vsel %vm658, %v488, 0
      %v1006 = vsel %vm658, %v489, 0
      %1008 = vmatprep.subr.bf16.mxu0 %v937
      %1009 = vmatpush1.bf16.msra.mxu0 %v936
      %1010 = vmatprep.subr.bf16.mxu0 %v939
      %1011 = vmatpush1.bf16.msra.mxu0 %v938
      %1012 = vmatprep.subr.bf16.mxu0 %v941
      %1013 = vmatpush1.bf16.msra.mxu0 %v940
      %1014 = vmatprep.subr.bf16.mxu0 %v943
      %1015 = vmatpush1.bf16.msra.mxu0 %v942
      %1016 = vmatprep.subr.bf16.mxu0 %v945
      %1017 = vmatpush1.bf16.msra.mxu0 %v944
      %1018 = vmatprep.subr.bf16.mxu0 %v947
      %1019 = vmatpush1.bf16.msra.mxu0 %v946
      %1020 = vmatprep.subr.bf16.mxu0 0
      %1021 = vmatpush1.bf16.msra.mxu0 0
      %1022 = vmatprep.subr.bf16.mxu0 0
      %1023 = vmatpush1.bf16.msra.mxu0 0
      %1024 = vmatprep.subr.bf16.mxu0 0
      %1025 = vmatpush1.bf16.msra.mxu0 0
      %1026 = vmatprep.subr.bf16.mxu0 0
      %1027 = vmatpush1.bf16.msra.mxu0 0
      %1028 = vmatprep.subr.bf16.mxu0 0
      %1029 = vmatpush1.bf16.msra.mxu0 0
      %1030 = vmatprep.subr.bf16.mxu0 0
      %1031 = vmatpush1.bf16.msra.mxu0 0
      %1032 = vmatprep.subr.bf16.mxu0 0
      %1033 = vmatpush1.bf16.msra.mxu0 0
      %1034 = vmatprep.subr.bf16.mxu0 0
      %1035 = vmatpush1.bf16.msra.mxu0 0
      %1036 = vmatprep.subr.bf16.mxu0 0
      %1037 = vmatpush1.bf16.msra.mxu0 0
      %1038 = vmatprep.subr.bf16.mxu0 0
      %1039 = vmatpush1.bf16.msra.mxu0 0
      %1040 = vmatprep.mubr.bf16.mxu0 0
      %1041 = vmatmul.mubr.bf16.gmra.mrb[0].mxu0 %v961
      %v1042 = vpop.f32.mrb[0].mxu0
      %v1043 = vadd.f32 %v742, %v1042
      %v1044 = vpop.f32.mrb[0].mxu0
      %v1045 = vadd.f32 %v744, %v1044
      %v1046 = vpop.f32.mrb[0].mxu0
      %v1047 = vadd.f32 %v746, %v1046
      %v1048 = vpop.f32.mrb[0].mxu0
      %v1049 = vadd.f32 %v748, %v1048
      %1050 = vmatprep.mubr.bf16.mxu0 0
      %1051 = vmatmul.mubr.bf16.gmra.mrb[0].mxu0 %v964
      %v1052 = vpop.f32.mrb[0].mxu0
      %v1053 = vadd.f32 %v752, %v1052
      %v1054 = vpop.f32.mrb[0].mxu0
      %v1055 = vadd.f32 %v754, %v1054
      %v1056 = vpop.f32.mrb[0].mxu0
      %v1057 = vadd.f32 %v756, %v1056
      %v1058 = vpop.f32.mrb[0].mxu0
      %v1059 = vadd.f32 %v758, %v1058
      %1060 = vmatprep.mubr.bf16.mxu0 0
      %1061 = vmatmul.mubr.bf16.gmra.mrb[0].mxu0 %v967
      %v1062 = vpop.f32.mrb[0].mxu0
      %v1063 = vadd.f32 %v762, %v1062
      %v1064 = vpop.f32.mrb[0].mxu0
      %v1065 = vadd.f32 %v764, %v1064
      %v1066 = vpop.f32.mrb[0].mxu0
      %v1067 = vadd.f32 %v766, %v1066
      %v1068 = vpop.f32.mrb[0].mxu0
      %v1069 = vadd.f32 %v768, %v1068
      %1070 = vmatprep.mubr.bf16.mxu0 0
      %1071 = vmatmul.mubr.bf16.gmra.mrb[0].mxu0 %v970
      %v1072 = vpop.f32.mrb[0].mxu0
      %v1073 = vadd.f32 %v772, %v1072
      %v1074 = vpop.f32.mrb[0].mxu0
      %v1075 = vadd.f32 %v774, %v1074
      %v1076 = vpop.f32.mrb[0].mxu0
      %v1077 = vadd.f32 %v776, %v1076
      %v1078 = vpop.f32.mrb[0].mxu0
      %v1079 = vadd.f32 %v778, %v1078
      %1080 = vmatprep.mubr.bf16.mxu0 0
      %1081 = vmatmul.mubr.bf16.gmra.mrb[0].mxu0 %v973
      %v1082 = vpop.f32.mrb[0].mxu0
      %v1083 = vadd.f32 %v782, %v1082
      %v1084 = vpop.f32.mrb[0].mxu0
      %v1085 = vadd.f32 %v784, %v1084
      %v1086 = vpop.f32.mrb[0].mxu0
      %v1087 = vadd.f32 %v786, %v1086
      %v1088 = vpop.f32.mrb[0].mxu0
      %v1089 = vadd.f32 %v788, %v1088
      %1090 = vmatprep.mubr.bf16.mxu0 0
      %1091 = vmatmul.mubr.bf16.gmra.mrb[0].mxu0 %v976
      %v1092 = vpop.f32.mrb[0].mxu0
      %v1093 = vadd.f32 %v792, %v1092
      %v1094 = vpop.f32.mrb[0].mxu0
      %v1095 = vadd.f32 %v794, %v1094
      %v1096 = vpop.f32.mrb[0].mxu0
      %v1097 = vadd.f32 %v796, %v1096
      %v1098 = vpop.f32.mrb[0].mxu0
      %v1099 = vadd.f32 %v798, %v1098
      %1100 = vmatprep.mubr.bf16.mxu0 0
      %1101 = vmatmul.mubr.bf16.gmra.mrb[0].mxu0 %v979
      %v1102 = vpop.f32.mrb[0].mxu0
      %v1103 = vadd.f32 %v802, %v1102
      %v1104 = vpop.f32.mrb[0].mxu0
      %v1105 = vadd.f32 %v804, %v1104
      %v1106 = vpop.f32.mrb[0].mxu0
      %v1107 = vadd.f32 %v806, %v1106
      %v1108 = vpop.f32.mrb[0].mxu0
      %v1109 = vadd.f32 %v808, %v1108
      %1110 = vmatprep.mubr.bf16.mxu0 0
      %1111 = vmatmul.mubr.bf16.gmra.mrb[0].mxu0 %v982
      %v1112 = vpop.f32.mrb[0].mxu0
      %v1113 = vadd.f32 %v812, %v1112
      %v1114 = vpop.f32.mrb[0].mxu0
      %v1115 = vadd.f32 %v814, %v1114
      %v1116 = vpop.f32.mrb[0].mxu0
      %v1117 = vadd.f32 %v816, %v1116
      %v1118 = vpop.f32.mrb[0].mxu0
      %v1119 = vadd.f32 %v818, %v1118
      %1120 = vmatprep.mubr.bf16.mxu0 0
      %1121 = vmatmul.mubr.bf16.gmra.mrb[0].mxu0 %v985
      %v1122 = vpop.f32.mrb[0].mxu0
      %v1123 = vadd.f32 %v822, %v1122
      %v1124 = vpop.f32.mrb[0].mxu0
      %v1125 = vadd.f32 %v824, %v1124
      %v1126 = vpop.f32.mrb[0].mxu0
      %v1127 = vadd.f32 %v826, %v1126
      %v1128 = vpop.f32.mrb[0].mxu0
      %v1129 = vadd.f32 %v828, %v1128
      %1130 = vmatprep.mubr.bf16.mxu0 0
      %1131 = vmatmul.mubr.bf16.gmra.mrb[0].mxu0 %v988
      %v1132 = vpop.f32.mrb[0].mxu0
      %v1133 = vadd.f32 %v832, %v1132
      %v1134 = vpop.f32.mrb[0].mxu0
      %v1135 = vadd.f32 %v834, %v1134
      %v1136 = vpop.f32.mrb[0].mxu0
      %v1137 = vadd.f32 %v836, %v1136
      %v1138 = vpop.f32.mrb[0].mxu0
      %v1139 = vadd.f32 %v838, %v1138
      %1140 = vmatprep.mubr.bf16.mxu0 0
      %1141 = vmatmul.mubr.bf16.gmra.mrb[0].mxu0 %v991
      %v1142 = vpop.f32.mrb[0].mxu0
      %v1143 = vadd.f32 %v842, %v1142
      %v1144 = vpop.f32.mrb[0].mxu0
      %v1145 = vadd.f32 %v844, %v1144
      %v1146 = vpop.f32.mrb[0].mxu0
      %v1147 = vadd.f32 %v846, %v1146
      %v1148 = vpop.f32.mrb[0].mxu0
      %v1149 = vadd.f32 %v848, %v1148
      %1150 = vmatprep.mubr.bf16.mxu0 0
      %1151 = vmatmul.mubr.bf16.gmra.mrb[0].mxu0 %v994
      %v1152 = vpop.f32.mrb[0].mxu0
      %v1153 = vadd.f32 %v852, %v1152
      %v1154 = vpop.f32.mrb[0].mxu0
      %v1155 = vadd.f32 %v854, %v1154
      %v1156 = vpop.f32.mrb[0].mxu0
      %v1157 = vadd.f32 %v856, %v1156
      %v1158 = vpop.f32.mrb[0].mxu0
      %v1159 = vadd.f32 %v858, %v1158
      %1160 = vmatprep.mubr.bf16.mxu0 0
      %1161 = vmatmul.mubr.bf16.gmra.mrb[0].mxu0 %v997
      %v1162 = vpop.f32.mrb[0].mxu0
      %v1163 = vadd.f32 %v862, %v1162
      %v1164 = vpop.f32.mrb[0].mxu0
      %v1165 = vadd.f32 %v864, %v1164
      %v1166 = vpop.f32.mrb[0].mxu0
      %v1167 = vadd.f32 %v866, %v1166
      %v1168 = vpop.f32.mrb[0].mxu0
      %v1169 = vadd.f32 %v868, %v1168
      %1170 = vmatprep.mubr.bf16.mxu0 0
      %1171 = vmatmul.mubr.bf16.gmra.mrb[0].mxu0 %v1000
      %v1172 = vpop.f32.mrb[0].mxu0
      %v1173 = vadd.f32 %v872, %v1172
      %v1174 = vpop.f32.mrb[0].mxu0
      %v1175 = vadd.f32 %v874, %v1174
      %v1176 = vpop.f32.mrb[0].mxu0
      %v1177 = vadd.f32 %v876, %v1176
      %v1178 = vpop.f32.mrb[0].mxu0
      %v1179 = vadd.f32 %v878, %v1178
      %1180 = vmatprep.mubr.bf16.mxu0 0
      %1181 = vmatmul.mubr.bf16.gmra.mrb[0].mxu0 %v1003
      %v1182 = vpop.f32.mrb[0].mxu0
      %v1183 = vadd.f32 %v882, %v1182
      %v1184 = vpop.f32.mrb[0].mxu0
      %v1185 = vadd.f32 %v884, %v1184
      %v1186 = vpop.f32.mrb[0].mxu0
      %v1187 = vadd.f32 %v886, %v1186
      %v1188 = vpop.f32.mrb[0].mxu0
      %v1189 = vadd.f32 %v888, %v1188
      %1190 = vmatprep.mubr.bf16.mxu0 0
      %1191 = vmatmul.mubr.bf16.gmra.mrb[0].mxu0 %v1006
      %v1192 = vpop.f32.mrb[0].mxu0
      %v1193 = vadd.f32 %v892, %v1192
      %v1194 = vpop.f32.mrb[0].mxu0
      %v1195 = vadd.f32 %v894, %v1194
      %v1196 = vpop.f32.mrb[0].mxu0
      %v1197 = vadd.f32 %v896, %v1196
      %v1198 = vpop.f32.mrb[0].mxu0
      %v1199 = vadd.f32 %v898, %v1198
      %1200 = vdwg.mxu0
      %v1201 = vrot.slane %v442, 2
      %v1202 = vrot.slane %v443, 2
      %v1203 = vrot.slane %v444, 2
      %v1204 = vrot.slane %v445, 2
      %v1205 = vrot.slane %v446, 2
      %v1206 = vrot.slane %v447, 2
      %v1207 = vrot.slane %v448, 2
      %v1208 = vrot.slane %v449, 2
      %v1209 = vrot.slane %v450, 2
      %v1210 = vrot.slane %v451, 2
      %v1211 = vrot.slane %v452, 2
      %v1212 = vrot.slane %v453, 2
      %v1213 = vrot.slane %v454, 2
      %v1214 = vrot.slane %v455, 2
      %v1215 = vrot.slane %v456, 2
      %v1216 = vrot.slane %v457, 2
      %v1217 = vrot.slane %v458, 2
      %v1218 = vrot.slane %v459, 2
      %v1219 = vrot.slane %v460, 2
      %v1220 = vrot.slane %v461, 2
      %v1221 = vrot.slane %v462, 2
      %v1222 = vrot.slane %v463, 2
      %v1223 = vrot.slane %v464, 2
      %v1224 = vrot.slane %v465, 2
      %v1225 = vrot.slane %v466, 2
      %v1226 = vrot.slane %v467, 2
      %v1227 = vrot.slane %v468, 2
      %v1228 = vrot.slane %v469, 2
      %v1229 = vrot.slane %v470, 2
      %v1230 = vrot.slane %v471, 2
      %v1231 = vrot.slane %v472, 2
      %v1232 = vrot.slane %v473, 2
      %vm1233 = vcmp.lt.s32.totalorder %v535, 6
      %v1234 = vsel %vm1233, %v1231, %v1232
      %v1235 = vsel %vm1233, %v1230, %v1231
      %v1236 = vsel %vm1233, %v1229, %v1230
      %v1237 = vsel %vm1233, %v1228, %v1229
      %v1238 = vsel %vm1233, %v1227, %v1228
      %v1239 = vsel %vm1233, %v1226, %v1227
      %v1240 = vsel %vm1233, %v1225, %v1226
      %v1241 = vsel %vm1233, %v1224, %v1225
      %v1242 = vsel %vm1233, %v1223, %v1224
      %v1243 = vsel %vm1233, %v1222, %v1223
      %v1244 = vsel %vm1233, %v1221, %v1222
      %v1245 = vsel %vm1233, %v1220, %v1221
      %v1246 = vsel %vm1233, %v1219, %v1220
      %v1247 = vsel %vm1233, %v1218, %v1219
      %v1248 = vsel %vm1233, %v1217, %v1218
      %v1249 = vsel %vm1233, %v1216, %v1217
      %v1250 = vsel %vm1233, %v1215, %v1216
      %v1251 = vsel %vm1233, %v1214, %v1215
      %v1252 = vsel %vm1233, %v1213, %v1214
      %v1253 = vsel %vm1233, %v1212, %v1213
      %v1254 = vsel %vm1233, %v1211, %v1212
      %v1255 = vsel %vm1233, %v1210, %v1211
      %v1256 = vsel %vm1233, %v1209, %v1210
      %v1257 = vsel %vm1233, %v1208, %v1209
      %v1258 = vsel %vm1233, %v1207, %v1208
      %v1259 = vsel %vm1233, %v1206, %v1207
      %v1260 = vsel %vm1233, %v1205, %v1206
      %v1261 = vsel %vm1233, %v1204, %v1205
      %v1262 = vsel %vm1233, %v1203, %v1204
      %v1263 = vsel %vm1233, %v1202, %v1203
      %v1264 = vsel %vm1233, %v1201, %v1202
      %v1265 = vsel %vm1233, %v1232, %v1201
      %v1266 = vpack.c.bf16 %v1263, %v1264
      %v1267 = vpack.c.bf16 %v1261, %v1262
      %v1268 = vpack.c.bf16 %v1259, %v1260
      %v1269 = vpack.c.bf16 %v1257, %v1258
      %v1270 = vpack.c.bf16 %v1255, %v1256
      %v1271 = vpack.c.bf16 %v1253, %v1254
      %v1272 = vpack.c.bf16 %v1251, %v1252
      %v1273 = vpack.c.bf16 %v1249, %v1250
      %v1274 = vpack.c.bf16 %v1247, %v1248
      %v1275 = vpack.c.bf16 %v1245, %v1246
      %v1276 = vpack.c.bf16 %v1243, %v1244
      %v1277 = vpack.c.bf16 %v1241, %v1242
      %v1278 = vpack.c.bf16 %v1239, %v1240
      %v1279 = vpack.c.bf16 %v1237, %v1238
      %v1280 = vpack.c.bf16 %v1235, %v1236
      %v1281 = vpack.c.bf16 %v1265, %v1234
      %s1282 = scalar_lea.vmem %s1, 192
      %v1283 = vld [vmem:[%s1282] sm:$0xff]
      %v1284 = vld [vmem:[%s1282 + $0x8] sm:$0xff]
      %v1285 = vld [vmem:[%s1282 + $0x10] sm:$0xff]
      %v1286 = vld [vmem:[%s1282 + $0x18] sm:$0xff]
      %v1287 = vld [vmem:[%s1282 + $0x20] sm:$0xff]
      %v1288 = vld [vmem:[%s1282 + $0x28] sm:$0xff]
      %v1289 = vld [vmem:[%s1282 + $0x30] sm:$0xff]
      %v1290 = vld [vmem:[%s1282 + $0x38] sm:$0xff]
      %v1291 = vld [vmem:[%s1282 + $0x40] sm:$0xff]
      %v1292 = vld [vmem:[%s1282 + $0x48] sm:$0xff]
      %v1293 = vld [vmem:[%s1282 + $0x50] sm:$0xff]
      %v1294 = vld [vmem:[%s1282 + $0x58] sm:$0xff]
      %v1307 = vunpack.c.l.b16 %v1283
      %v1308 = vunpack.c.h.b16 %v1283
      %v1309 = vunpack.c.l.b16 %v1284
      %v1310 = vunpack.c.h.b16 %v1284
      %v1311 = vunpack.c.l.b16 %v1285
      %v1312 = vunpack.c.h.b16 %v1285
      %v1313 = vunpack.c.l.b16 %v1286
      %v1314 = vunpack.c.h.b16 %v1286
      %v1315 = vunpack.c.l.b16 %v1287
      %v1316 = vunpack.c.h.b16 %v1287
      %v1317 = vunpack.c.l.b16 %v1288
      %v1318 = vunpack.c.h.b16 %v1288
      %v1319 = vunpack.c.l.b16 %v1289
      %v1320 = vunpack.c.h.b16 %v1289
      %v1321 = vunpack.c.l.b16 %v1290
      %v1322 = vunpack.c.h.b16 %v1290
      %v1323 = vunpack.c.l.b16 %v1291
      %v1324 = vunpack.c.h.b16 %v1291
      %v1325 = vunpack.c.l.b16 %v1292
      %v1326 = vunpack.c.h.b16 %v1292
      %v1327 = vunpack.c.l.b16 %v1293
      %v1328 = vunpack.c.h.b16 %v1293
      %v1329 = vunpack.c.l.b16 %v1294
      %v1330 = vunpack.c.h.b16 %v1294
      %v1331 = vpack.c.b16 %v1309, %v1307
      %v1332 = vpack.c.b16 %v1310, %v1308
      %v1333 = vpack.c.b16 %v1313, %v1311
      %v1334 = vpack.c.b16 %v1314, %v1312
      %v1335 = vpack.c.b16 %v1317, %v1315
      %v1336 = vpack.c.b16 %v1318, %v1316
      %v1337 = vpack.c.b16 %v1321, %v1319
      %v1338 = vpack.c.b16 %v1322, %v1320
      %v1339 = vpack.c.b16 %v1325, %v1323
      %v1340 = vpack.c.b16 %v1326, %v1324
      %v1341 = vpack.c.b16 %v1329, %v1327
      %v1342 = vpack.c.b16 %v1330, %v1328
      %v1356 = vsel %vm658, %v1266, 0
      %v1359 = vsel %vm658, %v1267, 0
      %v1362 = vsel %vm658, %v1268, 0
      %v1365 = vsel %vm658, %v1269, 0
      %v1368 = vsel %vm658, %v1270, 0
      %v1371 = vsel %vm658, %v1271, 0
      %v1374 = vsel %vm658, %v1272, 0
      %v1377 = vsel %vm658, %v1273, 0
      %v1380 = vsel %vm658, %v1274, 0
      %v1383 = vsel %vm658, %v1275, 0
      %v1386 = vsel %vm658, %v1276, 0
      %v1389 = vsel %vm658, %v1277, 0
      %v1392 = vsel %vm658, %v1278, 0
      %v1395 = vsel %vm658, %v1279, 0
      %v1398 = vsel %vm658, %v1280, 0
      %v1401 = vsel %vm658, %v1281, 0
      %1403 = vmatprep.subr.bf16.mxu0 %v1332
      %1404 = vmatpush1.bf16.msra.mxu0 %v1331
      %1405 = vmatprep.subr.bf16.mxu0 %v1334
      %1406 = vmatpush1.bf16.msra.mxu0 %v1333
      %1407 = vmatprep.subr.bf16.mxu0 %v1336
      %1408 = vmatpush1.bf16.msra.mxu0 %v1335
      %1409 = vmatprep.subr.bf16.mxu0 %v1338
      %1410 = vmatpush1.bf16.msra.mxu0 %v1337
      %1411 = vmatprep.subr.bf16.mxu0 %v1340
      %1412 = vmatpush1.bf16.msra.mxu0 %v1339
      %1413 = vmatprep.subr.bf16.mxu0 %v1342
      %1414 = vmatpush1.bf16.msra.mxu0 %v1341
      %1415 = vmatprep.subr.bf16.mxu0 0
      %1416 = vmatpush1.bf16.msra.mxu0 0
      %1417 = vmatprep.subr.bf16.mxu0 0
      %1418 = vmatpush1.bf16.msra.mxu0 0
      %1419 = vmatprep.subr.bf16.mxu0 0
      %1420 = vmatpush1.bf16.msra.mxu0 0
      %1421 = vmatprep.subr.bf16.mxu0 0
      %1422 = vmatpush1.bf16.msra.mxu0 0
      %1423 = vmatprep.subr.bf16.mxu0 0
      %1424 = vmatpush1.bf16.msra.mxu0 0
      %1425 = vmatprep.subr.bf16.mxu0 0
      %1426 = vmatpush1.bf16.msra.mxu0 0
      %1427 = vmatprep.subr.bf16.mxu0 0
      %1428 = vmatpush1.bf16.msra.mxu0 0
      %1429 = vmatprep.subr.bf16.mxu0 0
      %1430 = vmatpush1.bf16.msra.mxu0 0
      %1431 = vmatprep.subr.bf16.mxu0 0
      %1432 = vmatpush1.bf16.msra.mxu0 0
      %1433 = vmatprep.subr.bf16.mxu0 0
      %1434 = vmatpush1.bf16.msra.mxu0 0
      %1435 = vmatprep.mubr.bf16.mxu0 0
      %1436 = vmatmul.mubr.bf16.gmra.mrb[0].mxu0 %v1356
      %v1437 = vpop.f32.mrb[0].mxu0
      %v1438 = vadd.f32 0.0, %v1437
      %v1439 = vpop.f32.mrb[0].mxu0
      %v1440 = vadd.f32 0.0, %v1439
      %v1441 = vpop.f32.mrb[0].mxu0
      %v1442 = vadd.f32 0.0, %v1441
      %v1443 = vpop.f32.mrb[0].mxu0
      %v1444 = vadd.f32 0.0, %v1443
      %1445 = vmatprep.mubr.bf16.mxu0 0
      %1446 = vmatmul.mubr.bf16.gmra.mrb[0].mxu0 %v1359
      %v1447 = vpop.f32.mrb[0].mxu0
      %v1448 = vadd.f32 0.0, %v1447
      %v1449 = vpop.f32.mrb[0].mxu0
      %v1450 = vadd.f32 0.0, %v1449
      %v1451 = vpop.f32.mrb[0].mxu0
      %v1452 = vadd.f32 0.0, %v1451
      %v1453 = vpop.f32.mrb[0].mxu0
      %v1454 = vadd.f32 0.0, %v1453
      %1455 = vmatprep.mubr.bf16.mxu0 0
      %1456 = vmatmul.mubr.bf16.gmra.mrb[0].mxu0 %v1362
      %v1457 = vpop.f32.mrb[0].mxu0
      %v1458 = vadd.f32 0.0, %v1457
      %v1459 = vpop.f32.mrb[0].mxu0
      %v1460 = vadd.f32 0.0, %v1459
      %v1461 = vpop.f32.mrb[0].mxu0
      %v1462 = vadd.f32 0.0, %v1461
      %v1463 = vpop.f32.mrb[0].mxu0
      %v1464 = vadd.f32 0.0, %v1463
      %1465 = vmatprep.mubr.bf16.mxu0 0
      %1466 = vmatmul.mubr.bf16.gmra.mrb[0].mxu0 %v1365
      %v1467 = vpop.f32.mrb[0].mxu0
      %v1468 = vadd.f32 0.0, %v1467
      %v1469 = vpop.f32.mrb[0].mxu0
      %v1470 = vadd.f32 0.0, %v1469
      %v1471 = vpop.f32.mrb[0].mxu0
      %v1472 = vadd.f32 0.0, %v1471
      %v1473 = vpop.f32.mrb[0].mxu0
      %v1474 = vadd.f32 0.0, %v1473
      %1475 = vmatprep.mubr.bf16.mxu0 0
      %1476 = vmatmul.mubr.bf16.gmra.mrb[0].mxu0 %v1368
      %v1477 = vpop.f32.mrb[0].mxu0
      %v1478 = vadd.f32 0.0, %v1477
      %v1479 = vpop.f32.mrb[0].mxu0
      %v1480 = vadd.f32 0.0, %v1479
      %v1481 = vpop.f32.mrb[0].mxu0
      %v1482 = vadd.f32 0.0, %v1481
      %v1483 = vpop.f32.mrb[0].mxu0
      %v1484 = vadd.f32 0.0, %v1483
      %1485 = vmatprep.mubr.bf16.mxu0 0
      %1486 = vmatmul.mubr.bf16.gmra.mrb[0].mxu0 %v1371
      %v1487 = vpop.f32.mrb[0].mxu0
      %v1488 = vadd.f32 0.0, %v1487
      %v1489 = vpop.f32.mrb[0].mxu0
      %v1490 = vadd.f32 0.0, %v1489
      %v1491 = vpop.f32.mrb[0].mxu0
      %v1492 = vadd.f32 0.0, %v1491
      %v1493 = vpop.f32.mrb[0].mxu0
      %v1494 = vadd.f32 0.0, %v1493
      %1495 = vmatprep.mubr.bf16.mxu0 0
      %1496 = vmatmul.mubr.bf16.gmra.mrb[0].mxu0 %v1374
      %v1497 = vpop.f32.mrb[0].mxu0
      %v1498 = vadd.f32 0.0, %v1497
      %v1499 = vpop.f32.mrb[0].mxu0
      %v1500 = vadd.f32 0.0, %v1499
      %v1501 = vpop.f32.mrb[0].mxu0
      %v1502 = vadd.f32 0.0, %v1501
      %v1503 = vpop.f32.mrb[0].mxu0
      %v1504 = vadd.f32 0.0, %v1503
      %1505 = vmatprep.mubr.bf16.mxu0 0
      %1506 = vmatmul.mubr.bf16.gmra.mrb[0].mxu0 %v1377
      %v1507 = vpop.f32.mrb[0].mxu0
      %v1508 = vadd.f32 0.0, %v1507
      %v1509 = vpop.f32.mrb[0].mxu0
      %v1510 = vadd.f32 0.0, %v1509
      %v1511 = vpop.f32.mrb[0].mxu0
      %v1512 = vadd.f32 0.0, %v1511
      %v1513 = vpop.f32.mrb[0].mxu0
      %v1514 = vadd.f32 0.0, %v1513
      %1515 = vmatprep.mubr.bf16.mxu0 0
      %1516 = vmatmul.mubr.bf16.gmra.mrb[0].mxu0 %v1380
      %v1517 = vpop.f32.mrb[0].mxu0
      %v1518 = vadd.f32 0.0, %v1517
      %v1519 = vpop.f32.mrb[0].mxu0
      %v1520 = vadd.f32 0.0, %v1519
      %v1521 = vpop.f32.mrb[0].mxu0
      %v1522 = vadd.f32 0.0, %v1521
      %v1523 = vpop.f32.mrb[0].mxu0
      %v1524 = vadd.f32 0.0, %v1523
      %1525 = vmatprep.mubr.bf16.mxu0 0
      %1526 = vmatmul.mubr.bf16.gmra.mrb[0].mxu0 %v1383
      %v1527 = vpop.f32.mrb[0].mxu0
      %v1528 = vadd.f32 0.0, %v1527
      %v1529 = vpop.f32.mrb[0].mxu0
      %v1530 = vadd.f32 0.0, %v1529
      %v1531 = vpop.f32.mrb[0].mxu0
      %v1532 = vadd.f32 0.0, %v1531
      %v1533 = vpop.f32.mrb[0].mxu0
      %v1534 = vadd.f32 0.0, %v1533
      %1535 = vmatprep.mubr.bf16.mxu0 0
      %1536 = vmatmul.mubr.bf16.gmra.mrb[0].mxu0 %v1386
      %v1537 = vpop.f32.mrb[0].mxu0
      %v1538 = vadd.f32 0.0, %v1537
      %v1539 = vpop.f32.mrb[0].mxu0
      %v1540 = vadd.f32 0.0, %v1539
      %v1541 = vpop.f32.mrb[0].mxu0
      %v1542 = vadd.f32 0.0, %v1541
      %v1543 = vpop.f32.mrb[0].mxu0
      %v1544 = vadd.f32 0.0, %v1543
      %1545 = vmatprep.mubr.bf16.mxu0 0
      %1546 = vmatmul.mubr.bf16.gmra.mrb[0].mxu0 %v1389
      %v1547 = vpop.f32.mrb[0].mxu0
      %v1548 = vadd.f32 0.0, %v1547
      %v1549 = vpop.f32.mrb[0].mxu0
      %v1550 = vadd.f32 0.0, %v1549
      %v1551 = vpop.f32.mrb[0].mxu0
      %v1552 = vadd.f32 0.0, %v1551
      %v1553 = vpop.f32.mrb[0].mxu0
      %v1554 = vadd.f32 0.0, %v1553
      %1555 = vmatprep.mubr.bf16.mxu0 0
      %1556 = vmatmul.mubr.bf16.gmra.mrb[0].mxu0 %v1392
      %v1557 = vpop.f32.mrb[0].mxu0
      %v1558 = vadd.f32 0.0, %v1557
      %v1559 = vpop.f32.mrb[0].mxu0
      %v1560 = vadd.f32 0.0, %v1559
      %v1561 = vpop.f32.mrb[0].mxu0
      %v1562 = vadd.f32 0.0, %v1561
      %v1563 = vpop.f32.mrb[0].mxu0
      %v1564 = vadd.f32 0.0, %v1563
      %1565 = vmatprep.mubr.bf16.mxu0 0
      %1566 = vmatmul.mubr.bf16.gmra.mrb[0].mxu0 %v1395
      %v1567 = vpop.f32.mrb[0].mxu0
      %v1568 = vadd.f32 0.0, %v1567
      %v1569 = vpop.f32.mrb[0].mxu0
      %v1570 = vadd.f32 0.0, %v1569
      %v1571 = vpop.f32.mrb[0].mxu0
      %v1572 = vadd.f32 0.0, %v1571
      %v1573 = vpop.f32.mrb[0].mxu0
      %v1574 = vadd.f32 0.0, %v1573
      %1575 = vmatprep.mubr.bf16.mxu0 0
      %1576 = vmatmul.mubr.bf16.gmra.mrb[0].mxu0 %v1398
      %v1577 = vpop.f32.mrb[0].mxu0
      %v1578 = vadd.f32 0.0, %v1577
      %v1579 = vpop.f32.mrb[0].mxu0
      %v1580 = vadd.f32 0.0, %v1579
      %v1581 = vpop.f32.mrb[0].mxu0
      %v1582 = vadd.f32 0.0, %v1581
      %v1583 = vpop.f32.mrb[0].mxu0
      %v1584 = vadd.f32 0.0, %v1583
      %1585 = vmatprep.mubr.bf16.mxu0 0
      %1586 = vmatmul.mubr.bf16.gmra.mrb[0].mxu0 %v1401
      %v1587 = vpop.f32.mrb[0].mxu0
      %v1588 = vadd.f32 0.0, %v1587
      %v1589 = vpop.f32.mrb[0].mxu0
      %v1590 = vadd.f32 0.0, %v1589
      %v1591 = vpop.f32.mrb[0].mxu0
      %v1592 = vadd.f32 0.0, %v1591
      %v1593 = vpop.f32.mrb[0].mxu0
      %v1594 = vadd.f32 0.0, %v1593
      %1595 = vdwg.mxu0
      %v1596 = vadd.f32 %v1043, %v1438
      %v1597 = vadd.f32 %v1045, %v1440
      %v1598 = vadd.f32 %v1047, %v1442
      %v1599 = vadd.f32 %v1049, %v1444
      %v1600 = vadd.f32 %v1053, %v1448
      %v1601 = vadd.f32 %v1055, %v1450
      %v1602 = vadd.f32 %v1057, %v1452
      %v1603 = vadd.f32 %v1059, %v1454
      %v1604 = vadd.f32 %v1063, %v1458
      %v1605 = vadd.f32 %v1065, %v1460
      %v1606 = vadd.f32 %v1067, %v1462
      %v1607 = vadd.f32 %v1069, %v1464
      %v1608 = vadd.f32 %v1073, %v1468
      %v1609 = vadd.f32 %v1075, %v1470
      %v1610 = vadd.f32 %v1077, %v1472
      %v1611 = vadd.f32 %v1079, %v1474
      %v1612 = vadd.f32 %v1083, %v1478
      %v1613 = vadd.f32 %v1085, %v1480
      %v1614 = vadd.f32 %v1087, %v1482
      %v1615 = vadd.f32 %v1089, %v1484
      %v1616 = vadd.f32 %v1093, %v1488
      %v1617 = vadd.f32 %v1095, %v1490
      %v1618 = vadd.f32 %v1097, %v1492
      %v1619 = vadd.f32 %v1099, %v1494
      %v1620 = vadd.f32 %v1103, %v1498
      %v1621 = vadd.f32 %v1105, %v1500
      %v1622 = vadd.f32 %v1107, %v1502
      %v1623 = vadd.f32 %v1109, %v1504
      %v1624 = vadd.f32 %v1113, %v1508
      %v1625 = vadd.f32 %v1115, %v1510
      %v1626 = vadd.f32 %v1117, %v1512
      %v1627 = vadd.f32 %v1119, %v1514
      %v1628 = vadd.f32 %v1123, %v1518
      %v1629 = vadd.f32 %v1125, %v1520
      %v1630 = vadd.f32 %v1127, %v1522
      %v1631 = vadd.f32 %v1129, %v1524
      %v1632 = vadd.f32 %v1133, %v1528
      %v1633 = vadd.f32 %v1135, %v1530
      %v1634 = vadd.f32 %v1137, %v1532
      %v1635 = vadd.f32 %v1139, %v1534
      %v1636 = vadd.f32 %v1143, %v1538
      %v1637 = vadd.f32 %v1145, %v1540
      %v1638 = vadd.f32 %v1147, %v1542
      %v1639 = vadd.f32 %v1149, %v1544
      %v1640 = vadd.f32 %v1153, %v1548
      %v1641 = vadd.f32 %v1155, %v1550
      %v1642 = vadd.f32 %v1157, %v1552
      %v1643 = vadd.f32 %v1159, %v1554
      %v1644 = vadd.f32 %v1163, %v1558
      %v1645 = vadd.f32 %v1165, %v1560
      %v1646 = vadd.f32 %v1167, %v1562
      %v1647 = vadd.f32 %v1169, %v1564
      %v1648 = vadd.f32 %v1173, %v1568
      %v1649 = vadd.f32 %v1175, %v1570
      %v1650 = vadd.f32 %v1177, %v1572
      %v1651 = vadd.f32 %v1179, %v1574
      %v1652 = vadd.f32 %v1183, %v1578
      %v1653 = vadd.f32 %v1185, %v1580
      %v1654 = vadd.f32 %v1187, %v1582
      %v1655 = vadd.f32 %v1189, %v1584
      %v1656 = vadd.f32 %v1193, %v1588
      %v1657 = vadd.f32 %v1195, %v1590
      %v1658 = vadd.f32 %v1197, %v1592
      %v1659 = vadd.f32 %v1199, %v1594
      %v1660 = vrot.slane %v442, 3
      %v1661 = vrot.slane %v443, 3
      %v1662 = vrot.slane %v444, 3
      %v1663 = vrot.slane %v445, 3
      %v1664 = vrot.slane %v446, 3
      %v1665 = vrot.slane %v447, 3
      %v1666 = vrot.slane %v448, 3
      %v1667 = vrot.slane %v449, 3
      %v1668 = vrot.slane %v450, 3
      %v1669 = vrot.slane %v451, 3
      %v1670 = vrot.slane %v452, 3
      %v1671 = vrot.slane %v453, 3
      %v1672 = vrot.slane %v454, 3
      %v1673 = vrot.slane %v455, 3
      %v1674 = vrot.slane %v456, 3
      %v1675 = vrot.slane %v457, 3
      %v1676 = vrot.slane %v458, 3
      %v1677 = vrot.slane %v459, 3
      %v1678 = vrot.slane %v460, 3
      %v1679 = vrot.slane %v461, 3
      %v1680 = vrot.slane %v462, 3
      %v1681 = vrot.slane %v463, 3
      %v1682 = vrot.slane %v464, 3
      %v1683 = vrot.slane %v465, 3
      %v1684 = vrot.slane %v466, 3
      %v1685 = vrot.slane %v467, 3
      %v1686 = vrot.slane %v468, 3
      %v1687 = vrot.slane %v469, 3
      %v1688 = vrot.slane %v470, 3
      %v1689 = vrot.slane %v471, 3
      %v1690 = vrot.slane %v472, 3
      %v1691 = vrot.slane %v473, 3
      %vm1692 = vcmp.lt.s32.totalorder %v535, 5
      %v1693 = vsel %vm1692, %v1690, %v1691
      %v1694 = vsel %vm1692, %v1689, %v1690
      %v1695 = vsel %vm1692, %v1688, %v1689
      %v1696 = vsel %vm1692, %v1687, %v1688
      %v1697 = vsel %vm1692, %v1686, %v1687
      %v1698 = vsel %vm1692, %v1685, %v1686
      %v1699 = vsel %vm1692, %v1684, %v1685
      %v1700 = vsel %vm1692, %v1683, %v1684
      %v1701 = vsel %vm1692, %v1682, %v1683
      %v1702 = vsel %vm1692, %v1681, %v1682
      %v1703 = vsel %vm1692, %v1680, %v1681
      %v1704 = vsel %vm1692, %v1679, %v1680
      %v1705 = vsel %vm1692, %v1678, %v1679
      %v1706 = vsel %vm1692, %v1677, %v1678
      %v1707 = vsel %vm1692, %v1676, %v1677
      %v1708 = vsel %vm1692, %v1675, %v1676
      %v1709 = vsel %vm1692, %v1674, %v1675
      %v1710 = vsel %vm1692, %v1673, %v1674
      %v1711 = vsel %vm1692, %v1672, %v1673
      %v1712 = vsel %vm1692, %v1671, %v1672
      %v1713 = vsel %vm1692, %v1670, %v1671
      %v1714 = vsel %vm1692, %v1669, %v1670
      %v1715 = vsel %vm1692, %v1668, %v1669
      %v1716 = vsel %vm1692, %v1667, %v1668
      %v1717 = vsel %vm1692, %v1666, %v1667
      %v1718 = vsel %vm1692, %v1665, %v1666
      %v1719 = vsel %vm1692, %v1664, %v1665
      %v1720 = vsel %vm1692, %v1663, %v1664
      %v1721 = vsel %vm1692, %v1662, %v1663
      %v1722 = vsel %vm1692, %v1661, %v1662
      %v1723 = vsel %vm1692, %v1660, %v1661
      %v1724 = vsel %vm1692, %v1691, %v1660
      %v1725 = vpack.c.bf16 %v1722, %v1723
      %v1726 = vpack.c.bf16 %v1720, %v1721
      %v1727 = vpack.c.bf16 %v1718, %v1719
      %v1728 = vpack.c.bf16 %v1716, %v1717
      %v1729 = vpack.c.bf16 %v1714, %v1715
      %v1730 = vpack.c.bf16 %v1712, %v1713
      %v1731 = vpack.c.bf16 %v1710, %v1711
      %v1732 = vpack.c.bf16 %v1708, %v1709
      %v1733 = vpack.c.bf16 %v1706, %v1707
      %v1734 = vpack.c.bf16 %v1704, %v1705
      %v1735 = vpack.c.bf16 %v1702, %v1703
      %v1736 = vpack.c.bf16 %v1700, %v1701
      %v1737 = vpack.c.bf16 %v1698, %v1699
      %v1738 = vpack.c.bf16 %v1696, %v1697
      %v1739 = vpack.c.bf16 %v1694, %v1695
      %v1740 = vpack.c.bf16 %v1724, %v1693
      %s1741 = scalar_lea.vmem %s1, 288
      %v1742 = vld [vmem:[%s1741] sm:$0xff]
      %v1743 = vld [vmem:[%s1741 + $0x8] sm:$0xff]
      %v1744 = vld [vmem:[%s1741 + $0x10] sm:$0xff]
      %v1745 = vld [vmem:[%s1741 + $0x18] sm:$0xff]
      %v1746 = vld [vmem:[%s1741 + $0x20] sm:$0xff]
      %v1747 = vld [vmem:[%s1741 + $0x28] sm:$0xff]
      %v1748 = vld [vmem:[%s1741 + $0x30] sm:$0xff]
      %v1749 = vld [vmem:[%s1741 + $0x38] sm:$0xff]
      %v1750 = vld [vmem:[%s1741 + $0x40] sm:$0xff]
      %v1751 = vld [vmem:[%s1741 + $0x48] sm:$0xff]
      %v1752 = vld [vmem:[%s1741 + $0x50] sm:$0xff]
      %v1753 = vld [vmem:[%s1741 + $0x58] sm:$0xff]
      %v1766 = vunpack.c.l.b16 %v1742
      %v1767 = vunpack.c.h.b16 %v1742
      %v1768 = vunpack.c.l.b16 %v1743
      %v1769 = vunpack.c.h.b16 %v1743
      %v1770 = vunpack.c.l.b16 %v1744
      %v1771 = vunpack.c.h.b16 %v1744
      %v1772 = vunpack.c.l.b16 %v1745
      %v1773 = vunpack.c.h.b16 %v1745
      %v1774 = vunpack.c.l.b16 %v1746
      %v1775 = vunpack.c.h.b16 %v1746
      %v1776 = vunpack.c.l.b16 %v1747
      %v1777 = vunpack.c.h.b16 %v1747
      %v1778 = vunpack.c.l.b16 %v1748
      %v1779 = vunpack.c.h.b16 %v1748
      %v1780 = vunpack.c.l.b16 %v1749
      %v1781 = vunpack.c.h.b16 %v1749
      %v1782 = vunpack.c.l.b16 %v1750
      %v1783 = vunpack.c.h.b16 %v1750
      %v1784 = vunpack.c.l.b16 %v1751
      %v1785 = vunpack.c.h.b16 %v1751
      %v1786 = vunpack.c.l.b16 %v1752
      %v1787 = vunpack.c.h.b16 %v1752
      %v1788 = vunpack.c.l.b16 %v1753
      %v1789 = vunpack.c.h.b16 %v1753
      %v1790 = vpack.c.b16 %v1768, %v1766
      %v1791 = vpack.c.b16 %v1769, %v1767
      %v1792 = vpack.c.b16 %v1772, %v1770
      %v1793 = vpack.c.b16 %v1773, %v1771
      %v1794 = vpack.c.b16 %v1776, %v1774
      %v1795 = vpack.c.b16 %v1777, %v1775
      %v1796 = vpack.c.b16 %v1780, %v1778
      %v1797 = vpack.c.b16 %v1781, %v1779
      %v1798 = vpack.c.b16 %v1784, %v1782
      %v1799 = vpack.c.b16 %v1785, %v1783
      %v1800 = vpack.c.b16 %v1788, %v1786
      %v1801 = vpack.c.b16 %v1789, %v1787
      %v1815 = vsel %vm658, %v1725, 0
      %v1818 = vsel %vm658, %v1726, 0
      %v1821 = vsel %vm658, %v1727, 0
      %v1824 = vsel %vm658, %v1728, 0
      %v1827 = vsel %vm658, %v1729, 0
      %v1830 = vsel %vm658, %v1730, 0
      %v1833 = vsel %vm658, %v1731, 0
      %v1836 = vsel %vm658, %v1732, 0
      %v1839 = vsel %vm658, %v1733, 0
      %v1842 = vsel %vm658, %v1734, 0
      %v1845 = vsel %vm658, %v1735, 0
      %v1848 = vsel %vm658, %v1736, 0
      %v1851 = vsel %vm658, %v1737, 0
      %v1854 = vsel %vm658, %v1738, 0
      %v1857 = vsel %vm658, %v1739, 0
      %v1860 = vsel %vm658, %v1740, 0
      %1862 = vmatprep.subr.bf16.mxu0 %v1791
      %1863 = vmatpush1.bf16.msra.mxu0 %v1790
      %1864 = vmatprep.subr.bf16.mxu0 %v1793
      %1865 = vmatpush1.bf16.msra.mxu0 %v1792
      %1866 = vmatprep.subr.bf16.mxu0 %v1795
      %1867 = vmatpush1.bf16.msra.mxu0 %v1794
      %1868 = vmatprep.subr.bf16.mxu0 %v1797
      %1869 = vmatpush1.bf16.msra.mxu0 %v1796
      %1870 = vmatprep.subr.bf16.mxu0 %v1799
      %1871 = vmatpush1.bf16.msra.mxu0 %v1798
      %1872 = vmatprep.subr.bf16.mxu0 %v1801
      %1873 = vmatpush1.bf16.msra.mxu0 %v1800
      %1874 = vmatprep.subr.bf16.mxu0 0
      %1875 = vmatpush1.bf16.msra.mxu0 0
      %1876 = vmatprep.subr.bf16.mxu0 0
      %1877 = vmatpush1.bf16.msra.mxu0 0
      %1878 = vmatprep.subr.bf16.mxu0 0
      %1879 = vmatpush1.bf16.msra.mxu0 0
      %1880 = vmatprep.subr.bf16.mxu0 0
      %1881 = vmatpush1.bf16.msra.mxu0 0
      %1882 = vmatprep.subr.bf16.mxu0 0
      %1883 = vmatpush1.bf16.msra.mxu0 0
      %1884 = vmatprep.subr.bf16.mxu0 0
      %1885 = vmatpush1.bf16.msra.mxu0 0
      %1886 = vmatprep.subr.bf16.mxu0 0
      %1887 = vmatpush1.bf16.msra.mxu0 0
      %1888 = vmatprep.subr.bf16.mxu0 0
      %1889 = vmatpush1.bf16.msra.mxu0 0
      %1890 = vmatprep.subr.bf16.mxu0 0
      %1891 = vmatpush1.bf16.msra.mxu0 0
      %1892 = vmatprep.subr.bf16.mxu0 0
      %1893 = vmatpush1.bf16.msra.mxu0 0
      %1894 = vmatprep.mubr.bf16.mxu0 0
      %1895 = vmatmul.mubr.bf16.gmra.mrb[0].mxu0 %v1815
      %v1896 = vpop.f32.mrb[0].mxu0
      %v1897 = vadd.f32 0.0, %v1896
      %v1898 = vpop.f32.mrb[0].mxu0
      %v1899 = vadd.f32 0.0, %v1898
      %v1900 = vpop.f32.mrb[0].mxu0
      %v1901 = vadd.f32 0.0, %v1900
      %v1902 = vpop.f32.mrb[0].mxu0
      %v1903 = vadd.f32 0.0, %v1902
      %1904 = vmatprep.mubr.bf16.mxu0 0
      %1905 = vmatmul.mubr.bf16.gmra.mrb[0].mxu0 %v1818
      %v1906 = vpop.f32.mrb[0].mxu0
      %v1907 = vadd.f32 0.0, %v1906
      %v1908 = vpop.f32.mrb[0].mxu0
      %v1909 = vadd.f32 0.0, %v1908
      %v1910 = vpop.f32.mrb[0].mxu0
      %v1911 = vadd.f32 0.0, %v1910
      %v1912 = vpop.f32.mrb[0].mxu0
      %v1913 = vadd.f32 0.0, %v1912
      %1914 = vmatprep.mubr.bf16.mxu0 0
      %1915 = vmatmul.mubr.bf16.gmra.mrb[0].mxu0 %v1821
      %v1916 = vpop.f32.mrb[0].mxu0
      %v1917 = vadd.f32 0.0, %v1916
      %v1918 = vpop.f32.mrb[0].mxu0
      %v1919 = vadd.f32 0.0, %v1918
      %v1920 = vpop.f32.mrb[0].mxu0
      %v1921 = vadd.f32 0.0, %v1920
      %v1922 = vpop.f32.mrb[0].mxu0
      %v1923 = vadd.f32 0.0, %v1922
      %1924 = vmatprep.mubr.bf16.mxu0 0
      %1925 = vmatmul.mubr.bf16.gmra.mrb[0].mxu0 %v1824
      %v1926 = vpop.f32.mrb[0].mxu0
      %v1927 = vadd.f32 0.0, %v1926
      %v1928 = vpop.f32.mrb[0].mxu0
      %v1929 = vadd.f32 0.0, %v1928
      %v1930 = vpop.f32.mrb[0].mxu0
      %v1931 = vadd.f32 0.0, %v1930
      %v1932 = vpop.f32.mrb[0].mxu0
      %v1933 = vadd.f32 0.0, %v1932
      %1934 = vmatprep.mubr.bf16.mxu0 0
      %1935 = vmatmul.mubr.bf16.gmra.mrb[0].mxu0 %v1827
      %v1936 = vpop.f32.mrb[0].mxu0
      %v1937 = vadd.f32 0.0, %v1936
      %v1938 = vpop.f32.mrb[0].mxu0
      %v1939 = vadd.f32 0.0, %v1938
      %v1940 = vpop.f32.mrb[0].mxu0
      %v1941 = vadd.f32 0.0, %v1940
      %v1942 = vpop.f32.mrb[0].mxu0
      %v1943 = vadd.f32 0.0, %v1942
      %1944 = vmatprep.mubr.bf16.mxu0 0
      %1945 = vmatmul.mubr.bf16.gmra.mrb[0].mxu0 %v1830
      %v1946 = vpop.f32.mrb[0].mxu0
      %v1947 = vadd.f32 0.0, %v1946
      %v1948 = vpop.f32.mrb[0].mxu0
      %v1949 = vadd.f32 0.0, %v1948
      %v1950 = vpop.f32.mrb[0].mxu0
      %v1951 = vadd.f32 0.0, %v1950
      %v1952 = vpop.f32.mrb[0].mxu0
      %v1953 = vadd.f32 0.0, %v1952
      %1954 = vmatprep.mubr.bf16.mxu0 0
      %1955 = vmatmul.mubr.bf16.gmra.mrb[0].mxu0 %v1833
      %v1956 = vpop.f32.mrb[0].mxu0
      %v1957 = vadd.f32 0.0, %v1956
      %v1958 = vpop.f32.mrb[0].mxu0
      %v1959 = vadd.f32 0.0, %v1958
      %v1960 = vpop.f32.mrb[0].mxu0
      %v1961 = vadd.f32 0.0, %v1960
      %v1962 = vpop.f32.mrb[0].mxu0
      %v1963 = vadd.f32 0.0, %v1962
      %1964 = vmatprep.mubr.bf16.mxu0 0
      %1965 = vmatmul.mubr.bf16.gmra.mrb[0].mxu0 %v1836
      %v1966 = vpop.f32.mrb[0].mxu0
      %v1967 = vadd.f32 0.0, %v1966
      %v1968 = vpop.f32.mrb[0].mxu0
      %v1969 = vadd.f32 0.0, %v1968
      %v1970 = vpop.f32.mrb[0].mxu0
      %v1971 = vadd.f32 0.0, %v1970
      %v1972 = vpop.f32.mrb[0].mxu0
      %v1973 = vadd.f32 0.0, %v1972
      %1974 = vmatprep.mubr.bf16.mxu0 0
      %1975 = vmatmul.mubr.bf16.gmra.mrb[0].mxu0 %v1839
      %v1976 = vpop.f32.mrb[0].mxu0
      %v1977 = vadd.f32 0.0, %v1976
      %v1978 = vpop.f32.mrb[0].mxu0
      %v1979 = vadd.f32 0.0, %v1978
      %v1980 = vpop.f32.mrb[0].mxu0
      %v1981 = vadd.f32 0.0, %v1980
      %v1982 = vpop.f32.mrb[0].mxu0
      %v1983 = vadd.f32 0.0, %v1982
      %1984 = vmatprep.mubr.bf16.mxu0 0
      %1985 = vmatmul.mubr.bf16.gmra.mrb[0].mxu0 %v1842
      %v1986 = vpop.f32.mrb[0].mxu0
      %v1987 = vadd.f32 0.0, %v1986
      %v1988 = vpop.f32.mrb[0].mxu0
      %v1989 = vadd.f32 0.0, %v1988
      %v1990 = vpop.f32.mrb[0].mxu0
      %v1991 = vadd.f32 0.0, %v1990
      %v1992 = vpop.f32.mrb[0].mxu0
      %v1993 = vadd.f32 0.0, %v1992
      %1994 = vmatprep.mubr.bf16.mxu0 0
      %1995 = vmatmul.mubr.bf16.gmra.mrb[0].mxu0 %v1845
      %v1996 = vpop.f32.mrb[0].mxu0
      %v1997 = vadd.f32 0.0, %v1996
      %v1998 = vpop.f32.mrb[0].mxu0
      %v1999 = vadd.f32 0.0, %v1998
      %v2000 = vpop.f32.mrb[0].mxu0
      %v2001 = vadd.f32 0.0, %v2000
      %v2002 = vpop.f32.mrb[0].mxu0
      %v2003 = vadd.f32 0.0, %v2002
      %2004 = vmatprep.mubr.bf16.mxu0 0
      %2005 = vmatmul.mubr.bf16.gmra.mrb[0].mxu0 %v1848
      %v2006 = vpop.f32.mrb[0].mxu0
      %v2007 = vadd.f32 0.0, %v2006
      %v2008 = vpop.f32.mrb[0].mxu0
      %v2009 = vadd.f32 0.0, %v2008
      %v2010 = vpop.f32.mrb[0].mxu0
      %v2011 = vadd.f32 0.0, %v2010
      %v2012 = vpop.f32.mrb[0].mxu0
      %v2013 = vadd.f32 0.0, %v2012
      %2014 = vmatprep.mubr.bf16.mxu0 0
      %2015 = vmatmul.mubr.bf16.gmra.mrb[0].mxu0 %v1851
      %v2016 = vpop.f32.mrb[0].mxu0
      %v2017 = vadd.f32 0.0, %v2016
      %v2018 = vpop.f32.mrb[0].mxu0
      %v2019 = vadd.f32 0.0, %v2018
      %v2020 = vpop.f32.mrb[0].mxu0
      %v2021 = vadd.f32 0.0, %v2020
      %v2022 = vpop.f32.mrb[0].mxu0
      %v2023 = vadd.f32 0.0, %v2022
      %2024 = vmatprep.mubr.bf16.mxu0 0
      %2025 = vmatmul.mubr.bf16.gmra.mrb[0].mxu0 %v1854
      %v2026 = vpop.f32.mrb[0].mxu0
      %v2027 = vadd.f32 0.0, %v2026
      %v2028 = vpop.f32.mrb[0].mxu0
      %v2029 = vadd.f32 0.0, %v2028
      %v2030 = vpop.f32.mrb[0].mxu0
      %v2031 = vadd.f32 0.0, %v2030
      %v2032 = vpop.f32.mrb[0].mxu0
      %v2033 = vadd.f32 0.0, %v2032
      %2034 = vmatprep.mubr.bf16.mxu0 0
      %2035 = vmatmul.mubr.bf16.gmra.mrb[0].mxu0 %v1857
      %v2036 = vpop.f32.mrb[0].mxu0
      %v2037 = vadd.f32 0.0, %v2036
      %v2038 = vpop.f32.mrb[0].mxu0
      %v2039 = vadd.f32 0.0, %v2038
      %v2040 = vpop.f32.mrb[0].mxu0
      %v2041 = vadd.f32 0.0, %v2040
      %v2042 = vpop.f32.mrb[0].mxu0
      %v2043 = vadd.f32 0.0, %v2042
      %2044 = vmatprep.mubr.bf16.mxu0 0
      %2045 = vmatmul.mubr.bf16.gmra.mrb[0].mxu0 %v1860
      %v2046 = vpop.f32.mrb[0].mxu0
      %v2047 = vadd.f32 0.0, %v2046
      %v2048 = vpop.f32.mrb[0].mxu0
      %v2049 = vadd.f32 0.0, %v2048
      %v2050 = vpop.f32.mrb[0].mxu0
      %v2051 = vadd.f32 0.0, %v2050
      %v2052 = vpop.f32.mrb[0].mxu0
      %v2053 = vadd.f32 0.0, %v2052
      %2054 = vdwg.mxu0
      %v2055 = vadd.f32 %v1596, %v1897
      %v2056 = vadd.f32 %v1597, %v1899
      %v2057 = vadd.f32 %v1598, %v1901
      %v2058 = vadd.f32 %v1599, %v1903
      %v2059 = vadd.f32 %v1600, %v1907
      %v2060 = vadd.f32 %v1601, %v1909
      %v2061 = vadd.f32 %v1602, %v1911
      %v2062 = vadd.f32 %v1603, %v1913
      %v2063 = vadd.f32 %v1604, %v1917
      %v2064 = vadd.f32 %v1605, %v1919
      %v2065 = vadd.f32 %v1606, %v1921
      %v2066 = vadd.f32 %v1607, %v1923
      %v2067 = vadd.f32 %v1608, %v1927
      %v2068 = vadd.f32 %v1609, %v1929
      %v2069 = vadd.f32 %v1610, %v1931
      %v2070 = vadd.f32 %v1611, %v1933
      %v2071 = vadd.f32 %v1612, %v1937
      %v2072 = vadd.f32 %v1613, %v1939
      %v2073 = vadd.f32 %v1614, %v1941
      %v2074 = vadd.f32 %v1615, %v1943
      %v2075 = vadd.f32 %v1616, %v1947
      %v2076 = vadd.f32 %v1617, %v1949
      %v2077 = vadd.f32 %v1618, %v1951
      %v2078 = vadd.f32 %v1619, %v1953
      %v2079 = vadd.f32 %v1620, %v1957
      %v2080 = vadd.f32 %v1621, %v1959
      %v2081 = vadd.f32 %v1622, %v1961
      %v2082 = vadd.f32 %v1623, %v1963
      %v2083 = vadd.f32 %v1624, %v1967
      %v2084 = vadd.f32 %v1625, %v1969
      %v2085 = vadd.f32 %v1626, %v1971
      %v2086 = vadd.f32 %v1627, %v1973
      %v2087 = vadd.f32 %v1628, %v1977
      %v2088 = vadd.f32 %v1629, %v1979
      %v2089 = vadd.f32 %v1630, %v1981
      %v2090 = vadd.f32 %v1631, %v1983
      %v2091 = vadd.f32 %v1632, %v1987
      %v2092 = vadd.f32 %v1633, %v1989
      %v2093 = vadd.f32 %v1634, %v1991
      %v2094 = vadd.f32 %v1635, %v1993
      %v2095 = vadd.f32 %v1636, %v1997
      %v2096 = vadd.f32 %v1637, %v1999
      %v2097 = vadd.f32 %v1638, %v2001
      %v2098 = vadd.f32 %v1639, %v2003
      %v2099 = vadd.f32 %v1640, %v2007
      %v2100 = vadd.f32 %v1641, %v2009
      %v2101 = vadd.f32 %v1642, %v2011
      %v2102 = vadd.f32 %v1643, %v2013
      %v2103 = vadd.f32 %v1644, %v2017
      %v2104 = vadd.f32 %v1645, %v2019
      %v2105 = vadd.f32 %v1646, %v2021
      %v2106 = vadd.f32 %v1647, %v2023
      %v2107 = vadd.f32 %v1648, %v2027
      %v2108 = vadd.f32 %v1649, %v2029
      %v2109 = vadd.f32 %v1650, %v2031
      %v2110 = vadd.f32 %v1651, %v2033
      %v2111 = vadd.f32 %v1652, %v2037
      %v2112 = vadd.f32 %v1653, %v2039
      %v2113 = vadd.f32 %v1654, %v2041
      %v2114 = vadd.f32 %v1655, %v2043
      %v2115 = vadd.f32 %v1656, %v2047
      %v2116 = vadd.f32 %v1657, %v2049
      %v2117 = vadd.f32 %v1658, %v2051
      %v2118 = vadd.f32 %v1659, %v2053
      %v2119 = vrot.slane %v442, 4
      %v2120 = vrot.slane %v443, 4
      %v2121 = vrot.slane %v444, 4
      %v2122 = vrot.slane %v445, 4
      %v2123 = vrot.slane %v446, 4
      %v2124 = vrot.slane %v447, 4
      %v2125 = vrot.slane %v448, 4
      %v2126 = vrot.slane %v449, 4
      %v2127 = vrot.slane %v450, 4
      %v2128 = vrot.slane %v451, 4
      %v2129 = vrot.slane %v452, 4
      %v2130 = vrot.slane %v453, 4
      %v2131 = vrot.slane %v454, 4
      %v2132 = vrot.slane %v455, 4
      %v2133 = vrot.slane %v456, 4
      %v2134 = vrot.slane %v457, 4
      %v2135 = vrot.slane %v458, 4
      %v2136 = vrot.slane %v459, 4
      %v2137 = vrot.slane %v460, 4
      %v2138 = vrot.slane %v461, 4
      %v2139 = vrot.slane %v462, 4
      %v2140 = vrot.slane %v463, 4
      %v2141 = vrot.slane %v464, 4
      %v2142 = vrot.slane %v465, 4
      %v2143 = vrot.slane %v466, 4
      %v2144 = vrot.slane %v467, 4
      %v2145 = vrot.slane %v468, 4
      %v2146 = vrot.slane %v469, 4
      %v2147 = vrot.slane %v470, 4
      %v2148 = vrot.slane %v471, 4
      %v2149 = vrot.slane %v472, 4
      %v2150 = vrot.slane %v473, 4
      %vm2151 = vcmp.lt.s32.totalorder %v535, 4
      %v2152 = vsel %vm2151, %v2149, %v2150
      %v2153 = vsel %vm2151, %v2148, %v2149
      %v2154 = vsel %vm2151, %v2147, %v2148
      %v2155 = vsel %vm2151, %v2146, %v2147
      %v2156 = vsel %vm2151, %v2145, %v2146
      %v2157 = vsel %vm2151, %v2144, %v2145
      %v2158 = vsel %vm2151, %v2143, %v2144
      %v2159 = vsel %vm2151, %v2142, %v2143
      %v2160 = vsel %vm2151, %v2141, %v2142
      %v2161 = vsel %vm2151, %v2140, %v2141
      %v2162 = vsel %vm2151, %v2139, %v2140
      %v2163 = vsel %vm2151, %v2138, %v2139
      %v2164 = vsel %vm2151, %v2137, %v2138
      %v2165 = vsel %vm2151, %v2136, %v2137
      %v2166 = vsel %vm2151, %v2135, %v2136
      %v2167 = vsel %vm2151, %v2134, %v2135
      %v2168 = vsel %vm2151, %v2133, %v2134
      %v2169 = vsel %vm2151, %v2132, %v2133
      %v2170 = vsel %vm2151, %v2131, %v2132
      %v2171 = vsel %vm2151, %v2130, %v2131
      %v2172 = vsel %vm2151, %v2129, %v2130
      %v2173 = vsel %vm2151, %v2128, %v2129
      %v2174 = vsel %vm2151, %v2127, %v2128
      %v2175 = vsel %vm2151, %v2126, %v2127
      %v2176 = vsel %vm2151, %v2125, %v2126
      %v2177 = vsel %vm2151, %v2124, %v2125
      %v2178 = vsel %vm2151, %v2123, %v2124
      %v2179 = vsel %vm2151, %v2122, %v2123
      %v2180 = vsel %vm2151, %v2121, %v2122
      %v2181 = vsel %vm2151, %v2120, %v2121
      %v2182 = vsel %vm2151, %v2119, %v2120
      %v2183 = vsel %vm2151, %v2150, %v2119
      %v2184 = vpack.c.bf16 %v2181, %v2182
      %v2185 = vpack.c.bf16 %v2179, %v2180
      %v2186 = vpack.c.bf16 %v2177, %v2178
      %v2187 = vpack.c.bf16 %v2175, %v2176
      %v2188 = vpack.c.bf16 %v2173, %v2174
      %v2189 = vpack.c.bf16 %v2171, %v2172
      %v2190 = vpack.c.bf16 %v2169, %v2170
      %v2191 = vpack.c.bf16 %v2167, %v2168
      %v2192 = vpack.c.bf16 %v2165, %v2166
      %v2193 = vpack.c.bf16 %v2163, %v2164
      %v2194 = vpack.c.bf16 %v2161, %v2162
      %v2195 = vpack.c.bf16 %v2159, %v2160
      %v2196 = vpack.c.bf16 %v2157, %v2158
      %v2197 = vpack.c.bf16 %v2155, %v2156
      %v2198 = vpack.c.bf16 %v2153, %v2154
      %v2199 = vpack.c.bf16 %v2183, %v2152
      %s2200 = scalar_lea.vmem %s1, 384
      %v2201 = vld [vmem:[%s2200] sm:$0xff]
      %v2202 = vld [vmem:[%s2200 + $0x8] sm:$0xff]
      %v2203 = vld [vmem:[%s2200 + $0x10] sm:$0xff]
      %v2204 = vld [vmem:[%s2200 + $0x18] sm:$0xff]
      %v2205 = vld [vmem:[%s2200 + $0x20] sm:$0xff]
      %v2206 = vld [vmem:[%s2200 + $0x28] sm:$0xff]
      %v2207 = vld [vmem:[%s2200 + $0x30] sm:$0xff]
      %v2208 = vld [vmem:[%s2200 + $0x38] sm:$0xff]
      %v2209 = vld [vmem:[%s2200 + $0x40] sm:$0xff]
      %v2210 = vld [vmem:[%s2200 + $0x48] sm:$0xff]
      %v2211 = vld [vmem:[%s2200 + $0x50] sm:$0xff]
      %v2212 = vld [vmem:[%s2200 + $0x58] sm:$0xff]
      %v2225 = vunpack.c.l.b16 %v2201
      %v2226 = vunpack.c.h.b16 %v2201
      %v2227 = vunpack.c.l.b16 %v2202
      %v2228 = vunpack.c.h.b16 %v2202
      %v2229 = vunpack.c.l.b16 %v2203
      %v2230 = vunpack.c.h.b16 %v2203
      %v2231 = vunpack.c.l.b16 %v2204
      %v2232 = vunpack.c.h.b16 %v2204
      %v2233 = vunpack.c.l.b16 %v2205
      %v2234 = vunpack.c.h.b16 %v2205
      %v2235 = vunpack.c.l.b16 %v2206
      %v2236 = vunpack.c.h.b16 %v2206
      %v2237 = vunpack.c.l.b16 %v2207
      %v2238 = vunpack.c.h.b16 %v2207
      %v2239 = vunpack.c.l.b16 %v2208
      %v2240 = vunpack.c.h.b16 %v2208
      %v2241 = vunpack.c.l.b16 %v2209
      %v2242 = vunpack.c.h.b16 %v2209
      %v2243 = vunpack.c.l.b16 %v2210
      %v2244 = vunpack.c.h.b16 %v2210
      %v2245 = vunpack.c.l.b16 %v2211
      %v2246 = vunpack.c.h.b16 %v2211
      %v2247 = vunpack.c.l.b16 %v2212
      %v2248 = vunpack.c.h.b16 %v2212
      %v2249 = vpack.c.b16 %v2227, %v2225
      %v2250 = vpack.c.b16 %v2228, %v2226
      %v2251 = vpack.c.b16 %v2231, %v2229
      %v2252 = vpack.c.b16 %v2232, %v2230
      %v2253 = vpack.c.b16 %v2235, %v2233
      %v2254 = vpack.c.b16 %v2236, %v2234
      %v2255 = vpack.c.b16 %v2239, %v2237
      %v2256 = vpack.c.b16 %v2240, %v2238
      %v2257 = vpack.c.b16 %v2243, %v2241
      %v2258 = vpack.c.b16 %v2244, %v2242
      %v2259 = vpack.c.b16 %v2247, %v2245
      %v2260 = vpack.c.b16 %v2248, %v2246
      %v2274 = vsel %vm658, %v2184, 0
      %v2277 = vsel %vm658, %v2185, 0
      %v2280 = vsel %vm658, %v2186, 0
      %v2283 = vsel %vm658, %v2187, 0
      %v2286 = vsel %vm658, %v2188, 0
      %v2289 = vsel %vm658, %v2189, 0
      %v2292 = vsel %vm658, %v2190, 0
      %v2295 = vsel %vm658, %v2191, 0
      %v2298 = vsel %vm658, %v2192, 0
      %v2301 = vsel %vm658, %v2193, 0
      %v2304 = vsel %vm658, %v2194, 0
      %v2307 = vsel %vm658, %v2195, 0
      %v2310 = vsel %vm658, %v2196, 0
      %v2313 = vsel %vm658, %v2197, 0
      %v2316 = vsel %vm658, %v2198, 0
      %v2319 = vsel %vm658, %v2199, 0
      %2321 = vmatprep.subr.bf16.mxu0 %v2250
      %2322 = vmatpush1.bf16.msra.mxu0 %v2249
      %2323 = vmatprep.subr.bf16.mxu0 %v2252
      %2324 = vmatpush1.bf16.msra.mxu0 %v2251
      %2325 = vmatprep.subr.bf16.mxu0 %v2254
      %2326 = vmatpush1.bf16.msra.mxu0 %v2253
      %2327 = vmatprep.subr.bf16.mxu0 %v2256
      %2328 = vmatpush1.bf16.msra.mxu0 %v2255
      %2329 = vmatprep.subr.bf16.mxu0 %v2258
      %2330 = vmatpush1.bf16.msra.mxu0 %v2257
      %2331 = vmatprep.subr.bf16.mxu0 %v2260
      %2332 = vmatpush1.bf16.msra.mxu0 %v2259
      %2333 = vmatprep.subr.bf16.mxu0 0
      %2334 = vmatpush1.bf16.msra.mxu0 0
      %2335 = vmatprep.subr.bf16.mxu0 0
      %2336 = vmatpush1.bf16.msra.mxu0 0
      %2337 = vmatprep.subr.bf16.mxu0 0
      %2338 = vmatpush1.bf16.msra.mxu0 0
      %2339 = vmatprep.subr.bf16.mxu0 0
      %2340 = vmatpush1.bf16.msra.mxu0 0
      %2341 = vmatprep.subr.bf16.mxu0 0
      %2342 = vmatpush1.bf16.msra.mxu0 0
      %2343 = vmatprep.subr.bf16.mxu0 0
      %2344 = vmatpush1.bf16.msra.mxu0 0
      %2345 = vmatprep.subr.bf16.mxu0 0
      %2346 = vmatpush1.bf16.msra.mxu0 0
      %2347 = vmatprep.subr.bf16.mxu0 0
      %2348 = vmatpush1.bf16.msra.mxu0 0
      %2349 = vmatprep.subr.bf16.mxu0 0
      %2350 = vmatpush1.bf16.msra.mxu0 0
      %2351 = vmatprep.subr.bf16.mxu0 0
      %2352 = vmatpush1.bf16.msra.mxu0 0
      %2353 = vmatprep.mubr.bf16.mxu0 0
      %2354 = vmatmul.mubr.bf16.gmra.mrb[0].mxu0 %v2274
      %v2355 = vpop.f32.mrb[0].mxu0
      %v2356 = vadd.f32 0.0, %v2355
      %v2357 = vpop.f32.mrb[0].mxu0
      %v2358 = vadd.f32 0.0, %v2357
      %v2359 = vpop.f32.mrb[0].mxu0
      %v2360 = vadd.f32 0.0, %v2359
      %v2361 = vpop.f32.mrb[0].mxu0
      %v2362 = vadd.f32 0.0, %v2361
      %2363 = vmatprep.mubr.bf16.mxu0 0
      %2364 = vmatmul.mubr.bf16.gmra.mrb[0].mxu0 %v2277
      %v2365 = vpop.f32.mrb[0].mxu0
      %v2366 = vadd.f32 0.0, %v2365
      %v2367 = vpop.f32.mrb[0].mxu0
      %v2368 = vadd.f32 0.0, %v2367
      %v2369 = vpop.f32.mrb[0].mxu0
      %v2370 = vadd.f32 0.0, %v2369
      %v2371 = vpop.f32.mrb[0].mxu0
      %v2372 = vadd.f32 0.0, %v2371
      %2373 = vmatprep.mubr.bf16.mxu0 0
      %2374 = vmatmul.mubr.bf16.gmra.mrb[0].mxu0 %v2280
      %v2375 = vpop.f32.mrb[0].mxu0
      %v2376 = vadd.f32 0.0, %v2375
      %v2377 = vpop.f32.mrb[0].mxu0
      %v2378 = vadd.f32 0.0, %v2377
      %v2379 = vpop.f32.mrb[0].mxu0
      %v2380 = vadd.f32 0.0, %v2379
      %v2381 = vpop.f32.mrb[0].mxu0
      %v2382 = vadd.f32 0.0, %v2381
      %2383 = vmatprep.mubr.bf16.mxu0 0
      %2384 = vmatmul.mubr.bf16.gmra.mrb[0].mxu0 %v2283
      %v2385 = vpop.f32.mrb[0].mxu0
      %v2386 = vadd.f32 0.0, %v2385
      %v2387 = vpop.f32.mrb[0].mxu0
      %v2388 = vadd.f32 0.0, %v2387
      %v2389 = vpop.f32.mrb[0].mxu0
      %v2390 = vadd.f32 0.0, %v2389
      %v2391 = vpop.f32.mrb[0].mxu0
      %v2392 = vadd.f32 0.0, %v2391
      %2393 = vmatprep.mubr.bf16.mxu0 0
      %2394 = vmatmul.mubr.bf16.gmra.mrb[0].mxu0 %v2286
      %v2395 = vpop.f32.mrb[0].mxu0
      %v2396 = vadd.f32 0.0, %v2395
      %v2397 = vpop.f32.mrb[0].mxu0
      %v2398 = vadd.f32 0.0, %v2397
      %v2399 = vpop.f32.mrb[0].mxu0
      %v2400 = vadd.f32 0.0, %v2399
      %v2401 = vpop.f32.mrb[0].mxu0
      %v2402 = vadd.f32 0.0, %v2401
      %2403 = vmatprep.mubr.bf16.mxu0 0
      %2404 = vmatmul.mubr.bf16.gmra.mrb[0].mxu0 %v2289
      %v2405 = vpop.f32.mrb[0].mxu0
      %v2406 = vadd.f32 0.0, %v2405
      %v2407 = vpop.f32.mrb[0].mxu0
      %v2408 = vadd.f32 0.0, %v2407
      %v2409 = vpop.f32.mrb[0].mxu0
      %v2410 = vadd.f32 0.0, %v2409
      %v2411 = vpop.f32.mrb[0].mxu0
      %v2412 = vadd.f32 0.0, %v2411
      %2413 = vmatprep.mubr.bf16.mxu0 0
      %2414 = vmatmul.mubr.bf16.gmra.mrb[0].mxu0 %v2292
      %v2415 = vpop.f32.mrb[0].mxu0
      %v2416 = vadd.f32 0.0, %v2415
      %v2417 = vpop.f32.mrb[0].mxu0
      %v2418 = vadd.f32 0.0, %v2417
      %v2419 = vpop.f32.mrb[0].mxu0
      %v2420 = vadd.f32 0.0, %v2419
      %v2421 = vpop.f32.mrb[0].mxu0
      %v2422 = vadd.f32 0.0, %v2421
      %2423 = vmatprep.mubr.bf16.mxu0 0
      %2424 = vmatmul.mubr.bf16.gmra.mrb[0].mxu0 %v2295
      %v2425 = vpop.f32.mrb[0].mxu0
      %v2426 = vadd.f32 0.0, %v2425
      %v2427 = vpop.f32.mrb[0].mxu0
      %v2428 = vadd.f32 0.0, %v2427
      %v2429 = vpop.f32.mrb[0].mxu0
      %v2430 = vadd.f32 0.0, %v2429
      %v2431 = vpop.f32.mrb[0].mxu0
      %v2432 = vadd.f32 0.0, %v2431
      %2433 = vmatprep.mubr.bf16.mxu0 0
      %2434 = vmatmul.mubr.bf16.gmra.mrb[0].mxu0 %v2298
      %v2435 = vpop.f32.mrb[0].mxu0
      %v2436 = vadd.f32 0.0, %v2435
      %v2437 = vpop.f32.mrb[0].mxu0
      %v2438 = vadd.f32 0.0, %v2437
      %v2439 = vpop.f32.mrb[0].mxu0
      %v2440 = vadd.f32 0.0, %v2439
      %v2441 = vpop.f32.mrb[0].mxu0
      %v2442 = vadd.f32 0.0, %v2441
      %2443 = vmatprep.mubr.bf16.mxu0 0
      %2444 = vmatmul.mubr.bf16.gmra.mrb[0].mxu0 %v2301
      %v2445 = vpop.f32.mrb[0].mxu0
      %v2446 = vadd.f32 0.0, %v2445
      %v2447 = vpop.f32.mrb[0].mxu0
      %v2448 = vadd.f32 0.0, %v2447
      %v2449 = vpop.f32.mrb[0].mxu0
      %v2450 = vadd.f32 0.0, %v2449
      %v2451 = vpop.f32.mrb[0].mxu0
      %v2452 = vadd.f32 0.0, %v2451
      %2453 = vmatprep.mubr.bf16.mxu0 0
      %2454 = vmatmul.mubr.bf16.gmra.mrb[0].mxu0 %v2304
      %v2455 = vpop.f32.mrb[0].mxu0
      %v2456 = vadd.f32 0.0, %v2455
      %v2457 = vpop.f32.mrb[0].mxu0
      %v2458 = vadd.f32 0.0, %v2457
      %v2459 = vpop.f32.mrb[0].mxu0
      %v2460 = vadd.f32 0.0, %v2459
      %v2461 = vpop.f32.mrb[0].mxu0
      %v2462 = vadd.f32 0.0, %v2461
      %2463 = vmatprep.mubr.bf16.mxu0 0
      %2464 = vmatmul.mubr.bf16.gmra.mrb[0].mxu0 %v2307
      %v2465 = vpop.f32.mrb[0].mxu0
      %v2466 = vadd.f32 0.0, %v2465
      %v2467 = vpop.f32.mrb[0].mxu0
      %v2468 = vadd.f32 0.0, %v2467
      %v2469 = vpop.f32.mrb[0].mxu0
      %v2470 = vadd.f32 0.0, %v2469
      %v2471 = vpop.f32.mrb[0].mxu0
      %v2472 = vadd.f32 0.0, %v2471
      %2473 = vmatprep.mubr.bf16.mxu0 0
      %2474 = vmatmul.mubr.bf16.gmra.mrb[0].mxu0 %v2310
      %v2475 = vpop.f32.mrb[0].mxu0
      %v2476 = vadd.f32 0.0, %v2475
      %v2477 = vpop.f32.mrb[0].mxu0
      %v2478 = vadd.f32 0.0, %v2477
      %v2479 = vpop.f32.mrb[0].mxu0
      %v2480 = vadd.f32 0.0, %v2479
      %v2481 = vpop.f32.mrb[0].mxu0
      %v2482 = vadd.f32 0.0, %v2481
      %2483 = vmatprep.mubr.bf16.mxu0 0
      %2484 = vmatmul.mubr.bf16.gmra.mrb[0].mxu0 %v2313
      %v2485 = vpop.f32.mrb[0].mxu0
      %v2486 = vadd.f32 0.0, %v2485
      %v2487 = vpop.f32.mrb[0].mxu0
      %v2488 = vadd.f32 0.0, %v2487
      %v2489 = vpop.f32.mrb[0].mxu0
      %v2490 = vadd.f32 0.0, %v2489
      %v2491 = vpop.f32.mrb[0].mxu0
      %v2492 = vadd.f32 0.0, %v2491
      %2493 = vmatprep.mubr.bf16.mxu0 0
      %2494 = vmatmul.mubr.bf16.gmra.mrb[0].mxu0 %v2316
      %v2495 = vpop.f32.mrb[0].mxu0
      %v2496 = vadd.f32 0.0, %v2495
      %v2497 = vpop.f32.mrb[0].mxu0
      %v2498 = vadd.f32 0.0, %v2497
      %v2499 = vpop.f32.mrb[0].mxu0
      %v2500 = vadd.f32 0.0, %v2499
      %v2501 = vpop.f32.mrb[0].mxu0
      %v2502 = vadd.f32 0.0, %v2501
      %2503 = vmatprep.mubr.bf16.mxu0 0
      %2504 = vmatmul.mubr.bf16.gmra.mrb[0].mxu0 %v2319
      %v2505 = vpop.f32.mrb[0].mxu0
      %v2506 = vadd.f32 0.0, %v2505
      %v2507 = vpop.f32.mrb[0].mxu0
      %v2508 = vadd.f32 0.0, %v2507
      %v2509 = vpop.f32.mrb[0].mxu0
      %v2510 = vadd.f32 0.0, %v2509
      %v2511 = vpop.f32.mrb[0].mxu0
      %v2512 = vadd.f32 0.0, %v2511
      %2513 = vdwg.mxu0
      %v2514 = vadd.f32 %v2055, %v2356
      %v2515 = vadd.f32 %v2056, %v2358
      %v2516 = vadd.f32 %v2057, %v2360
      %v2517 = vadd.f32 %v2058, %v2362
      %v2518 = vadd.f32 %v2059, %v2366
      %v2519 = vadd.f32 %v2060, %v2368
      %v2520 = vadd.f32 %v2061, %v2370
      %v2521 = vadd.f32 %v2062, %v2372
      %v2522 = vadd.f32 %v2063, %v2376
      %v2523 = vadd.f32 %v2064, %v2378
      %v2524 = vadd.f32 %v2065, %v2380
      %v2525 = vadd.f32 %v2066, %v2382
      %v2526 = vadd.f32 %v2067, %v2386
      %v2527 = vadd.f32 %v2068, %v2388
      %v2528 = vadd.f32 %v2069, %v2390
      %v2529 = vadd.f32 %v2070, %v2392
      %v2530 = vadd.f32 %v2071, %v2396
      %v2531 = vadd.f32 %v2072, %v2398
      %v2532 = vadd.f32 %v2073, %v2400
      %v2533 = vadd.f32 %v2074, %v2402
      %v2534 = vadd.f32 %v2075, %v2406
      %v2535 = vadd.f32 %v2076, %v2408
      %v2536 = vadd.f32 %v2077, %v2410
      %v2537 = vadd.f32 %v2078, %v2412
      %v2538 = vadd.f32 %v2079, %v2416
      %v2539 = vadd.f32 %v2080, %v2418
      %v2540 = vadd.f32 %v2081, %v2420
      %v2541 = vadd.f32 %v2082, %v2422
      %v2542 = vadd.f32 %v2083, %v2426
      %v2543 = vadd.f32 %v2084, %v2428
      %v2544 = vadd.f32 %v2085, %v2430
      %v2545 = vadd.f32 %v2086, %v2432
      %v2546 = vadd.f32 %v2087, %v2436
      %v2547 = vadd.f32 %v2088, %v2438
      %v2548 = vadd.f32 %v2089, %v2440
      %v2549 = vadd.f32 %v2090, %v2442
      %v2550 = vadd.f32 %v2091, %v2446
      %v2551 = vadd.f32 %v2092, %v2448
      %v2552 = vadd.f32 %v2093, %v2450
      %v2553 = vadd.f32 %v2094, %v2452
      %v2554 = vadd.f32 %v2095, %v2456
      %v2555 = vadd.f32 %v2096, %v2458
      %v2556 = vadd.f32 %v2097, %v2460
      %v2557 = vadd.f32 %v2098, %v2462
      %v2558 = vadd.f32 %v2099, %v2466
      %v2559 = vadd.f32 %v2100, %v2468
      %v2560 = vadd.f32 %v2101, %v2470
      %v2561 = vadd.f32 %v2102, %v2472
      %v2562 = vadd.f32 %v2103, %v2476
      %v2563 = vadd.f32 %v2104, %v2478
      %v2564 = vadd.f32 %v2105, %v2480
      %v2565 = vadd.f32 %v2106, %v2482
      %v2566 = vadd.f32 %v2107, %v2486
      %v2567 = vadd.f32 %v2108, %v2488
      %v2568 = vadd.f32 %v2109, %v2490
      %v2569 = vadd.f32 %v2110, %v2492
      %v2570 = vadd.f32 %v2111, %v2496
      %v2571 = vadd.f32 %v2112, %v2498
      %v2572 = vadd.f32 %v2113, %v2500
      %v2573 = vadd.f32 %v2114, %v2502
      %v2574 = vadd.f32 %v2115, %v2506
      %v2575 = vadd.f32 %v2116, %v2508
      %v2576 = vadd.f32 %v2117, %v2510
      %v2577 = vadd.f32 %v2118, %v2512
      %v2578 = vld [vmem:[%s12] sm:$0x3]
      %v2580 = vlaneseq
      %v2581 = vshrl.u32 %v2580, 7
      %v2582 = vsub.s32 0, %v2581
      %v2583 = vrot.slane %v2578, %v2582
      %v2584 = vlaneseq
      %v2585 = vshrl.u32 %v2584, 7
      %v2586 = vsub.s32 1, %v2585
      %v2587 = vrot.slane %v2578, %v2586
      %v2590 = vadd.f32 %v2514, %v2583
      %v2591 = vadd.f32 %v2515, %v2587
      %v2592 = vadd.f32 %v2516, %v2583
      %v2593 = vadd.f32 %v2517, %v2587
      %v2594 = vadd.f32 %v2518, %v2583
      %v2595 = vadd.f32 %v2519, %v2587
      %v2596 = vadd.f32 %v2520, %v2583
      %v2597 = vadd.f32 %v2521, %v2587
      %v2598 = vadd.f32 %v2522, %v2583
      %v2599 = vadd.f32 %v2523, %v2587
      %v2600 = vadd.f32 %v2524, %v2583
      %v2601 = vadd.f32 %v2525, %v2587
      %v2602 = vadd.f32 %v2526, %v2583
      %v2603 = vadd.f32 %v2527, %v2587
      %v2604 = vadd.f32 %v2528, %v2583
      %v2605 = vadd.f32 %v2529, %v2587
      %v2606 = vadd.f32 %v2530, %v2583
      %v2607 = vadd.f32 %v2531, %v2587
      %v2608 = vadd.f32 %v2532, %v2583
      %v2609 = vadd.f32 %v2533, %v2587
      %v2610 = vadd.f32 %v2534, %v2583
      %v2611 = vadd.f32 %v2535, %v2587
      %v2612 = vadd.f32 %v2536, %v2583
      %v2613 = vadd.f32 %v2537, %v2587
      %v2614 = vadd.f32 %v2538, %v2583
      %v2615 = vadd.f32 %v2539, %v2587
      %v2616 = vadd.f32 %v2540, %v2583
      %v2617 = vadd.f32 %v2541, %v2587
      %v2618 = vadd.f32 %v2542, %v2583
      %v2619 = vadd.f32 %v2543, %v2587
      %v2620 = vadd.f32 %v2544, %v2583
      %v2621 = vadd.f32 %v2545, %v2587
      %v2622 = vadd.f32 %v2546, %v2583
      %v2623 = vadd.f32 %v2547, %v2587
      %v2624 = vadd.f32 %v2548, %v2583
      %v2625 = vadd.f32 %v2549, %v2587
      %v2626 = vadd.f32 %v2550, %v2583
      %v2627 = vadd.f32 %v2551, %v2587
      %v2628 = vadd.f32 %v2552, %v2583
      %v2629 = vadd.f32 %v2553, %v2587
      %v2630 = vadd.f32 %v2554, %v2583
      %v2631 = vadd.f32 %v2555, %v2587
      %v2632 = vadd.f32 %v2556, %v2583
      %v2633 = vadd.f32 %v2557, %v2587
      %v2634 = vadd.f32 %v2558, %v2583
      %v2635 = vadd.f32 %v2559, %v2587
      %v2636 = vadd.f32 %v2560, %v2583
      %v2637 = vadd.f32 %v2561, %v2587
      %v2638 = vadd.f32 %v2562, %v2583
      %v2639 = vadd.f32 %v2563, %v2587
      %v2640 = vadd.f32 %v2564, %v2583
      %v2641 = vadd.f32 %v2565, %v2587
      %v2642 = vadd.f32 %v2566, %v2583
      %v2643 = vadd.f32 %v2567, %v2587
      %v2644 = vadd.f32 %v2568, %v2583
      %v2645 = vadd.f32 %v2569, %v2587
      %v2646 = vadd.f32 %v2570, %v2583
      %v2647 = vadd.f32 %v2571, %v2587
      %v2648 = vadd.f32 %v2572, %v2583
      %v2649 = vadd.f32 %v2573, %v2587
      %v2650 = vadd.f32 %v2574, %v2583
      %v2651 = vadd.f32 %v2575, %v2587
      %v2652 = vadd.f32 %v2576, %v2583
      %v2653 = vadd.f32 %v2577, %v2587
      %v2654 = vmax.f32 %v2590, 0.0
      %v2655 = vmax.f32 %v2591, 0.0
      %v2656 = vmax.f32 %v2592, 0.0
      %v2657 = vmax.f32 %v2593, 0.0
      %v2658 = vmax.f32 %v2594, 0.0
      %v2659 = vmax.f32 %v2595, 0.0
      %v2660 = vmax.f32 %v2596, 0.0
      %v2661 = vmax.f32 %v2597, 0.0
      %v2662 = vmax.f32 %v2598, 0.0
      %v2663 = vmax.f32 %v2599, 0.0
      %v2664 = vmax.f32 %v2600, 0.0
      %v2665 = vmax.f32 %v2601, 0.0
      %v2666 = vmax.f32 %v2602, 0.0
      %v2667 = vmax.f32 %v2603, 0.0
      %v2668 = vmax.f32 %v2604, 0.0
      %v2669 = vmax.f32 %v2605, 0.0
      %v2670 = vmax.f32 %v2606, 0.0
      %v2671 = vmax.f32 %v2607, 0.0
      %v2672 = vmax.f32 %v2608, 0.0
      %v2673 = vmax.f32 %v2609, 0.0
      %v2674 = vmax.f32 %v2610, 0.0
      %v2675 = vmax.f32 %v2611, 0.0
      %v2676 = vmax.f32 %v2612, 0.0
      %v2677 = vmax.f32 %v2613, 0.0
      %v2678 = vmax.f32 %v2614, 0.0
      %v2679 = vmax.f32 %v2615, 0.0
      %v2680 = vmax.f32 %v2616, 0.0
      %v2681 = vmax.f32 %v2617, 0.0
      %v2682 = vmax.f32 %v2618, 0.0
      %v2683 = vmax.f32 %v2619, 0.0
      %v2684 = vmax.f32 %v2620, 0.0
      %v2685 = vmax.f32 %v2621, 0.0
      %v2686 = vmax.f32 %v2622, 0.0
      %v2687 = vmax.f32 %v2623, 0.0
      %v2688 = vmax.f32 %v2624, 0.0
      %v2689 = vmax.f32 %v2625, 0.0
      %v2690 = vmax.f32 %v2626, 0.0
      %v2691 = vmax.f32 %v2627, 0.0
      %v2692 = vmax.f32 %v2628, 0.0
      %v2693 = vmax.f32 %v2629, 0.0
      %v2694 = vmax.f32 %v2630, 0.0
      %v2695 = vmax.f32 %v2631, 0.0
      %v2696 = vmax.f32 %v2632, 0.0
      %v2697 = vmax.f32 %v2633, 0.0
      %v2698 = vmax.f32 %v2634, 0.0
      %v2699 = vmax.f32 %v2635, 0.0
      %v2700 = vmax.f32 %v2636, 0.0
      %v2701 = vmax.f32 %v2637, 0.0
      %v2702 = vmax.f32 %v2638, 0.0
      %v2703 = vmax.f32 %v2639, 0.0
      %v2704 = vmax.f32 %v2640, 0.0
      %v2705 = vmax.f32 %v2641, 0.0
      %v2706 = vmax.f32 %v2642, 0.0
      %v2707 = vmax.f32 %v2643, 0.0
      %v2708 = vmax.f32 %v2644, 0.0
      %v2709 = vmax.f32 %v2645, 0.0
      %v2710 = vmax.f32 %v2646, 0.0
      %v2711 = vmax.f32 %v2647, 0.0
      %v2712 = vmax.f32 %v2648, 0.0
      %v2713 = vmax.f32 %v2649, 0.0
      %v2714 = vmax.f32 %v2650, 0.0
      %v2715 = vmax.f32 %v2651, 0.0
      %v2716 = vmax.f32 %v2652, 0.0
      %v2717 = vmax.f32 %v2653, 0.0
      %v2718 = vpack.c.bf16 %v2656, %v2654
      %v2719 = vpack.c.bf16 %v2657, %v2655
      %v2720 = vpack.c.bf16 %v2660, %v2658
      %v2721 = vpack.c.bf16 %v2661, %v2659
      %v2722 = vpack.c.bf16 %v2664, %v2662
      %v2723 = vpack.c.bf16 %v2665, %v2663
      %v2724 = vpack.c.bf16 %v2668, %v2666
      %v2725 = vpack.c.bf16 %v2669, %v2667
      %v2726 = vpack.c.bf16 %v2672, %v2670
      %v2727 = vpack.c.bf16 %v2673, %v2671
      %v2728 = vpack.c.bf16 %v2676, %v2674
      %v2729 = vpack.c.bf16 %v2677, %v2675
      %v2730 = vpack.c.bf16 %v2680, %v2678
      %v2731 = vpack.c.bf16 %v2681, %v2679
      %v2732 = vpack.c.bf16 %v2684, %v2682
      %v2733 = vpack.c.bf16 %v2685, %v2683
      %v2734 = vpack.c.bf16 %v2688, %v2686
      %v2735 = vpack.c.bf16 %v2689, %v2687
      %v2736 = vpack.c.bf16 %v2692, %v2690
      %v2737 = vpack.c.bf16 %v2693, %v2691
      %v2738 = vpack.c.bf16 %v2696, %v2694
      %v2739 = vpack.c.bf16 %v2697, %v2695
      %v2740 = vpack.c.bf16 %v2700, %v2698
      %v2741 = vpack.c.bf16 %v2701, %v2699
      %v2742 = vpack.c.bf16 %v2704, %v2702
      %v2743 = vpack.c.bf16 %v2705, %v2703
      %v2744 = vpack.c.bf16 %v2708, %v2706
      %v2745 = vpack.c.bf16 %v2709, %v2707
      %v2746 = vpack.c.bf16 %v2712, %v2710
      %v2747 = vpack.c.bf16 %v2713, %v2711
      %v2748 = vpack.c.bf16 %v2716, %v2714
      %v2749 = vpack.c.bf16 %v2717, %v2715
      %v2750 = vld [vmem:[%s2] sm:$0xf]
      %v2751 = vld [vmem:[%s2 + $0x4] sm:$0xf]
      %v2752 = vld [vmem:[%s2 + $0x8] sm:$0xf]
      %v2753 = vld [vmem:[%s2 + $0xc] sm:$0xf]
      %v2754 = vld [vmem:[%s2 + $0x10] sm:$0xf]
      %v2755 = vld [vmem:[%s2 + $0x14] sm:$0xf]
      %v2756 = vld [vmem:[%s2 + $0x18] sm:$0xf]
      %v2757 = vld [vmem:[%s2 + $0x1c] sm:$0xf]
      %v2758 = vld [vmem:[%s2 + $0x20] sm:$0xf]
      %v2759 = vld [vmem:[%s2 + $0x24] sm:$0xf]
      %v2760 = vld [vmem:[%s2 + $0x28] sm:$0xf]
      %v2761 = vld [vmem:[%s2 + $0x2c] sm:$0xf]
      %v2762 = vld [vmem:[%s2 + $0x30] sm:$0xf]
      %v2763 = vld [vmem:[%s2 + $0x34] sm:$0xf]
      %v2764 = vld [vmem:[%s2 + $0x38] sm:$0xf]
      %v2765 = vld [vmem:[%s2 + $0x3c] sm:$0xf]
      %v2766 = vld [vmem:[%s2 + $0x40] sm:$0xf]
      %v2767 = vld [vmem:[%s2 + $0x44] sm:$0xf]
      %v2768 = vld [vmem:[%s2 + $0x48] sm:$0xf]
      %v2769 = vld [vmem:[%s2 + $0x4c] sm:$0xf]
      %v2770 = vld [vmem:[%s2 + $0x50] sm:$0xf]
      %v2792 = vunpack.c.l.b16 %v2750
      %v2793 = vunpack.c.l.b16 %v2751
      %v2794 = vunpack.c.l.b16 %v2752
      %v2795 = vunpack.c.l.b16 %v2753
      %v2796 = vunpack.c.l.b16 %v2754
      %v2797 = vunpack.c.l.b16 %v2755
      %v2798 = vunpack.c.l.b16 %v2756
      %v2799 = vunpack.c.l.b16 %v2757
      %v2800 = vunpack.c.l.b16 %v2758
      %v2801 = vunpack.c.l.b16 %v2759
      %v2802 = vunpack.c.l.b16 %v2760
      %v2803 = vunpack.c.l.b16 %v2761
      %v2804 = vunpack.c.l.b16 %v2762
      %v2805 = vunpack.c.l.b16 %v2763
      %v2806 = vunpack.c.l.b16 %v2764
      %v2807 = vunpack.c.l.b16 %v2765
      %v2808 = vunpack.c.l.b16 %v2766
      %v2809 = vunpack.c.l.b16 %v2767
      %v2810 = vunpack.c.l.b16 %v2768
      %v2811 = vunpack.c.l.b16 %v2769
      %v2812 = vunpack.c.l.b16 %v2770
      %v2813 = vpack.c.b16 %v2793, %v2792
      %v2814 = vpack.c.b16 %v2795, %v2794
      %v2815 = vpack.c.b16 %v2797, %v2796
      %v2816 = vpack.c.b16 %v2799, %v2798
      %v2817 = vpack.c.b16 %v2801, %v2800
      %v2818 = vpack.c.b16 %v2803, %v2802
      %v2819 = vpack.c.b16 %v2805, %v2804
      %v2820 = vpack.c.b16 %v2807, %v2806
      %v2821 = vpack.c.b16 %v2809, %v2808
      %v2822 = vpack.c.b16 %v2811, %v2810
      %v2823 = vpack.c.b16 %v2812, %v2812
      %vm2834 = vcmask 326656
      %v2836 = vsel %vm2834, %v2719, 0
      %v2839 = vsel %vm2834, %v2721, 0
      %v2842 = vsel %vm2834, %v2723, 0
      %v2845 = vsel %vm2834, %v2725, 0
      %v2848 = vsel %vm2834, %v2727, 0
      %v2851 = vsel %vm2834, %v2729, 0
      %v2854 = vsel %vm2834, %v2731, 0
      %v2857 = vsel %vm2834, %v2733, 0
      %v2860 = vsel %vm2834, %v2735, 0
      %v2863 = vsel %vm2834, %v2737, 0
      %v2866 = vsel %vm2834, %v2739, 0
      %v2869 = vsel %vm2834, %v2741, 0
      %v2872 = vsel %vm2834, %v2743, 0
      %v2875 = vsel %vm2834, %v2745, 0
      %v2878 = vsel %vm2834, %v2747, 0
      %v2881 = vsel %vm2834, %v2749, 0
      %vm2883 = vcmask 1043456
      %v2885 = vsel %vm2883, %v2823, 0
      %2887 = vmatprep.subr.bf16.mxu0 0
      %2888 = vmatpush1.bf16.msra.mxu0 %v2813
      %2889 = vmatprep.subr.bf16.mxu0 0
      %2890 = vmatpush1.bf16.msra.mxu0 %v2814
      %2891 = vmatprep.subr.bf16.mxu0 0
      %2892 = vmatpush1.bf16.msra.mxu0 %v2815
      %2893 = vmatprep.subr.bf16.mxu0 0
      %2894 = vmatpush1.bf16.msra.mxu0 %v2816
      %2895 = vmatprep.subr.bf16.mxu0 0
      %2896 = vmatpush1.bf16.msra.mxu0 %v2817
      %2897 = vmatprep.subr.bf16.mxu0 0
      %2898 = vmatpush1.bf16.msra.mxu0 %v2818
      %2899 = vmatprep.subr.bf16.mxu0 0
      %2900 = vmatpush1.bf16.msra.mxu0 %v2819
      %2901 = vmatprep.subr.bf16.mxu0 0
      %2902 = vmatpush1.bf16.msra.mxu0 %v2820
      %2903 = vmatprep.subr.bf16.mxu0 0
      %2904 = vmatpush1.bf16.msra.mxu0 %v2821
      %2905 = vmatprep.subr.bf16.mxu0 0
      %2906 = vmatpush1.bf16.msra.mxu0 %v2822
      %2907 = vmatprep.subr.bf16.mxu0 0
      %2908 = vmatpush1.bf16.msra.mxu0 %v2885
      %2909 = vmatprep.subr.bf16.mxu0 0
      %2910 = vmatpush1.bf16.msra.mxu0 0
      %2911 = vmatprep.subr.bf16.mxu0 0
      %2912 = vmatpush1.bf16.msra.mxu0 0
      %2913 = vmatprep.subr.bf16.mxu0 0
      %2914 = vmatpush1.bf16.msra.mxu0 0
      %2915 = vmatprep.subr.bf16.mxu0 0
      %2916 = vmatpush1.bf16.msra.mxu0 0
      %2917 = vmatprep.subr.bf16.mxu0 0
      %2918 = vmatpush1.bf16.msra.mxu0 0
      %2919 = vmatprep.mubr.bf16.mxu0 %v2836
      %2920 = vmatmul.mubr.bf16.gmra.mrb[0].mxu0 %v2718
      %v2921 = vpop.f32.mrb[0].mxu0
      %v2922 = vadd.f32 0.0, %v2921
      %v2923 = vpop.f32.mrb[0].mxu0
      %v2924 = vpop.f32.mrb[0].mxu0
      %v2925 = vadd.f32 0.0, %v2924
      %v2926 = vpop.f32.mrb[0].mxu0
      %2927 = vmatprep.mubr.bf16.mxu0 %v2839
      %2928 = vmatmul.mubr.bf16.gmra.mrb[0].mxu0 %v2720
      %v2929 = vpop.f32.mrb[0].mxu0
      %v2930 = vadd.f32 0.0, %v2929
      %v2931 = vpop.f32.mrb[0].mxu0
      %v2932 = vpop.f32.mrb[0].mxu0
      %v2933 = vadd.f32 0.0, %v2932
      %v2934 = vpop.f32.mrb[0].mxu0
      %2935 = vmatprep.mubr.bf16.mxu0 %v2842
      %2936 = vmatmul.mubr.bf16.gmra.mrb[0].mxu0 %v2722
      %v2937 = vpop.f32.mrb[0].mxu0
      %v2938 = vadd.f32 0.0, %v2937
      %v2939 = vpop.f32.mrb[0].mxu0
      %v2940 = vpop.f32.mrb[0].mxu0
      %v2941 = vadd.f32 0.0, %v2940
      %v2942 = vpop.f32.mrb[0].mxu0
      %2943 = vmatprep.mubr.bf16.mxu0 %v2845
      %2944 = vmatmul.mubr.bf16.gmra.mrb[0].mxu0 %v2724
      %v2945 = vpop.f32.mrb[0].mxu0
      %v2946 = vadd.f32 0.0, %v2945
      %v2947 = vpop.f32.mrb[0].mxu0
      %v2948 = vpop.f32.mrb[0].mxu0
      %v2949 = vadd.f32 0.0, %v2948
      %v2950 = vpop.f32.mrb[0].mxu0
      %2951 = vmatprep.mubr.bf16.mxu0 %v2848
      %2952 = vmatmul.mubr.bf16.gmra.mrb[0].mxu0 %v2726
      %v2953 = vpop.f32.mrb[0].mxu0
      %v2954 = vadd.f32 0.0, %v2953
      %v2955 = vpop.f32.mrb[0].mxu0
      %v2956 = vpop.f32.mrb[0].mxu0
      %v2957 = vadd.f32 0.0, %v2956
      %v2958 = vpop.f32.mrb[0].mxu0
      %2959 = vmatprep.mubr.bf16.mxu0 %v2851
      %2960 = vmatmul.mubr.bf16.gmra.mrb[0].mxu0 %v2728
      %v2961 = vpop.f32.mrb[0].mxu0
      %v2962 = vadd.f32 0.0, %v2961
      %v2963 = vpop.f32.mrb[0].mxu0
      %v2964 = vpop.f32.mrb[0].mxu0
      %v2965 = vadd.f32 0.0, %v2964
      %v2966 = vpop.f32.mrb[0].mxu0
      %2967 = vmatprep.mubr.bf16.mxu0 %v2854
      %2968 = vmatmul.mubr.bf16.gmra.mrb[0].mxu0 %v2730
      %v2969 = vpop.f32.mrb[0].mxu0
      %v2970 = vadd.f32 0.0, %v2969
      %v2971 = vpop.f32.mrb[0].mxu0
      %v2972 = vpop.f32.mrb[0].mxu0
      %v2973 = vadd.f32 0.0, %v2972
      %v2974 = vpop.f32.mrb[0].mxu0
      %2975 = vmatprep.mubr.bf16.mxu0 %v2857
      %2976 = vmatmul.mubr.bf16.gmra.mrb[0].mxu0 %v2732
      %v2977 = vpop.f32.mrb[0].mxu0
      %v2978 = vadd.f32 0.0, %v2977
      %v2979 = vpop.f32.mrb[0].mxu0
      %v2980 = vpop.f32.mrb[0].mxu0
      %v2981 = vadd.f32 0.0, %v2980
      %v2982 = vpop.f32.mrb[0].mxu0
      %2983 = vmatprep.mubr.bf16.mxu0 %v2860
      %2984 = vmatmul.mubr.bf16.gmra.mrb[0].mxu0 %v2734
      %v2985 = vpop.f32.mrb[0].mxu0
      %v2986 = vadd.f32 0.0, %v2985
      %v2987 = vpop.f32.mrb[0].mxu0
      %v2988 = vpop.f32.mrb[0].mxu0
      %v2989 = vadd.f32 0.0, %v2988
      %v2990 = vpop.f32.mrb[0].mxu0
      %2991 = vmatprep.mubr.bf16.mxu0 %v2863
      %2992 = vmatmul.mubr.bf16.gmra.mrb[0].mxu0 %v2736
      %v2993 = vpop.f32.mrb[0].mxu0
      %v2994 = vadd.f32 0.0, %v2993
      %v2995 = vpop.f32.mrb[0].mxu0
      %v2996 = vpop.f32.mrb[0].mxu0
      %v2997 = vadd.f32 0.0, %v2996
      %v2998 = vpop.f32.mrb[0].mxu0
      %2999 = vmatprep.mubr.bf16.mxu0 %v2866
      %3000 = vmatmul.mubr.bf16.gmra.mrb[0].mxu0 %v2738
      %v3001 = vpop.f32.mrb[0].mxu0
      %v3002 = vadd.f32 0.0, %v3001
      %v3003 = vpop.f32.mrb[0].mxu0
      %v3004 = vpop.f32.mrb[0].mxu0
      %v3005 = vadd.f32 0.0, %v3004
      %v3006 = vpop.f32.mrb[0].mxu0
      %3007 = vmatprep.mubr.bf16.mxu0 %v2869
      %3008 = vmatmul.mubr.bf16.gmra.mrb[0].mxu0 %v2740
      %v3009 = vpop.f32.mrb[0].mxu0
      %v3010 = vadd.f32 0.0, %v3009
      %v3011 = vpop.f32.mrb[0].mxu0
      %v3012 = vpop.f32.mrb[0].mxu0
      %v3013 = vadd.f32 0.0, %v3012
      %v3014 = vpop.f32.mrb[0].mxu0
      %3015 = vmatprep.mubr.bf16.mxu0 %v2872
      %3016 = vmatmul.mubr.bf16.gmra.mrb[0].mxu0 %v2742
      %v3017 = vpop.f32.mrb[0].mxu0
      %v3018 = vadd.f32 0.0, %v3017
      %v3019 = vpop.f32.mrb[0].mxu0
      %v3020 = vpop.f32.mrb[0].mxu0
      %v3021 = vadd.f32 0.0, %v3020
      %v3022 = vpop.f32.mrb[0].mxu0
      %3023 = vmatprep.mubr.bf16.mxu0 %v2875
      %3024 = vmatmul.mubr.bf16.gmra.mrb[0].mxu0 %v2744
      %v3025 = vpop.f32.mrb[0].mxu0
      %v3026 = vadd.f32 0.0, %v3025
      %v3027 = vpop.f32.mrb[0].mxu0
      %v3028 = vpop.f32.mrb[0].mxu0
      %v3029 = vadd.f32 0.0, %v3028
      %v3030 = vpop.f32.mrb[0].mxu0
      %3031 = vmatprep.mubr.bf16.mxu0 %v2878
      %3032 = vmatmul.mubr.bf16.gmra.mrb[0].mxu0 %v2746
      %v3033 = vpop.f32.mrb[0].mxu0
      %v3034 = vadd.f32 0.0, %v3033
      %v3035 = vpop.f32.mrb[0].mxu0
      %v3036 = vpop.f32.mrb[0].mxu0
      %v3037 = vadd.f32 0.0, %v3036
      %v3038 = vpop.f32.mrb[0].mxu0
      %3039 = vmatprep.mubr.bf16.mxu0 %v2881
      %3040 = vmatmul.mubr.bf16.gmra.mrb[0].mxu0 %v2748
      %v3041 = vpop.f32.mrb[0].mxu0
      %v3042 = vadd.f32 0.0, %v3041
      %v3043 = vpop.f32.mrb[0].mxu0
      %v3044 = vpop.f32.mrb[0].mxu0
      %v3045 = vadd.f32 0.0, %v3044
      %v3046 = vpop.f32.mrb[0].mxu0
      %3047 = vdwg.mxu0
      %s3048 = scalar_lea.vmem %s2, 84
      %v3049 = vld [vmem:[%s3048] sm:$0xf]
      %v3050 = vld [vmem:[%s3048 + $0x4] sm:$0xf]
      %v3051 = vld [vmem:[%s3048 + $0x8] sm:$0xf]
      %v3052 = vld [vmem:[%s3048 + $0xc] sm:$0xf]
      %v3053 = vld [vmem:[%s3048 + $0x10] sm:$0xf]
      %v3054 = vld [vmem:[%s3048 + $0x14] sm:$0xf]
      %v3055 = vld [vmem:[%s3048 + $0x18] sm:$0xf]
      %v3056 = vld [vmem:[%s3048 + $0x1c] sm:$0xf]
      %v3057 = vld [vmem:[%s3048 + $0x20] sm:$0xf]
      %v3058 = vld [vmem:[%s3048 + $0x24] sm:$0xf]
      %v3059 = vld [vmem:[%s3048 + $0x28] sm:$0xf]
      %v3060 = vld [vmem:[%s3048 + $0x2c] sm:$0xf]
      %v3061 = vld [vmem:[%s3048 + $0x30] sm:$0xf]
      %v3062 = vld [vmem:[%s3048 + $0x34] sm:$0xf]
      %v3063 = vld [vmem:[%s3048 + $0x38] sm:$0xf]
      %v3064 = vld [vmem:[%s3048 + $0x3c] sm:$0xf]
      %v3065 = vld [vmem:[%s3048 + $0x40] sm:$0xf]
      %v3066 = vld [vmem:[%s3048 + $0x44] sm:$0xf]
      %v3067 = vld [vmem:[%s3048 + $0x48] sm:$0xf]
      %v3068 = vld [vmem:[%s3048 + $0x4c] sm:$0xf]
      %v3069 = vld [vmem:[%s3048 + $0x50] sm:$0xf]
      %v3091 = vunpack.c.l.b16 %v3049
      %v3092 = vunpack.c.l.b16 %v3050
      %v3093 = vunpack.c.l.b16 %v3051
      %v3094 = vunpack.c.l.b16 %v3052
      %v3095 = vunpack.c.l.b16 %v3053
      %v3096 = vunpack.c.l.b16 %v3054
      %v3097 = vunpack.c.l.b16 %v3055
      %v3098 = vunpack.c.l.b16 %v3056
      %v3099 = vunpack.c.l.b16 %v3057
      %v3100 = vunpack.c.l.b16 %v3058
      %v3101 = vunpack.c.l.b16 %v3059
      %v3102 = vunpack.c.l.b16 %v3060
      %v3103 = vunpack.c.l.b16 %v3061
      %v3104 = vunpack.c.l.b16 %v3062
      %v3105 = vunpack.c.l.b16 %v3063
      %v3106 = vunpack.c.l.b16 %v3064
      %v3107 = vunpack.c.l.b16 %v3065
      %v3108 = vunpack.c.l.b16 %v3066
      %v3109 = vunpack.c.l.b16 %v3067
      %v3110 = vunpack.c.l.b16 %v3068
      %v3111 = vunpack.c.l.b16 %v3069
      %v3112 = vpack.c.b16 %v3092, %v3091
      %v3113 = vpack.c.b16 %v3094, %v3093
      %v3114 = vpack.c.b16 %v3096, %v3095
      %v3115 = vpack.c.b16 %v3098, %v3097
      %v3116 = vpack.c.b16 %v3100, %v3099
      %v3117 = vpack.c.b16 %v3102, %v3101
      %v3118 = vpack.c.b16 %v3104, %v3103
      %v3119 = vpack.c.b16 %v3106, %v3105
      %v3120 = vpack.c.b16 %v3108, %v3107
      %v3121 = vpack.c.b16 %v3110, %v3109
      %v3122 = vpack.c.b16 %v3111, %v3111
      %v3134 = vsel %vm2883, %v3122, 0
      %3136 = vmatprep.subr.bf16.mxu0 0
      %3137 = vmatpush1.bf16.msra.mxu0 %v3112
      %3138 = vmatprep.subr.bf16.mxu0 0
      %3139 = vmatpush1.bf16.msra.mxu0 %v3113
      %3140 = vmatprep.subr.bf16.mxu0 0
      %3141 = vmatpush1.bf16.msra.mxu0 %v3114
      %3142 = vmatprep.subr.bf16.mxu0 0
      %3143 = vmatpush1.bf16.msra.mxu0 %v3115
      %3144 = vmatprep.subr.bf16.mxu0 0
      %3145 = vmatpush1.bf16.msra.mxu0 %v3116
      %3146 = vmatprep.subr.bf16.mxu0 0
      %3147 = vmatpush1.bf16.msra.mxu0 %v3117
      %3148 = vmatprep.subr.bf16.mxu0 0
      %3149 = vmatpush1.bf16.msra.mxu0 %v3118
      %3150 = vmatprep.subr.bf16.mxu0 0
      %3151 = vmatpush1.bf16.msra.mxu0 %v3119
      %3152 = vmatprep.subr.bf16.mxu0 0
      %3153 = vmatpush1.bf16.msra.mxu0 %v3120
      %3154 = vmatprep.subr.bf16.mxu0 0
      %3155 = vmatpush1.bf16.msra.mxu0 %v3121
      %3156 = vmatprep.subr.bf16.mxu0 0
      %3157 = vmatpush1.bf16.msra.mxu0 %v3134
      %3158 = vmatprep.subr.bf16.mxu0 0
      %3159 = vmatpush1.bf16.msra.mxu0 0
      %3160 = vmatprep.subr.bf16.mxu0 0
      %3161 = vmatpush1.bf16.msra.mxu0 0
      %3162 = vmatprep.subr.bf16.mxu0 0
      %3163 = vmatpush1.bf16.msra.mxu0 0
      %3164 = vmatprep.subr.bf16.mxu0 0
      %3165 = vmatpush1.bf16.msra.mxu0 0
      %3166 = vmatprep.subr.bf16.mxu0 0
      %3167 = vmatpush1.bf16.msra.mxu0 0
      %3168 = vmatprep.mubr.bf16.mxu0 %v2836
      %3169 = vmatmul.mubr.bf16.gmra.mrb[0].mxu0 %v2718
      %v3170 = vpop.f32.mrb[0].mxu0
      %v3171 = vadd.f32 0.0, %v3170
      %v3172 = vpop.f32.mrb[0].mxu0
      %v3173 = vpop.f32.mrb[0].mxu0
      %v3174 = vadd.f32 0.0, %v3173
      %v3175 = vpop.f32.mrb[0].mxu0
      %3176 = vmatprep.mubr.bf16.mxu0 %v2839
      %3177 = vmatmul.mubr.bf16.gmra.mrb[0].mxu0 %v2720
      %v3178 = vpop.f32.mrb[0].mxu0
      %v3179 = vadd.f32 0.0, %v3178
      %v3180 = vpop.f32.mrb[0].mxu0
      %v3181 = vpop.f32.mrb[0].mxu0
      %v3182 = vadd.f32 0.0, %v3181
      %v3183 = vpop.f32.mrb[0].mxu0
      %3184 = vmatprep.mubr.bf16.mxu0 %v2842
      %3185 = vmatmul.mubr.bf16.gmra.mrb[0].mxu0 %v2722
      %v3186 = vpop.f32.mrb[0].mxu0
      %v3187 = vadd.f32 0.0, %v3186
      %v3188 = vpop.f32.mrb[0].mxu0
      %v3189 = vpop.f32.mrb[0].mxu0
      %v3190 = vadd.f32 0.0, %v3189
      %v3191 = vpop.f32.mrb[0].mxu0
      %3192 = vmatprep.mubr.bf16.mxu0 %v2845
      %3193 = vmatmul.mubr.bf16.gmra.mrb[0].mxu0 %v2724
      %v3194 = vpop.f32.mrb[0].mxu0
      %v3195 = vadd.f32 0.0, %v3194
      %v3196 = vpop.f32.mrb[0].mxu0
      %v3197 = vpop.f32.mrb[0].mxu0
      %v3198 = vadd.f32 0.0, %v3197
      %v3199 = vpop.f32.mrb[0].mxu0
      %3200 = vmatprep.mubr.bf16.mxu0 %v2848
      %3201 = vmatmul.mubr.bf16.gmra.mrb[0].mxu0 %v2726
      %v3202 = vpop.f32.mrb[0].mxu0
      %v3203 = vadd.f32 0.0, %v3202
      %v3204 = vpop.f32.mrb[0].mxu0
      %v3205 = vpop.f32.mrb[0].mxu0
      %v3206 = vadd.f32 0.0, %v3205
      %v3207 = vpop.f32.mrb[0].mxu0
      %3208 = vmatprep.mubr.bf16.mxu0 %v2851
      %3209 = vmatmul.mubr.bf16.gmra.mrb[0].mxu0 %v2728
      %v3210 = vpop.f32.mrb[0].mxu0
      %v3211 = vadd.f32 0.0, %v3210
      %v3212 = vpop.f32.mrb[0].mxu0
      %v3213 = vpop.f32.mrb[0].mxu0
      %v3214 = vadd.f32 0.0, %v3213
      %v3215 = vpop.f32.mrb[0].mxu0
      %3216 = vmatprep.mubr.bf16.mxu0 %v2854
      %3217 = vmatmul.mubr.bf16.gmra.mrb[0].mxu0 %v2730
      %v3218 = vpop.f32.mrb[0].mxu0
      %v3219 = vadd.f32 0.0, %v3218
      %v3220 = vpop.f32.mrb[0].mxu0
      %v3221 = vpop.f32.mrb[0].mxu0
      %v3222 = vadd.f32 0.0, %v3221
      %v3223 = vpop.f32.mrb[0].mxu0
      %3224 = vmatprep.mubr.bf16.mxu0 %v2857
      %3225 = vmatmul.mubr.bf16.gmra.mrb[0].mxu0 %v2732
      %v3226 = vpop.f32.mrb[0].mxu0
      %v3227 = vadd.f32 0.0, %v3226
      %v3228 = vpop.f32.mrb[0].mxu0
      %v3229 = vpop.f32.mrb[0].mxu0
      %v3230 = vadd.f32 0.0, %v3229
      %v3231 = vpop.f32.mrb[0].mxu0
      %3232 = vmatprep.mubr.bf16.mxu0 %v2860
      %3233 = vmatmul.mubr.bf16.gmra.mrb[0].mxu0 %v2734
      %v3234 = vpop.f32.mrb[0].mxu0
      %v3235 = vadd.f32 0.0, %v3234
      %v3236 = vpop.f32.mrb[0].mxu0
      %v3237 = vpop.f32.mrb[0].mxu0
      %v3238 = vadd.f32 0.0, %v3237
      %v3239 = vpop.f32.mrb[0].mxu0
      %3240 = vmatprep.mubr.bf16.mxu0 %v2863
      %3241 = vmatmul.mubr.bf16.gmra.mrb[0].mxu0 %v2736
      %v3242 = vpop.f32.mrb[0].mxu0
      %v3243 = vadd.f32 0.0, %v3242
      %v3244 = vpop.f32.mrb[0].mxu0
      %v3245 = vpop.f32.mrb[0].mxu0
      %v3246 = vadd.f32 0.0, %v3245
      %v3247 = vpop.f32.mrb[0].mxu0
      %3248 = vmatprep.mubr.bf16.mxu0 %v2866
      %3249 = vmatmul.mubr.bf16.gmra.mrb[0].mxu0 %v2738
      %v3250 = vpop.f32.mrb[0].mxu0
      %v3251 = vadd.f32 0.0, %v3250
      %v3252 = vpop.f32.mrb[0].mxu0
      %v3253 = vpop.f32.mrb[0].mxu0
      %v3254 = vadd.f32 0.0, %v3253
      %v3255 = vpop.f32.mrb[0].mxu0
      %3256 = vmatprep.mubr.bf16.mxu0 %v2869
      %3257 = vmatmul.mubr.bf16.gmra.mrb[0].mxu0 %v2740
      %v3258 = vpop.f32.mrb[0].mxu0
      %v3259 = vadd.f32 0.0, %v3258
      %v3260 = vpop.f32.mrb[0].mxu0
      %v3261 = vpop.f32.mrb[0].mxu0
      %v3262 = vadd.f32 0.0, %v3261
      %v3263 = vpop.f32.mrb[0].mxu0
      %3264 = vmatprep.mubr.bf16.mxu0 %v2872
      %3265 = vmatmul.mubr.bf16.gmra.mrb[0].mxu0 %v2742
      %v3266 = vpop.f32.mrb[0].mxu0
      %v3267 = vadd.f32 0.0, %v3266
      %v3268 = vpop.f32.mrb[0].mxu0
      %v3269 = vpop.f32.mrb[0].mxu0
      %v3270 = vadd.f32 0.0, %v3269
      %v3271 = vpop.f32.mrb[0].mxu0
      %3272 = vmatprep.mubr.bf16.mxu0 %v2875
      %3273 = vmatmul.mubr.bf16.gmra.mrb[0].mxu0 %v2744
      %v3274 = vpop.f32.mrb[0].mxu0
      %v3275 = vadd.f32 0.0, %v3274
      %v3276 = vpop.f32.mrb[0].mxu0
      %v3277 = vpop.f32.mrb[0].mxu0
      %v3278 = vadd.f32 0.0, %v3277
      %v3279 = vpop.f32.mrb[0].mxu0
      %3280 = vmatprep.mubr.bf16.mxu0 %v2878
      %3281 = vmatmul.mubr.bf16.gmra.mrb[0].mxu0 %v2746
      %v3282 = vpop.f32.mrb[0].mxu0
      %v3283 = vadd.f32 0.0, %v3282
      %v3284 = vpop.f32.mrb[0].mxu0
      %v3285 = vpop.f32.mrb[0].mxu0
      %v3286 = vadd.f32 0.0, %v3285
      %v3287 = vpop.f32.mrb[0].mxu0
      %3288 = vmatprep.mubr.bf16.mxu0 %v2881
      %3289 = vmatmul.mubr.bf16.gmra.mrb[0].mxu0 %v2748
      %v3290 = vpop.f32.mrb[0].mxu0
      %v3291 = vadd.f32 0.0, %v3290
      %v3292 = vpop.f32.mrb[0].mxu0
      %v3293 = vpop.f32.mrb[0].mxu0
      %v3294 = vadd.f32 0.0, %v3293
      %v3295 = vpop.f32.mrb[0].mxu0
      %3296 = vdwg.mxu0
      %v3297 = vmax.f32 %v2922, %v3171
      %v3298 = vmax.f32 %v2925, %v3174
      %v3299 = vmax.f32 %v2930, %v3179
      %v3300 = vmax.f32 %v2933, %v3182
      %v3301 = vmax.f32 %v2938, %v3187
      %v3302 = vmax.f32 %v2941, %v3190
      %v3303 = vmax.f32 %v2946, %v3195
      %v3304 = vmax.f32 %v2949, %v3198
      %v3305 = vmax.f32 %v2954, %v3203
      %v3306 = vmax.f32 %v2957, %v3206
      %v3307 = vmax.f32 %v2962, %v3211
      %v3308 = vmax.f32 %v2965, %v3214
      %v3309 = vmax.f32 %v2970, %v3219
      %v3310 = vmax.f32 %v2973, %v3222
      %v3311 = vmax.f32 %v2978, %v3227
      %v3312 = vmax.f32 %v2981, %v3230
      %v3313 = vmax.f32 %v2986, %v3235
      %v3314 = vmax.f32 %v2989, %v3238
      %v3315 = vmax.f32 %v2994, %v3243
      %v3316 = vmax.f32 %v2997, %v3246
      %v3317 = vmax.f32 %v3002, %v3251
      %v3318 = vmax.f32 %v3005, %v3254
      %v3319 = vmax.f32 %v3010, %v3259
      %v3320 = vmax.f32 %v3013, %v3262
      %v3321 = vmax.f32 %v3018, %v3267
      %v3322 = vmax.f32 %v3021, %v3270
      %v3323 = vmax.f32 %v3026, %v3275
      %v3324 = vmax.f32 %v3029, %v3278
      %v3325 = vmax.f32 %v3034, %v3283
      %v3326 = vmax.f32 %v3037, %v3286
      %v3327 = vmax.f32 %v3042, %v3291
      %v3328 = vmax.f32 %v3045, %v3294
      %v3329 = vrot.slane %v3297, 1
      %v3330 = vrot.slane %v3298, 1
      %v3331 = vrot.slane %v3299, 1
      %v3332 = vrot.slane %v3300, 1
      %v3333 = vrot.slane %v3301, 1
      %v3334 = vrot.slane %v3302, 1
      %v3335 = vrot.slane %v3303, 1
      %v3336 = vrot.slane %v3304, 1
      %v3337 = vrot.slane %v3305, 1
      %v3338 = vrot.slane %v3306, 1
      %v3339 = vrot.slane %v3307, 1
      %v3340 = vrot.slane %v3308, 1
      %v3341 = vrot.slane %v3309, 1
      %v3342 = vrot.slane %v3310, 1
      %v3343 = vrot.slane %v3311, 1
      %v3344 = vrot.slane %v3312, 1
      %v3345 = vrot.slane %v3313, 1
      %v3346 = vrot.slane %v3314, 1
      %v3347 = vrot.slane %v3315, 1
      %v3348 = vrot.slane %v3316, 1
      %v3349 = vrot.slane %v3317, 1
      %v3350 = vrot.slane %v3318, 1
      %v3351 = vrot.slane %v3319, 1
      %v3352 = vrot.slane %v3320, 1
      %v3353 = vrot.slane %v3321, 1
      %v3354 = vrot.slane %v3322, 1
      %v3355 = vrot.slane %v3323, 1
      %v3356 = vrot.slane %v3324, 1
      %v3357 = vrot.slane %v3325, 1
      %v3358 = vrot.slane %v3326, 1
      %v3359 = vrot.slane %v3327, 1
      %v3360 = vrot.slane %v3328, 1
      %v3361 = vsel %vm536, %v3359, %v3360
      %v3362 = vsel %vm536, %v3358, %v3359
      %v3363 = vsel %vm536, %v3357, %v3358
      %v3364 = vsel %vm536, %v3356, %v3357
      %v3365 = vsel %vm536, %v3355, %v3356
      %v3366 = vsel %vm536, %v3354, %v3355
      %v3367 = vsel %vm536, %v3353, %v3354
      %v3368 = vsel %vm536, %v3352, %v3353
      %v3369 = vsel %vm536, %v3351, %v3352
      %v3370 = vsel %vm536, %v3350, %v3351
      %v3371 = vsel %vm536, %v3349, %v3350
      %v3372 = vsel %vm536, %v3348, %v3349
      %v3373 = vsel %vm536, %v3347, %v3348
      %v3374 = vsel %vm536, %v3346, %v3347
      %v3375 = vsel %vm536, %v3345, %v3346
      %v3376 = vsel %vm536, %v3344, %v3345
      %v3377 = vsel %vm536, %v3343, %v3344
      %v3378 = vsel %vm536, %v3342, %v3343
      %v3379 = vsel %vm536, %v3341, %v3342
      %v3380 = vsel %vm536, %v3340, %v3341
      %v3381 = vsel %vm536, %v3339, %v3340
      %v3382 = vsel %vm536, %v3338, %v3339
      %v3383 = vsel %vm536, %v3337, %v3338
      %v3384 = vsel %vm536, %v3336, %v3337
      %v3385 = vsel %vm536, %v3335, %v3336
      %v3386 = vsel %vm536, %v3334, %v3335
      %v3387 = vsel %vm536, %v3333, %v3334
      %v3388 = vsel %vm536, %v3332, %v3333
      %v3389 = vsel %vm536, %v3331, %v3332
      %v3390 = vsel %vm536, %v3330, %v3331
      %v3391 = vsel %vm536, %v3329, %v3330
      %v3392 = vsel %vm536, %v3360, %v3329
      %v3393 = vmax.f32 %v3297, %v3391
      %v3394 = vmax.f32 %v3298, %v3390
      %v3395 = vmax.f32 %v3299, %v3389
      %v3396 = vmax.f32 %v3300, %v3388
      %v3397 = vmax.f32 %v3301, %v3387
      %v3398 = vmax.f32 %v3302, %v3386
      %v3399 = vmax.f32 %v3303, %v3385
      %v3400 = vmax.f32 %v3304, %v3384
      %v3401 = vmax.f32 %v3305, %v3383
      %v3402 = vmax.f32 %v3306, %v3382
      %v3403 = vmax.f32 %v3307, %v3381
      %v3404 = vmax.f32 %v3308, %v3380
      %v3405 = vmax.f32 %v3309, %v3379
      %v3406 = vmax.f32 %v3310, %v3378
      %v3407 = vmax.f32 %v3311, %v3377
      %v3408 = vmax.f32 %v3312, %v3376
      %v3409 = vmax.f32 %v3313, %v3375
      %v3410 = vmax.f32 %v3314, %v3374
      %v3411 = vmax.f32 %v3315, %v3373
      %v3412 = vmax.f32 %v3316, %v3372
      %v3413 = vmax.f32 %v3317, %v3371
      %v3414 = vmax.f32 %v3318, %v3370
      %v3415 = vmax.f32 %v3319, %v3369
      %v3416 = vmax.f32 %v3320, %v3368
      %v3417 = vmax.f32 %v3321, %v3367
      %v3418 = vmax.f32 %v3322, %v3366
      %v3419 = vmax.f32 %v3323, %v3365
      %v3420 = vmax.f32 %v3324, %v3364
      %v3421 = vmax.f32 %v3325, %v3363
      %v3422 = vmax.f32 %v3326, %v3362
      %v3423 = vmax.f32 %v3327, %v3361
      %v3424 = vmax.f32 %v3328, %v3392
      %v3425 = vld [vmem:[%s3] sm:$0xff]
      %v3426 = vld [vmem:[%s3 + $0x8] sm:$0xff]
      %v3427 = vld [vmem:[%s3 + $0x10] sm:$0xff]
      %v3428 = vld [vmem:[%s3 + $0x18] sm:$0xff]
      %v3429 = vld [vmem:[%s3 + $0x20] sm:$0xff]
      %v3430 = vld [vmem:[%s3 + $0x28] sm:$0xff]
      %v3431 = vld [vmem:[%s3 + $0x30] sm:$0xff]
      %v3432 = vld [vmem:[%s3 + $0x38] sm:$0xff]
      %v3433 = vld [vmem:[%s3 + $0x40] sm:$0xff]
      %v3434 = vld [vmem:[%s3 + $0x48] sm:$0xff]
      %v3435 = vld [vmem:[%s3 + $0x50] sm:$0xff]
      %v3436 = vld [vmem:[%s3 + $0x58] sm:$0xff]
      %v3437 = vld [vmem:[%s3 + $0x60] sm:$0xff]
      %v3438 = vld [vmem:[%s3 + $0x68] sm:$0xff]
      %v3439 = vpack.c.bf16 %v3394, %v3393
      %v3440 = vpack.c.bf16 %v3396, %v3395
      %v3441 = vpack.c.bf16 %v3398, %v3397
      %v3442 = vpack.c.bf16 %v3400, %v3399
      %v3443 = vpack.c.bf16 %v3402, %v3401
      %v3444 = vpack.c.bf16 %v3404, %v3403
      %v3445 = vpack.c.bf16 %v3406, %v3405
      %v3446 = vpack.c.bf16 %v3408, %v3407
      %v3447 = vpack.c.bf16 %v3410, %v3409
      %v3448 = vpack.c.bf16 %v3412, %v3411
      %v3449 = vpack.c.bf16 %v3414, %v3413
      %v3450 = vpack.c.bf16 %v3416, %v3415
      %v3451 = vpack.c.bf16 %v3418, %v3417
      %v3452 = vpack.c.bf16 %v3420, %v3419
      %v3453 = vpack.c.bf16 %v3422, %v3421
      %v3454 = vpack.c.bf16 %v3424, %v3423
      %v3469 = vunpack.c.l.b16 %v3425
      %v3470 = vunpack.c.h.b16 %v3425
      %v3471 = vunpack.c.l.b16 %v3426
      %v3472 = vunpack.c.h.b16 %v3426
      %v3473 = vunpack.c.l.b16 %v3427
      %v3474 = vunpack.c.h.b16 %v3427
      %v3475 = vunpack.c.l.b16 %v3428
      %v3476 = vunpack.c.h.b16 %v3428
      %v3477 = vunpack.c.l.b16 %v3429
      %v3478 = vunpack.c.h.b16 %v3429
      %v3479 = vunpack.c.l.b16 %v3430
      %v3480 = vunpack.c.h.b16 %v3430
      %v3481 = vunpack.c.l.b16 %v3431
      %v3482 = vunpack.c.h.b16 %v3431
      %v3483 = vunpack.c.l.b16 %v3432
      %v3484 = vunpack.c.h.b16 %v3432
      %v3485 = vunpack.c.l.b16 %v3433
      %v3486 = vunpack.c.h.b16 %v3433
      %v3487 = vunpack.c.l.b16 %v3434
      %v3488 = vunpack.c.h.b16 %v3434
      %v3489 = vunpack.c.l.b16 %v3435
      %v3490 = vunpack.c.h.b16 %v3435
      %v3491 = vunpack.c.l.b16 %v3436
      %v3492 = vunpack.c.h.b16 %v3436
      %v3493 = vunpack.c.l.b16 %v3437
      %v3494 = vunpack.c.h.b16 %v3437
      %v3495 = vunpack.c.l.b16 %v3438
      %v3496 = vunpack.c.h.b16 %v3438
      %v3497 = vpack.c.b16 %v3471, %v3469
      %v3498 = vpack.c.b16 %v3472, %v3470
      %v3499 = vpack.c.b16 %v3475, %v3473
      %v3500 = vpack.c.b16 %v3476, %v3474
      %v3501 = vpack.c.b16 %v3479, %v3477
      %v3502 = vpack.c.b16 %v3480, %v3478
      %v3503 = vpack.c.b16 %v3483, %v3481
      %v3504 = vpack.c.b16 %v3484, %v3482
      %v3505 = vpack.c.b16 %v3487, %v3485
      %v3506 = vpack.c.b16 %v3488, %v3486
      %v3507 = vpack.c.b16 %v3491, %v3489
      %v3508 = vpack.c.b16 %v3492, %v3490
      %v3509 = vpack.c.b16 %v3495, %v3493
      %v3510 = vpack.c.b16 %v3496, %v3494
      %3525 = vmatprep.subr.bf16.mxu0 0
      %3526 = vmatpush1.bf16.msra.mxu0 %v3439
      %3527 = vmatprep.subr.bf16.mxu0 0
      %3528 = vmatpush1.bf16.msra.mxu0 %v3440
      %3529 = vmatprep.subr.bf16.mxu0 0
      %3530 = vmatpush1.bf16.msra.mxu0 %v3441
      %3531 = vmatprep.subr.bf16.mxu0 0
      %3532 = vmatpush1.bf16.msra.mxu0 %v3442
      %3533 = vmatprep.subr.bf16.mxu0 0
      %3534 = vmatpush1.bf16.msra.mxu0 %v3443
      %3535 = vmatprep.subr.bf16.mxu0 0
      %3536 = vmatpush1.bf16.msra.mxu0 %v3444
      %3537 = vmatprep.subr.bf16.mxu0 0
      %3538 = vmatpush1.bf16.msra.mxu0 %v3445
      %3539 = vmatprep.subr.bf16.mxu0 0
      %3540 = vmatpush1.bf16.msra.mxu0 %v3446
      %3541 = vmatprep.subr.bf16.mxu0 0
      %3542 = vmatpush1.bf16.msra.mxu0 %v3447
      %3543 = vmatprep.subr.bf16.mxu0 0
      %3544 = vmatpush1.bf16.msra.mxu0 %v3448
      %3545 = vmatprep.subr.bf16.mxu0 0
      %3546 = vmatpush1.bf16.msra.mxu0 %v3449
      %3547 = vmatprep.subr.bf16.mxu0 0
      %3548 = vmatpush1.bf16.msra.mxu0 %v3450
      %3549 = vmatprep.subr.bf16.mxu0 0
      %3550 = vmatpush1.bf16.msra.mxu0 %v3451
      %3551 = vmatprep.subr.bf16.mxu0 0
      %3552 = vmatpush1.bf16.msra.mxu0 %v3452
      %3553 = vmatprep.subr.bf16.mxu0 0
      %3554 = vmatpush1.bf16.msra.mxu0 %v3453
      %3555 = vmatprep.subr.bf16.mxu0 0
      %3556 = vmatpush1.bf16.msra.mxu0 %v3454
      %3557 = vmatprep.mubr.bf16.mxu0 %v3498
      %3558 = vmatmul.mubr.bf16.gmra.mrb[0].mxu0 %v3497
      %v3559 = vpop.f32.mrb[0].mxu0
      %v3560 = vadd.f32 0.0, %v3559
      %v3561 = vpop.f32.mrb[0].mxu0
      %v3562 = vpop.f32.mrb[0].mxu0
      %v3563 = vadd.f32 0.0, %v3562
      %v3564 = vpop.f32.mrb[0].mxu0
      %3565 = vmatprep.mubr.bf16.mxu0 %v3500
      %3566 = vmatmul.mubr.bf16.gmra.mrb[0].mxu0 %v3499
      %v3567 = vpop.f32.mrb[0].mxu0
      %v3568 = vadd.f32 0.0, %v3567
      %v3569 = vpop.f32.mrb[0].mxu0
      %v3570 = vpop.f32.mrb[0].mxu0
      %v3571 = vadd.f32 0.0, %v3570
      %v3572 = vpop.f32.mrb[0].mxu0
      %3573 = vmatprep.mubr.bf16.mxu0 %v3502
      %3574 = vmatmul.mubr.bf16.gmra.mrb[0].mxu0 %v3501
      %v3575 = vpop.f32.mrb[0].mxu0
      %v3576 = vadd.f32 0.0, %v3575
      %v3577 = vpop.f32.mrb[0].mxu0
      %v3578 = vpop.f32.mrb[0].mxu0
      %v3579 = vadd.f32 0.0, %v3578
      %v3580 = vpop.f32.mrb[0].mxu0
      %3581 = vmatprep.mubr.bf16.mxu0 %v3504
      %3582 = vmatmul.mubr.bf16.gmra.mrb[0].mxu0 %v3503
      %v3583 = vpop.f32.mrb[0].mxu0
      %v3584 = vadd.f32 0.0, %v3583
      %v3585 = vpop.f32.mrb[0].mxu0
      %v3586 = vpop.f32.mrb[0].mxu0
      %v3587 = vadd.f32 0.0, %v3586
      %v3588 = vpop.f32.mrb[0].mxu0
      %3589 = vmatprep.mubr.bf16.mxu0 %v3506
      %3590 = vmatmul.mubr.bf16.gmra.mrb[0].mxu0 %v3505
      %v3591 = vpop.f32.mrb[0].mxu0
      %v3592 = vadd.f32 0.0, %v3591
      %v3593 = vpop.f32.mrb[0].mxu0
      %v3594 = vpop.f32.mrb[0].mxu0
      %v3595 = vadd.f32 0.0, %v3594
      %v3596 = vpop.f32.mrb[0].mxu0
      %3597 = vmatprep.mubr.bf16.mxu0 %v3508
      %3598 = vmatmul.mubr.bf16.gmra.mrb[0].mxu0 %v3507
      %v3599 = vpop.f32.mrb[0].mxu0
      %v3600 = vadd.f32 0.0, %v3599
      %v3601 = vpop.f32.mrb[0].mxu0
      %v3602 = vpop.f32.mrb[0].mxu0
      %v3603 = vadd.f32 0.0, %v3602
      %v3604 = vpop.f32.mrb[0].mxu0
      %3605 = vmatprep.mubr.bf16.mxu0 %v3510
      %3606 = vmatmul.mubr.bf16.gmra.mrb[0].mxu0 %v3509
      %v3607 = vpop.f32.mrb[0].mxu0
      %v3608 = vadd.f32 0.0, %v3607
      %v3609 = vpop.f32.mrb[0].mxu0
      %v3610 = vpop.f32.mrb[0].mxu0
      %v3611 = vadd.f32 0.0, %v3610
      %v3612 = vpop.f32.mrb[0].mxu0
      %3613 = vdwg.mxu0
      %v3614 = vpack.c.bf16 %v3563, %v3560
      %v3615 = vpack.c.bf16 %v3571, %v3568
      %v3616 = vpack.c.bf16 %v3579, %v3576
      %v3617 = vpack.c.bf16 %v3587, %v3584
      %v3618 = vpack.c.bf16 %v3595, %v3592
      %v3619 = vpack.c.bf16 %v3603, %v3600
      %v3620 = vpack.c.bf16 %v3611, %v3608
      %v3621 = vld [vmem:[%s4] sm:$0xff]
      %v3622 = vld [vmem:[%s4 + $0x8] sm:$0xff]
      %v3623 = vld [vmem:[%s4 + $0x10] sm:$0xff]
      %v3624 = vld [vmem:[%s4 + $0x18] sm:$0xff]
      %v3625 = vld [vmem:[%s4 + $0x20] sm:$0xff]
      %v3626 = vld [vmem:[%s4 + $0x28] sm:$0xff]
      %v3627 = vld [vmem:[%s4 + $0x30] sm:$0xff]
      %v3628 = vld [vmem:[%s4 + $0x38] sm:$0xff]
      %v3629 = vld [vmem:[%s4 + $0x40] sm:$0xff]
      %v3630 = vld [vmem:[%s4 + $0x48] sm:$0xff]
      %v3631 = vld [vmem:[%s4 + $0x50] sm:$0x33]
      %v3632 = vrot.slane %v3560, 1
      %v3633 = vrot.slane %v3563, 1
      %v3634 = vrot.slane %v3568, 1
      %v3635 = vrot.slane %v3571, 1
      %v3636 = vrot.slane %v3576, 1
      %v3637 = vrot.slane %v3579, 1
      %v3638 = vrot.slane %v3584, 1
      %v3639 = vrot.slane %v3587, 1
      %v3640 = vrot.slane %v3592, 1
      %v3641 = vrot.slane %v3595, 1
      %v3642 = vrot.slane %v3600, 1
      %v3643 = vrot.slane %v3603, 1
      %v3644 = vrot.slane %v3608, 1
      %v3645 = vrot.slane %v3611, 1
      %v3646 = vsel %vm536, %v3644, %v3645
      %v3647 = vsel %vm536, %v3643, %v3644
      %v3648 = vsel %vm536, %v3642, %v3643
      %v3649 = vsel %vm536, %v3641, %v3642
      %v3650 = vsel %vm536, %v3640, %v3641
      %v3651 = vsel %vm536, %v3639, %v3640
      %v3652 = vsel %vm536, %v3638, %v3639
      %v3653 = vsel %vm536, %v3637, %v3638
      %v3654 = vsel %vm536, %v3636, %v3637
      %v3655 = vsel %vm536, %v3635, %v3636
      %v3656 = vsel %vm536, %v3634, %v3635
      %v3657 = vsel %vm536, %v3633, %v3634
      %v3658 = vsel %vm536, %v3632, %v3633
      %v3659 = vsel %vm536, %v3645, %v3632
      %v3660 = vpack.c.bf16 %v3657, %v3658
      %v3661 = vpack.c.bf16 %v3655, %v3656
      %v3662 = vpack.c.bf16 %v3653, %v3654
      %v3663 = vpack.c.bf16 %v3651, %v3652
      %v3664 = vpack.c.bf16 %v3649, %v3650
      %v3665 = vpack.c.bf16 %v3647, %v3648
      %v3666 = vpack.c.bf16 %v3659, %v3646
      %s3667 = scalar_lea.vmem %s4, 88
      %v3668 = vld [vmem:[%s3667] sm:$0xff]
      %v3669 = vld [vmem:[%s3667 + $0x8] sm:$0xff]
      %v3670 = vld [vmem:[%s3667 + $0x10] sm:$0xff]
      %v3671 = vld [vmem:[%s3667 + $0x18] sm:$0xff]
      %v3672 = vld [vmem:[%s3667 + $0x20] sm:$0xff]
      %v3673 = vld [vmem:[%s3667 + $0x28] sm:$0xff]
      %v3674 = vld [vmem:[%s3667 + $0x30] sm:$0xff]
      %v3675 = vld [vmem:[%s3667 + $0x38] sm:$0xff]
      %v3676 = vld [vmem:[%s3667 + $0x40] sm:$0xff]
      %v3677 = vld [vmem:[%s3667 + $0x48] sm:$0xff]
      %v3678 = vld [vmem:[%s3667 + $0x50] sm:$0x33]
      %v3690 = vunpack.c.l.b16 %v3668
      %v3691 = vunpack.c.h.b16 %v3668
      %v3692 = vunpack.c.l.b16 %v3669
      %v3693 = vunpack.c.h.b16 %v3669
      %v3694 = vunpack.c.l.b16 %v3670
      %v3695 = vunpack.c.h.b16 %v3670
      %v3696 = vunpack.c.l.b16 %v3671
      %v3697 = vunpack.c.h.b16 %v3671
      %v3698 = vunpack.c.l.b16 %v3672
      %v3699 = vunpack.c.h.b16 %v3672
      %v3700 = vunpack.c.l.b16 %v3673
      %v3701 = vunpack.c.h.b16 %v3673
      %v3702 = vunpack.c.l.b16 %v3674
      %v3703 = vunpack.c.h.b16 %v3674
      %v3704 = vunpack.c.l.b16 %v3675
      %v3705 = vunpack.c.h.b16 %v3675
      %v3706 = vunpack.c.l.b16 %v3676
      %v3707 = vunpack.c.h.b16 %v3676
      %v3708 = vunpack.c.l.b16 %v3677
      %v3709 = vunpack.c.h.b16 %v3677
      %v3710 = vunpack.c.l.b16 %v3678
      %v3711 = vunpack.c.h.b16 %v3678
      %v3712 = vpack.c.b16 %v3692, %v3690
      %v3713 = vpack.c.b16 %v3693, %v3691
      %v3714 = vpack.c.b16 %v3696, %v3694
      %v3715 = vpack.c.b16 %v3697, %v3695
      %v3716 = vpack.c.b16 %v3700, %v3698
      %v3717 = vpack.c.b16 %v3701, %v3699
      %v3718 = vpack.c.b16 %v3704, %v3702
      %v3719 = vpack.c.b16 %v3705, %v3703
      %v3720 = vpack.c.b16 %v3708, %v3706
      %v3721 = vpack.c.b16 %v3709, %v3707
      %v3722 = vpack.c.b16 %v3710, %v3710
      %v3723 = vpack.c.b16 %v3711, %v3711
      %vm3734 = vcmask 687104
      %v3736 = vsel %vm3734, %v3660, 0
      %v3739 = vsel %vm3734, %v3661, 0
      %v3742 = vsel %vm3734, %v3662, 0
      %v3745 = vsel %vm3734, %v3663, 0
      %v3748 = vsel %vm3734, %v3664, 0
      %v3751 = vsel %vm3734, %v3665, 0
      %v3754 = vsel %vm3734, %v3666, 0
      %vm3756 = vcmask 1041408
      %v3758 = vsel %vm3756, %v3722, 0
      %v3761 = vsel %vm3756, %v3723, 0
      %3763 = vmatprep.subr.bf16.mxu0 %v3713
      %3764 = vmatpush1.bf16.msra.mxu0 %v3712
      %3765 = vmatprep.subr.bf16.mxu0 %v3715
      %3766 = vmatpush1.bf16.msra.mxu0 %v3714
      %3767 = vmatprep.subr.bf16.mxu0 %v3717
      %3768 = vmatpush1.bf16.msra.mxu0 %v3716
      %3769 = vmatprep.subr.bf16.mxu0 %v3719
      %3770 = vmatpush1.bf16.msra.mxu0 %v3718
      %3771 = vmatprep.subr.bf16.mxu0 %v3721
      %3772 = vmatpush1.bf16.msra.mxu0 %v3720
      %3773 = vmatprep.subr.bf16.mxu0 %v3761
      %3774 = vmatpush1.bf16.msra.mxu0 %v3758
      %3775 = vmatprep.subr.bf16.mxu0 0
      %3776 = vmatpush1.bf16.msra.mxu0 0
      %3777 = vmatprep.subr.bf16.mxu0 0
      %3778 = vmatpush1.bf16.msra.mxu0 0
      %3779 = vmatprep.subr.bf16.mxu0 0
      %3780 = vmatpush1.bf16.msra.mxu0 0
      %3781 = vmatprep.subr.bf16.mxu0 0
      %3782 = vmatpush1.bf16.msra.mxu0 0
      %3783 = vmatprep.subr.bf16.mxu0 0
      %3784 = vmatpush1.bf16.msra.mxu0 0
      %3785 = vmatprep.subr.bf16.mxu0 0
      %3786 = vmatpush1.bf16.msra.mxu0 0
      %3787 = vmatprep.subr.bf16.mxu0 0
      %3788 = vmatpush1.bf16.msra.mxu0 0
      %3789 = vmatprep.subr.bf16.mxu0 0
      %3790 = vmatpush1.bf16.msra.mxu0 0
      %3791 = vmatprep.subr.bf16.mxu0 0
      %3792 = vmatpush1.bf16.msra.mxu0 0
      %3793 = vmatprep.subr.bf16.mxu0 0
      %3794 = vmatpush1.bf16.msra.mxu0 0
      %3795 = vmatprep.mubr.bf16.mxu0 0
      %3796 = vmatmul.mubr.bf16.gmra.mrb[0].mxu0 %v3736
      %v3797 = vpop.f32.mrb[0].mxu0
      %v3798 = vadd.f32 0.0, %v3797
      %v3799 = vpop.f32.mrb[0].mxu0
      %v3800 = vadd.f32 0.0, %v3799
      %v3801 = vpop.f32.mrb[0].mxu0
      %v3802 = vadd.f32 0.0, %v3801
      %v3803 = vpop.f32.mrb[0].mxu0
      %v3804 = vadd.f32 0.0, %v3803
      %3805 = vmatprep.mubr.bf16.mxu0 0
      %3806 = vmatmul.mubr.bf16.gmra.mrb[0].mxu0 %v3739
      %v3807 = vpop.f32.mrb[0].mxu0
      %v3808 = vadd.f32 0.0, %v3807
      %v3809 = vpop.f32.mrb[0].mxu0
      %v3810 = vadd.f32 0.0, %v3809
      %v3811 = vpop.f32.mrb[0].mxu0
      %v3812 = vadd.f32 0.0, %v3811
      %v3813 = vpop.f32.mrb[0].mxu0
      %v3814 = vadd.f32 0.0, %v3813
      %3815 = vmatprep.mubr.bf16.mxu0 0
      %3816 = vmatmul.mubr.bf16.gmra.mrb[0].mxu0 %v3742
      %v3817 = vpop.f32.mrb[0].mxu0
      %v3818 = vadd.f32 0.0, %v3817
      %v3819 = vpop.f32.mrb[0].mxu0
      %v3820 = vadd.f32 0.0, %v3819
      %v3821 = vpop.f32.mrb[0].mxu0
      %v3822 = vadd.f32 0.0, %v3821
      %v3823 = vpop.f32.mrb[0].mxu0
      %v3824 = vadd.f32 0.0, %v3823
      %3825 = vmatprep.mubr.bf16.mxu0 0
      %3826 = vmatmul.mubr.bf16.gmra.mrb[0].mxu0 %v3745
      %v3827 = vpop.f32.mrb[0].mxu0
      %v3828 = vadd.f32 0.0, %v3827
      %v3829 = vpop.f32.mrb[0].mxu0
      %v3830 = vadd.f32 0.0, %v3829
      %v3831 = vpop.f32.mrb[0].mxu0
      %v3832 = vadd.f32 0.0, %v3831
      %v3833 = vpop.f32.mrb[0].mxu0
      %v3834 = vadd.f32 0.0, %v3833
      %3835 = vmatprep.mubr.bf16.mxu0 0
      %3836 = vmatmul.mubr.bf16.gmra.mrb[0].mxu0 %v3748
      %v3837 = vpop.f32.mrb[0].mxu0
      %v3838 = vadd.f32 0.0, %v3837
      %v3839 = vpop.f32.mrb[0].mxu0
      %v3840 = vadd.f32 0.0, %v3839
      %v3841 = vpop.f32.mrb[0].mxu0
      %v3842 = vadd.f32 0.0, %v3841
      %v3843 = vpop.f32.mrb[0].mxu0
      %v3844 = vadd.f32 0.0, %v3843
      %3845 = vmatprep.mubr.bf16.mxu0 0
      %3846 = vmatmul.mubr.bf16.gmra.mrb[0].mxu0 %v3751
      %v3847 = vpop.f32.mrb[0].mxu0
      %v3848 = vadd.f32 0.0, %v3847
      %v3849 = vpop.f32.mrb[0].mxu0
      %v3850 = vadd.f32 0.0, %v3849
      %v3851 = vpop.f32.mrb[0].mxu0
      %v3852 = vadd.f32 0.0, %v3851
      %v3853 = vpop.f32.mrb[0].mxu0
      %v3854 = vadd.f32 0.0, %v3853
      %3855 = vmatprep.mubr.bf16.mxu0 0
      %3856 = vmatmul.mubr.bf16.gmra.mrb[0].mxu0 %v3754
      %v3857 = vpop.f32.mrb[0].mxu0
      %v3858 = vadd.f32 0.0, %v3857
      %v3859 = vpop.f32.mrb[0].mxu0
      %v3860 = vadd.f32 0.0, %v3859
      %v3861 = vpop.f32.mrb[0].mxu0
      %v3862 = vadd.f32 0.0, %v3861
      %v3863 = vpop.f32.mrb[0].mxu0
      %v3864 = vadd.f32 0.0, %v3863
      %3865 = vdwg.mxu0
      %v3877 = vunpack.c.l.b16 %v3621
      %v3878 = vunpack.c.h.b16 %v3621
      %v3879 = vunpack.c.l.b16 %v3622
      %v3880 = vunpack.c.h.b16 %v3622
      %v3881 = vunpack.c.l.b16 %v3623
      %v3882 = vunpack.c.h.b16 %v3623
      %v3883 = vunpack.c.l.b16 %v3624
      %v3884 = vunpack.c.h.b16 %v3624
      %v3885 = vunpack.c.l.b16 %v3625
      %v3886 = vunpack.c.h.b16 %v3625
      %v3887 = vunpack.c.l.b16 %v3626
      %v3888 = vunpack.c.h.b16 %v3626
      %v3889 = vunpack.c.l.b16 %v3627
      %v3890 = vunpack.c.h.b16 %v3627
      %v3891 = vunpack.c.l.b16 %v3628
      %v3892 = vunpack.c.h.b16 %v3628
      %v3893 = vunpack.c.l.b16 %v3629
      %v3894 = vunpack.c.h.b16 %v3629
      %v3895 = vunpack.c.l.b16 %v3630
      %v3896 = vunpack.c.h.b16 %v3630
      %v3897 = vunpack.c.l.b16 %v3631
      %v3898 = vunpack.c.h.b16 %v3631
      %v3899 = vpack.c.b16 %v3879, %v3877
      %v3900 = vpack.c.b16 %v3880, %v3878
      %v3901 = vpack.c.b16 %v3883, %v3881
      %v3902 = vpack.c.b16 %v3884, %v3882
      %v3903 = vpack.c.b16 %v3887, %v3885
      %v3904 = vpack.c.b16 %v3888, %v3886
      %v3905 = vpack.c.b16 %v3891, %v3889
      %v3906 = vpack.c.b16 %v3892, %v3890
      %v3907 = vpack.c.b16 %v3895, %v3893
      %v3908 = vpack.c.b16 %v3896, %v3894
      %v3909 = vpack.c.b16 %v3897, %v3897
      %v3910 = vpack.c.b16 %v3898, %v3898
      %v3922 = vsel %vm3734, %v3614, 0
      %v3925 = vsel %vm3734, %v3615, 0
      %v3928 = vsel %vm3734, %v3616, 0
      %v3931 = vsel %vm3734, %v3617, 0
      %v3934 = vsel %vm3734, %v3618, 0
      %v3937 = vsel %vm3734, %v3619, 0
      %v3940 = vsel %vm3734, %v3620, 0
      %v3943 = vsel %vm3756, %v3909, 0
      %v3946 = vsel %vm3756, %v3910, 0
      %3948 = vmatprep.subr.bf16.mxu0 %v3900
      %3949 = vmatpush1.bf16.msra.mxu0 %v3899
      %3950 = vmatprep.subr.bf16.mxu0 %v3902
      %3951 = vmatpush1.bf16.msra.mxu0 %v3901
      %3952 = vmatprep.subr.bf16.mxu0 %v3904
      %3953 = vmatpush1.bf16.msra.mxu0 %v3903
      %3954 = vmatprep.subr.bf16.mxu0 %v3906
      %3955 = vmatpush1.bf16.msra.mxu0 %v3905
      %3956 = vmatprep.subr.bf16.mxu0 %v3908
      %3957 = vmatpush1.bf16.msra.mxu0 %v3907
      %3958 = vmatprep.subr.bf16.mxu0 %v3946
      %3959 = vmatpush1.bf16.msra.mxu0 %v3943
      %3960 = vmatprep.subr.bf16.mxu0 0
      %3961 = vmatpush1.bf16.msra.mxu0 0
      %3962 = vmatprep.subr.bf16.mxu0 0
      %3963 = vmatpush1.bf16.msra.mxu0 0
      %3964 = vmatprep.subr.bf16.mxu0 0
      %3965 = vmatpush1.bf16.msra.mxu0 0
      %3966 = vmatprep.subr.bf16.mxu0 0
      %3967 = vmatpush1.bf16.msra.mxu0 0
      %3968 = vmatprep.subr.bf16.mxu0 0
      %3969 = vmatpush1.bf16.msra.mxu0 0
      %3970 = vmatprep.subr.bf16.mxu0 0
      %3971 = vmatpush1.bf16.msra.mxu0 0
      %3972 = vmatprep.subr.bf16.mxu0 0
      %3973 = vmatpush1.bf16.msra.mxu0 0
      %3974 = vmatprep.subr.bf16.mxu0 0
      %3975 = vmatpush1.bf16.msra.mxu0 0
      %3976 = vmatprep.subr.bf16.mxu0 0
      %3977 = vmatpush1.bf16.msra.mxu0 0
      %3978 = vmatprep.subr.bf16.mxu0 0
      %3979 = vmatpush1.bf16.msra.mxu0 0
      %3980 = vmatprep.mubr.bf16.mxu0 0
      %3981 = vmatmul.mubr.bf16.gmra.mrb[0].mxu0 %v3922
      %v3982 = vpop.f32.mrb[0].mxu0
      %v3983 = vadd.f32 %v3798, %v3982
      %v3984 = vpop.f32.mrb[0].mxu0
      %v3985 = vadd.f32 %v3800, %v3984
      %v3986 = vpop.f32.mrb[0].mxu0
      %v3987 = vadd.f32 %v3802, %v3986
      %v3988 = vpop.f32.mrb[0].mxu0
      %v3989 = vadd.f32 %v3804, %v3988
      %3990 = vmatprep.mubr.bf16.mxu0 0
      %3991 = vmatmul.mubr.bf16.gmra.mrb[0].mxu0 %v3925
      %v3992 = vpop.f32.mrb[0].mxu0
      %v3993 = vadd.f32 %v3808, %v3992
      %v3994 = vpop.f32.mrb[0].mxu0
      %v3995 = vadd.f32 %v3810, %v3994
      %v3996 = vpop.f32.mrb[0].mxu0
      %v3997 = vadd.f32 %v3812, %v3996
      %v3998 = vpop.f32.mrb[0].mxu0
      %v3999 = vadd.f32 %v3814, %v3998
      %4000 = vmatprep.mubr.bf16.mxu0 0
      %4001 = vmatmul.mubr.bf16.gmra.mrb[0].mxu0 %v3928
      %v4002 = vpop.f32.mrb[0].mxu0
      %v4003 = vadd.f32 %v3818, %v4002
      %v4004 = vpop.f32.mrb[0].mxu0
      %v4005 = vadd.f32 %v3820, %v4004
      %v4006 = vpop.f32.mrb[0].mxu0
      %v4007 = vadd.f32 %v3822, %v4006
      %v4008 = vpop.f32.mrb[0].mxu0
      %v4009 = vadd.f32 %v3824, %v4008
      %4010 = vmatprep.mubr.bf16.mxu0 0
      %4011 = vmatmul.mubr.bf16.gmra.mrb[0].mxu0 %v3931
      %v4012 = vpop.f32.mrb[0].mxu0
      %v4013 = vadd.f32 %v3828, %v4012
      %v4014 = vpop.f32.mrb[0].mxu0
      %v4015 = vadd.f32 %v3830, %v4014
      %v4016 = vpop.f32.mrb[0].mxu0
      %v4017 = vadd.f32 %v3832, %v4016
      %v4018 = vpop.f32.mrb[0].mxu0
      %v4019 = vadd.f32 %v3834, %v4018
      %4020 = vmatprep.mubr.bf16.mxu0 0
      %4021 = vmatmul.mubr.bf16.gmra.mrb[0].mxu0 %v3934
      %v4022 = vpop.f32.mrb[0].mxu0
      %v4023 = vadd.f32 %v3838, %v4022
      %v4024 = vpop.f32.mrb[0].mxu0
      %v4025 = vadd.f32 %v3840, %v4024
      %v4026 = vpop.f32.mrb[0].mxu0
      %v4027 = vadd.f32 %v3842, %v4026
      %v4028 = vpop.f32.mrb[0].mxu0
      %v4029 = vadd.f32 %v3844, %v4028
      %4030 = vmatprep.mubr.bf16.mxu0 0
      %4031 = vmatmul.mubr.bf16.gmra.mrb[0].mxu0 %v3937
      %v4032 = vpop.f32.mrb[0].mxu0
      %v4033 = vadd.f32 %v3848, %v4032
      %v4034 = vpop.f32.mrb[0].mxu0
      %v4035 = vadd.f32 %v3850, %v4034
      %v4036 = vpop.f32.mrb[0].mxu0
      %v4037 = vadd.f32 %v3852, %v4036
      %v4038 = vpop.f32.mrb[0].mxu0
      %v4039 = vadd.f32 %v3854, %v4038
      %4040 = vmatprep.mubr.bf16.mxu0 0
      %4041 = vmatmul.mubr.bf16.gmra.mrb[0].mxu0 %v3940
      %v4042 = vpop.f32.mrb[0].mxu0
      %v4043 = vadd.f32 %v3858, %v4042
      %v4044 = vpop.f32.mrb[0].mxu0
      %v4045 = vadd.f32 %v3860, %v4044
      %v4046 = vpop.f32.mrb[0].mxu0
      %v4047 = vadd.f32 %v3862, %v4046
      %v4048 = vpop.f32.mrb[0].mxu0
      %v4049 = vadd.f32 %v3864, %v4048
      %4050 = vdwg.mxu0
      %v4051 = vrot.slane %v3560, 2
      %v4052 = vrot.slane %v3563, 2
      %v4053 = vrot.slane %v3568, 2
      %v4054 = vrot.slane %v3571, 2
      %v4055 = vrot.slane %v3576, 2
      %v4056 = vrot.slane %v3579, 2
      %v4057 = vrot.slane %v3584, 2
      %v4058 = vrot.slane %v3587, 2
      %v4059 = vrot.slane %v3592, 2
      %v4060 = vrot.slane %v3595, 2
      %v4061 = vrot.slane %v3600, 2
      %v4062 = vrot.slane %v3603, 2
      %v4063 = vrot.slane %v3608, 2
      %v4064 = vrot.slane %v3611, 2
      %v4065 = vsel %vm1233, %v4063, %v4064
      %v4066 = vsel %vm1233, %v4062, %v4063
      %v4067 = vsel %vm1233, %v4061, %v4062
      %v4068 = vsel %vm1233, %v4060, %v4061
      %v4069 = vsel %vm1233, %v4059, %v4060
      %v4070 = vsel %vm1233, %v4058, %v4059
      %v4071 = vsel %vm1233, %v4057, %v4058
      %v4072 = vsel %vm1233, %v4056, %v4057
      %v4073 = vsel %vm1233, %v4055, %v4056
      %v4074 = vsel %vm1233, %v4054, %v4055
      %v4075 = vsel %vm1233, %v4053, %v4054
      %v4076 = vsel %vm1233, %v4052, %v4053
      %v4077 = vsel %vm1233, %v4051, %v4052
      %v4078 = vsel %vm1233, %v4064, %v4051
      %v4079 = vpack.c.bf16 %v4076, %v4077
      %v4080 = vpack.c.bf16 %v4074, %v4075
      %v4081 = vpack.c.bf16 %v4072, %v4073
      %v4082 = vpack.c.bf16 %v4070, %v4071
      %v4083 = vpack.c.bf16 %v4068, %v4069
      %v4084 = vpack.c.bf16 %v4066, %v4067
      %v4085 = vpack.c.bf16 %v4078, %v4065
      %s4086 = scalar_lea.vmem %s4, 176
      %v4087 = vld [vmem:[%s4086] sm:$0xff]
      %v4088 = vld [vmem:[%s4086 + $0x8] sm:$0xff]
      %v4089 = vld [vmem:[%s4086 + $0x10] sm:$0xff]
      %v4090 = vld [vmem:[%s4086 + $0x18] sm:$0xff]
      %v4091 = vld [vmem:[%s4086 + $0x20] sm:$0xff]
      %v4092 = vld [vmem:[%s4086 + $0x28] sm:$0xff]
      %v4093 = vld [vmem:[%s4086 + $0x30] sm:$0xff]
      %v4094 = vld [vmem:[%s4086 + $0x38] sm:$0xff]
      %v4095 = vld [vmem:[%s4086 + $0x40] sm:$0xff]
      %v4096 = vld [vmem:[%s4086 + $0x48] sm:$0xff]
      %v4097 = vld [vmem:[%s4086 + $0x50] sm:$0x33]
      %v4109 = vunpack.c.l.b16 %v4087
      %v4110 = vunpack.c.h.b16 %v4087
      %v4111 = vunpack.c.l.b16 %v4088
      %v4112 = vunpack.c.h.b16 %v4088
      %v4113 = vunpack.c.l.b16 %v4089
      %v4114 = vunpack.c.h.b16 %v4089
      %v4115 = vunpack.c.l.b16 %v4090
      %v4116 = vunpack.c.h.b16 %v4090
      %v4117 = vunpack.c.l.b16 %v4091
      %v4118 = vunpack.c.h.b16 %v4091
      %v4119 = vunpack.c.l.b16 %v4092
      %v4120 = vunpack.c.h.b16 %v4092
      %v4121 = vunpack.c.l.b16 %v4093
      %v4122 = vunpack.c.h.b16 %v4093
      %v4123 = vunpack.c.l.b16 %v4094
      %v4124 = vunpack.c.h.b16 %v4094
      %v4125 = vunpack.c.l.b16 %v4095
      %v4126 = vunpack.c.h.b16 %v4095
      %v4127 = vunpack.c.l.b16 %v4096
      %v4128 = vunpack.c.h.b16 %v4096
      %v4129 = vunpack.c.l.b16 %v4097
      %v4130 = vunpack.c.h.b16 %v4097
      %v4131 = vpack.c.b16 %v4111, %v4109
      %v4132 = vpack.c.b16 %v4112, %v4110
      %v4133 = vpack.c.b16 %v4115, %v4113
      %v4134 = vpack.c.b16 %v4116, %v4114
      %v4135 = vpack.c.b16 %v4119, %v4117
      %v4136 = vpack.c.b16 %v4120, %v4118
      %v4137 = vpack.c.b16 %v4123, %v4121
      %v4138 = vpack.c.b16 %v4124, %v4122
      %v4139 = vpack.c.b16 %v4127, %v4125
      %v4140 = vpack.c.b16 %v4128, %v4126
      %v4141 = vpack.c.b16 %v4129, %v4129
      %v4142 = vpack.c.b16 %v4130, %v4130
      %v4154 = vsel %vm3734, %v4079, 0
      %v4157 = vsel %vm3734, %v4080, 0
      %v4160 = vsel %vm3734, %v4081, 0
      %v4163 = vsel %vm3734, %v4082, 0
      %v4166 = vsel %vm3734, %v4083, 0
      %v4169 = vsel %vm3734, %v4084, 0
      %v4172 = vsel %vm3734, %v4085, 0
      %v4175 = vsel %vm3756, %v4141, 0
      %v4178 = vsel %vm3756, %v4142, 0
      %4180 = vmatprep.subr.bf16.mxu0 %v4132
      %4181 = vmatpush1.bf16.msra.mxu0 %v4131
      %4182 = vmatprep.subr.bf16.mxu0 %v4134
      %4183 = vmatpush1.bf16.msra.mxu0 %v4133
      %4184 = vmatprep.subr.bf16.mxu0 %v4136
      %4185 = vmatpush1.bf16.msra.mxu0 %v4135
      %4186 = vmatprep.subr.bf16.mxu0 %v4138
      %4187 = vmatpush1.bf16.msra.mxu0 %v4137
      %4188 = vmatprep.subr.bf16.mxu0 %v4140
      %4189 = vmatpush1.bf16.msra.mxu0 %v4139
      %4190 = vmatprep.subr.bf16.mxu0 %v4178
      %4191 = vmatpush1.bf16.msra.mxu0 %v4175
      %4192 = vmatprep.subr.bf16.mxu0 0
      %4193 = vmatpush1.bf16.msra.mxu0 0
      %4194 = vmatprep.subr.bf16.mxu0 0
      %4195 = vmatpush1.bf16.msra.mxu0 0
      %4196 = vmatprep.subr.bf16.mxu0 0
      %4197 = vmatpush1.bf16.msra.mxu0 0
      %4198 = vmatprep.subr.bf16.mxu0 0
      %4199 = vmatpush1.bf16.msra.mxu0 0
      %4200 = vmatprep.subr.bf16.mxu0 0
      %4201 = vmatpush1.bf16.msra.mxu0 0
      %4202 = vmatprep.subr.bf16.mxu0 0
      %4203 = vmatpush1.bf16.msra.mxu0 0
      %4204 = vmatprep.subr.bf16.mxu0 0
      %4205 = vmatpush1.bf16.msra.mxu0 0
      %4206 = vmatprep.subr.bf16.mxu0 0
      %4207 = vmatpush1.bf16.msra.mxu0 0
      %4208 = vmatprep.subr.bf16.mxu0 0
      %4209 = vmatpush1.bf16.msra.mxu0 0
      %4210 = vmatprep.subr.bf16.mxu0 0
      %4211 = vmatpush1.bf16.msra.mxu0 0
      %4212 = vmatprep.mubr.bf16.mxu0 0
      %4213 = vmatmul.mubr.bf16.gmra.mrb[0].mxu0 %v4154
      %v4214 = vpop.f32.mrb[0].mxu0
      %v4215 = vadd.f32 0.0, %v4214
      %v4216 = vpop.f32.mrb[0].mxu0
      %v4217 = vadd.f32 0.0, %v4216
      %v4218 = vpop.f32.mrb[0].mxu0
      %v4219 = vadd.f32 0.0, %v4218
      %v4220 = vpop.f32.mrb[0].mxu0
      %v4221 = vadd.f32 0.0, %v4220
      %4222 = vmatprep.mubr.bf16.mxu0 0
      %4223 = vmatmul.mubr.bf16.gmra.mrb[0].mxu0 %v4157
      %v4224 = vpop.f32.mrb[0].mxu0
      %v4225 = vadd.f32 0.0, %v4224
      %v4226 = vpop.f32.mrb[0].mxu0
      %v4227 = vadd.f32 0.0, %v4226
      %v4228 = vpop.f32.mrb[0].mxu0
      %v4229 = vadd.f32 0.0, %v4228
      %v4230 = vpop.f32.mrb[0].mxu0
      %v4231 = vadd.f32 0.0, %v4230
      %4232 = vmatprep.mubr.bf16.mxu0 0
      %4233 = vmatmul.mubr.bf16.gmra.mrb[0].mxu0 %v4160
      %v4234 = vpop.f32.mrb[0].mxu0
      %v4235 = vadd.f32 0.0, %v4234
      %v4236 = vpop.f32.mrb[0].mxu0
      %v4237 = vadd.f32 0.0, %v4236
      %v4238 = vpop.f32.mrb[0].mxu0
      %v4239 = vadd.f32 0.0, %v4238
      %v4240 = vpop.f32.mrb[0].mxu0
      %v4241 = vadd.f32 0.0, %v4240
      %4242 = vmatprep.mubr.bf16.mxu0 0
      %4243 = vmatmul.mubr.bf16.gmra.mrb[0].mxu0 %v4163
      %v4244 = vpop.f32.mrb[0].mxu0
      %v4245 = vadd.f32 0.0, %v4244
      %v4246 = vpop.f32.mrb[0].mxu0
      %v4247 = vadd.f32 0.0, %v4246
      %v4248 = vpop.f32.mrb[0].mxu0
      %v4249 = vadd.f32 0.0, %v4248
      %v4250 = vpop.f32.mrb[0].mxu0
      %v4251 = vadd.f32 0.0, %v4250
      %4252 = vmatprep.mubr.bf16.mxu0 0
      %4253 = vmatmul.mubr.bf16.gmra.mrb[0].mxu0 %v4166
      %v4254 = vpop.f32.mrb[0].mxu0
      %v4255 = vadd.f32 0.0, %v4254
      %v4256 = vpop.f32.mrb[0].mxu0
      %v4257 = vadd.f32 0.0, %v4256
      %v4258 = vpop.f32.mrb[0].mxu0
      %v4259 = vadd.f32 0.0, %v4258
      %v4260 = vpop.f32.mrb[0].mxu0
      %v4261 = vadd.f32 0.0, %v4260
      %4262 = vmatprep.mubr.bf16.mxu0 0
      %4263 = vmatmul.mubr.bf16.gmra.mrb[0].mxu0 %v4169
      %v4264 = vpop.f32.mrb[0].mxu0
      %v4265 = vadd.f32 0.0, %v4264
      %v4266 = vpop.f32.mrb[0].mxu0
      %v4267 = vadd.f32 0.0, %v4266
      %v4268 = vpop.f32.mrb[0].mxu0
      %v4269 = vadd.f32 0.0, %v4268
      %v4270 = vpop.f32.mrb[0].mxu0
      %v4271 = vadd.f32 0.0, %v4270
      %4272 = vmatprep.mubr.bf16.mxu0 0
      %4273 = vmatmul.mubr.bf16.gmra.mrb[0].mxu0 %v4172
      %v4274 = vpop.f32.mrb[0].mxu0
      %v4275 = vadd.f32 0.0, %v4274
      %v4276 = vpop.f32.mrb[0].mxu0
      %v4277 = vadd.f32 0.0, %v4276
      %v4278 = vpop.f32.mrb[0].mxu0
      %v4279 = vadd.f32 0.0, %v4278
      %v4280 = vpop.f32.mrb[0].mxu0
      %v4281 = vadd.f32 0.0, %v4280
      %4282 = vdwg.mxu0
      %v4283 = vadd.f32 %v3983, %v4215
      %v4284 = vadd.f32 %v3985, %v4217
      %v4285 = vadd.f32 %v3987, %v4219
      %v4286 = vadd.f32 %v3989, %v4221
      %v4287 = vadd.f32 %v3993, %v4225
      %v4288 = vadd.f32 %v3995, %v4227
      %v4289 = vadd.f32 %v3997, %v4229
      %v4290 = vadd.f32 %v3999, %v4231
      %v4291 = vadd.f32 %v4003, %v4235
      %v4292 = vadd.f32 %v4005, %v4237
      %v4293 = vadd.f32 %v4007, %v4239
      %v4294 = vadd.f32 %v4009, %v4241
      %v4295 = vadd.f32 %v4013, %v4245
      %v4296 = vadd.f32 %v4015, %v4247
      %v4297 = vadd.f32 %v4017, %v4249
      %v4298 = vadd.f32 %v4019, %v4251
      %v4299 = vadd.f32 %v4023, %v4255
      %v4300 = vadd.f32 %v4025, %v4257
      %v4301 = vadd.f32 %v4027, %v4259
      %v4302 = vadd.f32 %v4029, %v4261
      %v4303 = vadd.f32 %v4033, %v4265
      %v4304 = vadd.f32 %v4035, %v4267
      %v4305 = vadd.f32 %v4037, %v4269
      %v4306 = vadd.f32 %v4039, %v4271
      %v4307 = vadd.f32 %v4043, %v4275
      %v4308 = vadd.f32 %v4045, %v4277
      %v4309 = vadd.f32 %v4047, %v4279
      %v4310 = vadd.f32 %v4049, %v4281
      %v4311 = vrot.slane %v3560, 3
      %v4312 = vrot.slane %v3563, 3
      %v4313 = vrot.slane %v3568, 3
      %v4314 = vrot.slane %v3571, 3
      %v4315 = vrot.slane %v3576, 3
      %v4316 = vrot.slane %v3579, 3
      %v4317 = vrot.slane %v3584, 3
      %v4318 = vrot.slane %v3587, 3
      %v4319 = vrot.slane %v3592, 3
      %v4320 = vrot.slane %v3595, 3
      %v4321 = vrot.slane %v3600, 3
      %v4322 = vrot.slane %v3603, 3
      %v4323 = vrot.slane %v3608, 3
      %v4324 = vrot.slane %v3611, 3
      %v4325 = vsel %vm1692, %v4323, %v4324
      %v4326 = vsel %vm1692, %v4322, %v4323
      %v4327 = vsel %vm1692, %v4321, %v4322
      %v4328 = vsel %vm1692, %v4320, %v4321
      %v4329 = vsel %vm1692, %v4319, %v4320
      %v4330 = vsel %vm1692, %v4318, %v4319
      %v4331 = vsel %vm1692, %v4317, %v4318
      %v4332 = vsel %vm1692, %v4316, %v4317
      %v4333 = vsel %vm1692, %v4315, %v4316
      %v4334 = vsel %vm1692, %v4314, %v4315
      %v4335 = vsel %vm1692, %v4313, %v4314
      %v4336 = vsel %vm1692, %v4312, %v4313
      %v4337 = vsel %vm1692, %v4311, %v4312
      %v4338 = vsel %vm1692, %v4324, %v4311
      %v4339 = vpack.c.bf16 %v4336, %v4337
      %v4340 = vpack.c.bf16 %v4334, %v4335
      %v4341 = vpack.c.bf16 %v4332, %v4333
      %v4342 = vpack.c.bf16 %v4330, %v4331
      %v4343 = vpack.c.bf16 %v4328, %v4329
      %v4344 = vpack.c.bf16 %v4326, %v4327
      %v4345 = vpack.c.bf16 %v4338, %v4325
      %s4346 = scalar_lea.vmem %s4, 264
      %v4347 = vld [vmem:[%s4346] sm:$0xff]
      %v4348 = vld [vmem:[%s4346 + $0x8] sm:$0xff]
      %v4349 = vld [vmem:[%s4346 + $0x10] sm:$0xff]
      %v4350 = vld [vmem:[%s4346 + $0x18] sm:$0xff]
      %v4351 = vld [vmem:[%s4346 + $0x20] sm:$0xff]
      %v4352 = vld [vmem:[%s4346 + $0x28] sm:$0xff]
      %v4353 = vld [vmem:[%s4346 + $0x30] sm:$0xff]
      %v4354 = vld [vmem:[%s4346 + $0x38] sm:$0xff]
      %v4355 = vld [vmem:[%s4346 + $0x40] sm:$0xff]
      %v4356 = vld [vmem:[%s4346 + $0x48] sm:$0xff]
      %v4357 = vld [vmem:[%s4346 + $0x50] sm:$0x33]
      %v4369 = vunpack.c.l.b16 %v4347
      %v4370 = vunpack.c.h.b16 %v4347
      %v4371 = vunpack.c.l.b16 %v4348
      %v4372 = vunpack.c.h.b16 %v4348
      %v4373 = vunpack.c.l.b16 %v4349
      %v4374 = vunpack.c.h.b16 %v4349
      %v4375 = vunpack.c.l.b16 %v4350
      %v4376 = vunpack.c.h.b16 %v4350
      %v4377 = vunpack.c.l.b16 %v4351
      %v4378 = vunpack.c.h.b16 %v4351
      %v4379 = vunpack.c.l.b16 %v4352
      %v4380 = vunpack.c.h.b16 %v4352
      %v4381 = vunpack.c.l.b16 %v4353
      %v4382 = vunpack.c.h.b16 %v4353
      %v4383 = vunpack.c.l.b16 %v4354
      %v4384 = vunpack.c.h.b16 %v4354
      %v4385 = vunpack.c.l.b16 %v4355
      %v4386 = vunpack.c.h.b16 %v4355
      %v4387 = vunpack.c.l.b16 %v4356
      %v4388 = vunpack.c.h.b16 %v4356
      %v4389 = vunpack.c.l.b16 %v4357
      %v4390 = vunpack.c.h.b16 %v4357
      %v4391 = vpack.c.b16 %v4371, %v4369
      %v4392 = vpack.c.b16 %v4372, %v4370
      %v4393 = vpack.c.b16 %v4375, %v4373
      %v4394 = vpack.c.b16 %v4376, %v4374
      %v4395 = vpack.c.b16 %v4379, %v4377
      %v4396 = vpack.c.b16 %v4380, %v4378
      %v4397 = vpack.c.b16 %v4383, %v4381
      %v4398 = vpack.c.b16 %v4384, %v4382
      %v4399 = vpack.c.b16 %v4387, %v4385
      %v4400 = vpack.c.b16 %v4388, %v4386
      %v4401 = vpack.c.b16 %v4389, %v4389
      %v4402 = vpack.c.b16 %v4390, %v4390
      %v4414 = vsel %vm3734, %v4339, 0
      %v4417 = vsel %vm3734, %v4340, 0
      %v4420 = vsel %vm3734, %v4341, 0
      %v4423 = vsel %vm3734, %v4342, 0
      %v4426 = vsel %vm3734, %v4343, 0
      %v4429 = vsel %vm3734, %v4344, 0
      %v4432 = vsel %vm3734, %v4345, 0
      %v4435 = vsel %vm3756, %v4401, 0
      %v4438 = vsel %vm3756, %v4402, 0
      %4440 = vmatprep.subr.bf16.mxu0 %v4392
      %4441 = vmatpush1.bf16.msra.mxu0 %v4391
      %4442 = vmatprep.subr.bf16.mxu0 %v4394
      %4443 = vmatpush1.bf16.msra.mxu0 %v4393
      %4444 = vmatprep.subr.bf16.mxu0 %v4396
      %4445 = vmatpush1.bf16.msra.mxu0 %v4395
      %4446 = vmatprep.subr.bf16.mxu0 %v4398
      %4447 = vmatpush1.bf16.msra.mxu0 %v4397
      %4448 = vmatprep.subr.bf16.mxu0 %v4400
      %4449 = vmatpush1.bf16.msra.mxu0 %v4399
      %4450 = vmatprep.subr.bf16.mxu0 %v4438
      %4451 = vmatpush1.bf16.msra.mxu0 %v4435
      %4452 = vmatprep.subr.bf16.mxu0 0
      %4453 = vmatpush1.bf16.msra.mxu0 0
      %4454 = vmatprep.subr.bf16.mxu0 0
      %4455 = vmatpush1.bf16.msra.mxu0 0
      %4456 = vmatprep.subr.bf16.mxu0 0
      %4457 = vmatpush1.bf16.msra.mxu0 0
      %4458 = vmatprep.subr.bf16.mxu0 0
      %4459 = vmatpush1.bf16.msra.mxu0 0
      %4460 = vmatprep.subr.bf16.mxu0 0
      %4461 = vmatpush1.bf16.msra.mxu0 0
      %4462 = vmatprep.subr.bf16.mxu0 0
      %4463 = vmatpush1.bf16.msra.mxu0 0
      %4464 = vmatprep.subr.bf16.mxu0 0
      %4465 = vmatpush1.bf16.msra.mxu0 0
      %4466 = vmatprep.subr.bf16.mxu0 0
      %4467 = vmatpush1.bf16.msra.mxu0 0
      %4468 = vmatprep.subr.bf16.mxu0 0
      %4469 = vmatpush1.bf16.msra.mxu0 0
      %4470 = vmatprep.subr.bf16.mxu0 0
      %4471 = vmatpush1.bf16.msra.mxu0 0
      %4472 = vmatprep.mubr.bf16.mxu0 0
      %4473 = vmatmul.mubr.bf16.gmra.mrb[0].mxu0 %v4414
      %v4474 = vpop.f32.mrb[0].mxu0
      %v4475 = vadd.f32 0.0, %v4474
      %v4476 = vpop.f32.mrb[0].mxu0
      %v4477 = vadd.f32 0.0, %v4476
      %v4478 = vpop.f32.mrb[0].mxu0
      %v4479 = vadd.f32 0.0, %v4478
      %v4480 = vpop.f32.mrb[0].mxu0
      %v4481 = vadd.f32 0.0, %v4480
      %4482 = vmatprep.mubr.bf16.mxu0 0
      %4483 = vmatmul.mubr.bf16.gmra.mrb[0].mxu0 %v4417
      %v4484 = vpop.f32.mrb[0].mxu0
      %v4485 = vadd.f32 0.0, %v4484
      %v4486 = vpop.f32.mrb[0].mxu0
      %v4487 = vadd.f32 0.0, %v4486
      %v4488 = vpop.f32.mrb[0].mxu0
      %v4489 = vadd.f32 0.0, %v4488
      %v4490 = vpop.f32.mrb[0].mxu0
      %v4491 = vadd.f32 0.0, %v4490
      %4492 = vmatprep.mubr.bf16.mxu0 0
      %4493 = vmatmul.mubr.bf16.gmra.mrb[0].mxu0 %v4420
      %v4494 = vpop.f32.mrb[0].mxu0
      %v4495 = vadd.f32 0.0, %v4494
      %v4496 = vpop.f32.mrb[0].mxu0
      %v4497 = vadd.f32 0.0, %v4496
      %v4498 = vpop.f32.mrb[0].mxu0
      %v4499 = vadd.f32 0.0, %v4498
      %v4500 = vpop.f32.mrb[0].mxu0
      %v4501 = vadd.f32 0.0, %v4500
      %4502 = vmatprep.mubr.bf16.mxu0 0
      %4503 = vmatmul.mubr.bf16.gmra.mrb[0].mxu0 %v4423
      %v4504 = vpop.f32.mrb[0].mxu0
      %v4505 = vadd.f32 0.0, %v4504
      %v4506 = vpop.f32.mrb[0].mxu0
      %v4507 = vadd.f32 0.0, %v4506
      %v4508 = vpop.f32.mrb[0].mxu0
      %v4509 = vadd.f32 0.0, %v4508
      %v4510 = vpop.f32.mrb[0].mxu0
      %v4511 = vadd.f32 0.0, %v4510
      %4512 = vmatprep.mubr.bf16.mxu0 0
      %4513 = vmatmul.mubr.bf16.gmra.mrb[0].mxu0 %v4426
      %v4514 = vpop.f32.mrb[0].mxu0
      %v4515 = vadd.f32 0.0, %v4514
      %v4516 = vpop.f32.mrb[0].mxu0
      %v4517 = vadd.f32 0.0, %v4516
      %v4518 = vpop.f32.mrb[0].mxu0
      %v4519 = vadd.f32 0.0, %v4518
      %v4520 = vpop.f32.mrb[0].mxu0
      %v4521 = vadd.f32 0.0, %v4520
      %4522 = vmatprep.mubr.bf16.mxu0 0
      %4523 = vmatmul.mubr.bf16.gmra.mrb[0].mxu0 %v4429
      %v4524 = vpop.f32.mrb[0].mxu0
      %v4525 = vadd.f32 0.0, %v4524
      %v4526 = vpop.f32.mrb[0].mxu0
      %v4527 = vadd.f32 0.0, %v4526
      %v4528 = vpop.f32.mrb[0].mxu0
      %v4529 = vadd.f32 0.0, %v4528
      %v4530 = vpop.f32.mrb[0].mxu0
      %v4531 = vadd.f32 0.0, %v4530
      %4532 = vmatprep.mubr.bf16.mxu0 0
      %4533 = vmatmul.mubr.bf16.gmra.mrb[0].mxu0 %v4432
      %v4534 = vpop.f32.mrb[0].mxu0
      %v4535 = vadd.f32 0.0, %v4534
      %v4536 = vpop.f32.mrb[0].mxu0
      %v4537 = vadd.f32 0.0, %v4536
      %v4538 = vpop.f32.mrb[0].mxu0
      %v4539 = vadd.f32 0.0, %v4538
      %v4540 = vpop.f32.mrb[0].mxu0
      %v4541 = vadd.f32 0.0, %v4540
      %4542 = vdwg.mxu0
      %v4543 = vadd.f32 %v4283, %v4475
      %v4544 = vadd.f32 %v4284, %v4477
      %v4545 = vadd.f32 %v4285, %v4479
      %v4546 = vadd.f32 %v4286, %v4481
      %v4547 = vadd.f32 %v4287, %v4485
      %v4548 = vadd.f32 %v4288, %v4487
      %v4549 = vadd.f32 %v4289, %v4489
      %v4550 = vadd.f32 %v4290, %v4491
      %v4551 = vadd.f32 %v4291, %v4495
      %v4552 = vadd.f32 %v4292, %v4497
      %v4553 = vadd.f32 %v4293, %v4499
      %v4554 = vadd.f32 %v4294, %v4501
      %v4555 = vadd.f32 %v4295, %v4505
      %v4556 = vadd.f32 %v4296, %v4507
      %v4557 = vadd.f32 %v4297, %v4509
      %v4558 = vadd.f32 %v4298, %v4511
      %v4559 = vadd.f32 %v4299, %v4515
      %v4560 = vadd.f32 %v4300, %v4517
      %v4561 = vadd.f32 %v4301, %v4519
      %v4562 = vadd.f32 %v4302, %v4521
      %v4563 = vadd.f32 %v4303, %v4525
      %v4564 = vadd.f32 %v4304, %v4527
      %v4565 = vadd.f32 %v4305, %v4529
      %v4566 = vadd.f32 %v4306, %v4531
      %v4567 = vadd.f32 %v4307, %v4535
      %v4568 = vadd.f32 %v4308, %v4537
      %v4569 = vadd.f32 %v4309, %v4539
      %v4570 = vadd.f32 %v4310, %v4541
      %v4571 = vrot.slane %v3560, 4
      %v4572 = vrot.slane %v3563, 4
      %v4573 = vrot.slane %v3568, 4
      %v4574 = vrot.slane %v3571, 4
      %v4575 = vrot.slane %v3576, 4
      %v4576 = vrot.slane %v3579, 4
      %v4577 = vrot.slane %v3584, 4
      %v4578 = vrot.slane %v3587, 4
      %v4579 = vrot.slane %v3592, 4
      %v4580 = vrot.slane %v3595, 4
      %v4581 = vrot.slane %v3600, 4
      %v4582 = vrot.slane %v3603, 4
      %v4583 = vrot.slane %v3608, 4
      %v4584 = vrot.slane %v3611, 4
      %v4585 = vsel %vm2151, %v4583, %v4584
      %v4586 = vsel %vm2151, %v4582, %v4583
      %v4587 = vsel %vm2151, %v4581, %v4582
      %v4588 = vsel %vm2151, %v4580, %v4581
      %v4589 = vsel %vm2151, %v4579, %v4580
      %v4590 = vsel %vm2151, %v4578, %v4579
      %v4591 = vsel %vm2151, %v4577, %v4578
      %v4592 = vsel %vm2151, %v4576, %v4577
      %v4593 = vsel %vm2151, %v4575, %v4576
      %v4594 = vsel %vm2151, %v4574, %v4575
      %v4595 = vsel %vm2151, %v4573, %v4574
      %v4596 = vsel %vm2151, %v4572, %v4573
      %v4597 = vsel %vm2151, %v4571, %v4572
      %v4598 = vsel %vm2151, %v4584, %v4571
      %v4599 = vpack.c.bf16 %v4596, %v4597
      %v4600 = vpack.c.bf16 %v4594, %v4595
      %v4601 = vpack.c.bf16 %v4592, %v4593
      %v4602 = vpack.c.bf16 %v4590, %v4591
      %v4603 = vpack.c.bf16 %v4588, %v4589
      %v4604 = vpack.c.bf16 %v4586, %v4587
      %v4605 = vpack.c.bf16 %v4598, %v4585
      %s4606 = scalar_lea.vmem %s4, 352
      %v4607 = vld [vmem:[%s4606] sm:$0xff]
      %v4608 = vld [vmem:[%s4606 + $0x8] sm:$0xff]
      %v4609 = vld [vmem:[%s4606 + $0x10] sm:$0xff]
      %v4610 = vld [vmem:[%s4606 + $0x18] sm:$0xff]
      %v4611 = vld [vmem:[%s4606 + $0x20] sm:$0xff]
      %v4612 = vld [vmem:[%s4606 + $0x28] sm:$0xff]
      %v4613 = vld [vmem:[%s4606 + $0x30] sm:$0xff]
      %v4614 = vld [vmem:[%s4606 + $0x38] sm:$0xff]
      %v4615 = vld [vmem:[%s4606 + $0x40] sm:$0xff]
      %v4616 = vld [vmem:[%s4606 + $0x48] sm:$0xff]
      %v4617 = vld [vmem:[%s4606 + $0x50] sm:$0x33]
      %v4629 = vunpack.c.l.b16 %v4607
      %v4630 = vunpack.c.h.b16 %v4607
      %v4631 = vunpack.c.l.b16 %v4608
      %v4632 = vunpack.c.h.b16 %v4608
      %v4633 = vunpack.c.l.b16 %v4609
      %v4634 = vunpack.c.h.b16 %v4609
      %v4635 = vunpack.c.l.b16 %v4610
      %v4636 = vunpack.c.h.b16 %v4610
      %v4637 = vunpack.c.l.b16 %v4611
      %v4638 = vunpack.c.h.b16 %v4611
      %v4639 = vunpack.c.l.b16 %v4612
      %v4640 = vunpack.c.h.b16 %v4612
      %v4641 = vunpack.c.l.b16 %v4613
      %v4642 = vunpack.c.h.b16 %v4613
      %v4643 = vunpack.c.l.b16 %v4614
      %v4644 = vunpack.c.h.b16 %v4614
      %v4645 = vunpack.c.l.b16 %v4615
      %v4646 = vunpack.c.h.b16 %v4615
      %v4647 = vunpack.c.l.b16 %v4616
      %v4648 = vunpack.c.h.b16 %v4616
      %v4649 = vunpack.c.l.b16 %v4617
      %v4650 = vunpack.c.h.b16 %v4617
      %v4651 = vpack.c.b16 %v4631, %v4629
      %v4652 = vpack.c.b16 %v4632, %v4630
      %v4653 = vpack.c.b16 %v4635, %v4633
      %v4654 = vpack.c.b16 %v4636, %v4634
      %v4655 = vpack.c.b16 %v4639, %v4637
      %v4656 = vpack.c.b16 %v4640, %v4638
      %v4657 = vpack.c.b16 %v4643, %v4641
      %v4658 = vpack.c.b16 %v4644, %v4642
      %v4659 = vpack.c.b16 %v4647, %v4645
      %v4660 = vpack.c.b16 %v4648, %v4646
      %v4661 = vpack.c.b16 %v4649, %v4649
      %v4662 = vpack.c.b16 %v4650, %v4650
      %v4674 = vsel %vm3734, %v4599, 0
      %v4677 = vsel %vm3734, %v4600, 0
      %v4680 = vsel %vm3734, %v4601, 0
      %v4683 = vsel %vm3734, %v4602, 0
      %v4686 = vsel %vm3734, %v4603, 0
      %v4689 = vsel %vm3734, %v4604, 0
      %v4692 = vsel %vm3734, %v4605, 0
      %v4695 = vsel %vm3756, %v4661, 0
      %v4698 = vsel %vm3756, %v4662, 0
      %4700 = vmatprep.subr.bf16.mxu0 %v4652
      %4701 = vmatpush1.bf16.msra.mxu0 %v4651
      %4702 = vmatprep.subr.bf16.mxu0 %v4654
      %4703 = vmatpush1.bf16.msra.mxu0 %v4653
      %4704 = vmatprep.subr.bf16.mxu0 %v4656
      %4705 = vmatpush1.bf16.msra.mxu0 %v4655
      %4706 = vmatprep.subr.bf16.mxu0 %v4658
      %4707 = vmatpush1.bf16.msra.mxu0 %v4657
      %4708 = vmatprep.subr.bf16.mxu0 %v4660
      %4709 = vmatpush1.bf16.msra.mxu0 %v4659
      %4710 = vmatprep.subr.bf16.mxu0 %v4698
      %4711 = vmatpush1.bf16.msra.mxu0 %v4695
      %4712 = vmatprep.subr.bf16.mxu0 0
      %4713 = vmatpush1.bf16.msra.mxu0 0
      %4714 = vmatprep.subr.bf16.mxu0 0
      %4715 = vmatpush1.bf16.msra.mxu0 0
      %4716 = vmatprep.subr.bf16.mxu0 0
      %4717 = vmatpush1.bf16.msra.mxu0 0
      %4718 = vmatprep.subr.bf16.mxu0 0
      %4719 = vmatpush1.bf16.msra.mxu0 0
      %4720 = vmatprep.subr.bf16.mxu0 0
      %4721 = vmatpush1.bf16.msra.mxu0 0
      %4722 = vmatprep.subr.bf16.mxu0 0
      %4723 = vmatpush1.bf16.msra.mxu0 0
      %4724 = vmatprep.subr.bf16.mxu0 0
      %4725 = vmatpush1.bf16.msra.mxu0 0
      %4726 = vmatprep.subr.bf16.mxu0 0
      %4727 = vmatpush1.bf16.msra.mxu0 0
      %4728 = vmatprep.subr.bf16.mxu0 0
      %4729 = vmatpush1.bf16.msra.mxu0 0
      %4730 = vmatprep.subr.bf16.mxu0 0
      %4731 = vmatpush1.bf16.msra.mxu0 0
      %4732 = vmatprep.mubr.bf16.mxu0 0
      %4733 = vmatmul.mubr.bf16.gmra.mrb[0].mxu0 %v4674
      %v4734 = vpop.f32.mrb[0].mxu0
      %v4735 = vadd.f32 0.0, %v4734
      %v4736 = vpop.f32.mrb[0].mxu0
      %v4737 = vadd.f32 0.0, %v4736
      %v4738 = vpop.f32.mrb[0].mxu0
      %v4739 = vadd.f32 0.0, %v4738
      %v4740 = vpop.f32.mrb[0].mxu0
      %v4741 = vadd.f32 0.0, %v4740
      %4742 = vmatprep.mubr.bf16.mxu0 0
      %4743 = vmatmul.mubr.bf16.gmra.mrb[0].mxu0 %v4677
      %v4744 = vpop.f32.mrb[0].mxu0
      %v4745 = vadd.f32 0.0, %v4744
      %v4746 = vpop.f32.mrb[0].mxu0
      %v4747 = vadd.f32 0.0, %v4746
      %v4748 = vpop.f32.mrb[0].mxu0
      %v4749 = vadd.f32 0.0, %v4748
      %v4750 = vpop.f32.mrb[0].mxu0
      %v4751 = vadd.f32 0.0, %v4750
      %4752 = vmatprep.mubr.bf16.mxu0 0
      %4753 = vmatmul.mubr.bf16.gmra.mrb[0].mxu0 %v4680
      %v4754 = vpop.f32.mrb[0].mxu0
      %v4755 = vadd.f32 0.0, %v4754
      %v4756 = vpop.f32.mrb[0].mxu0
      %v4757 = vadd.f32 0.0, %v4756
      %v4758 = vpop.f32.mrb[0].mxu0
      %v4759 = vadd.f32 0.0, %v4758
      %v4760 = vpop.f32.mrb[0].mxu0
      %v4761 = vadd.f32 0.0, %v4760
      %4762 = vmatprep.mubr.bf16.mxu0 0
      %4763 = vmatmul.mubr.bf16.gmra.mrb[0].mxu0 %v4683
      %v4764 = vpop.f32.mrb[0].mxu0
      %v4765 = vadd.f32 0.0, %v4764
      %v4766 = vpop.f32.mrb[0].mxu0
      %v4767 = vadd.f32 0.0, %v4766
      %v4768 = vpop.f32.mrb[0].mxu0
      %v4769 = vadd.f32 0.0, %v4768
      %v4770 = vpop.f32.mrb[0].mxu0
      %v4771 = vadd.f32 0.0, %v4770
      %4772 = vmatprep.mubr.bf16.mxu0 0
      %4773 = vmatmul.mubr.bf16.gmra.mrb[0].mxu0 %v4686
      %v4774 = vpop.f32.mrb[0].mxu0
      %v4775 = vadd.f32 0.0, %v4774
      %v4776 = vpop.f32.mrb[0].mxu0
      %v4777 = vadd.f32 0.0, %v4776
      %v4778 = vpop.f32.mrb[0].mxu0
      %v4779 = vadd.f32 0.0, %v4778
      %v4780 = vpop.f32.mrb[0].mxu0
      %v4781 = vadd.f32 0.0, %v4780
      %4782 = vmatprep.mubr.bf16.mxu0 0
      %4783 = vmatmul.mubr.bf16.gmra.mrb[0].mxu0 %v4689
      %v4784 = vpop.f32.mrb[0].mxu0
      %v4785 = vadd.f32 0.0, %v4784
      %v4786 = vpop.f32.mrb[0].mxu0
      %v4787 = vadd.f32 0.0, %v4786
      %v4788 = vpop.f32.mrb[0].mxu0
      %v4789 = vadd.f32 0.0, %v4788
      %v4790 = vpop.f32.mrb[0].mxu0
      %v4791 = vadd.f32 0.0, %v4790
      %4792 = vmatprep.mubr.bf16.mxu0 0
      %4793 = vmatmul.mubr.bf16.gmra.mrb[0].mxu0 %v4692
      %v4794 = vpop.f32.mrb[0].mxu0
      %v4795 = vadd.f32 0.0, %v4794
      %v4796 = vpop.f32.mrb[0].mxu0
      %v4797 = vadd.f32 0.0, %v4796
      %v4798 = vpop.f32.mrb[0].mxu0
      %v4799 = vadd.f32 0.0, %v4798
      %v4800 = vpop.f32.mrb[0].mxu0
      %v4801 = vadd.f32 0.0, %v4800
      %4802 = vdwg.mxu0
      %v4803 = vadd.f32 %v4543, %v4735
      %v4804 = vadd.f32 %v4544, %v4737
      %v4805 = vadd.f32 %v4545, %v4739
      %v4806 = vadd.f32 %v4546, %v4741
      %v4807 = vadd.f32 %v4547, %v4745
      %v4808 = vadd.f32 %v4548, %v4747
      %v4809 = vadd.f32 %v4549, %v4749
      %v4810 = vadd.f32 %v4550, %v4751
      %v4811 = vadd.f32 %v4551, %v4755
      %v4812 = vadd.f32 %v4552, %v4757
      %v4813 = vadd.f32 %v4553, %v4759
      %v4814 = vadd.f32 %v4554, %v4761
      %v4815 = vadd.f32 %v4555, %v4765
      %v4816 = vadd.f32 %v4556, %v4767
      %v4817 = vadd.f32 %v4557, %v4769
      %v4818 = vadd.f32 %v4558, %v4771
      %v4819 = vadd.f32 %v4559, %v4775
      %v4820 = vadd.f32 %v4560, %v4777
      %v4821 = vadd.f32 %v4561, %v4779
      %v4822 = vadd.f32 %v4562, %v4781
      %v4823 = vadd.f32 %v4563, %v4785
      %v4824 = vadd.f32 %v4564, %v4787
      %v4825 = vadd.f32 %v4565, %v4789
      %v4826 = vadd.f32 %v4566, %v4791
      %v4827 = vadd.f32 %v4567, %v4795
      %v4828 = vadd.f32 %v4568, %v4797
      %v4829 = vadd.f32 %v4569, %v4799
      %v4830 = vadd.f32 %v4570, %v4801
      %v4831 = vld [vmem:[%s12 + $0x2] sm:$0x3]
      %v4833 = vlaneseq
      %v4834 = vshrl.u32 %v4833, 7
      %v4835 = vsub.s32 0, %v4834
      %v4836 = vrot.slane %v4831, %v4835
      %v4837 = vlaneseq
      %v4838 = vshrl.u32 %v4837, 7
      %v4839 = vsub.s32 1, %v4838
      %v4840 = vrot.slane %v4831, %v4839
      %v4843 = vadd.f32 %v4803, %v4836
      %v4844 = vadd.f32 %v4804, %v4840
      %v4845 = vadd.f32 %v4805, %v4836
      %v4846 = vadd.f32 %v4806, %v4840
      %v4847 = vadd.f32 %v4807, %v4836
      %v4848 = vadd.f32 %v4808, %v4840
      %v4849 = vadd.f32 %v4809, %v4836
      %v4850 = vadd.f32 %v4810, %v4840
      %v4851 = vadd.f32 %v4811, %v4836
      %v4852 = vadd.f32 %v4812, %v4840
      %v4853 = vadd.f32 %v4813, %v4836
      %v4854 = vadd.f32 %v4814, %v4840
      %v4855 = vadd.f32 %v4815, %v4836
      %v4856 = vadd.f32 %v4816, %v4840
      %v4857 = vadd.f32 %v4817, %v4836
      %v4858 = vadd.f32 %v4818, %v4840
      %v4859 = vadd.f32 %v4819, %v4836
      %v4860 = vadd.f32 %v4820, %v4840
      %v4861 = vadd.f32 %v4821, %v4836
      %v4862 = vadd.f32 %v4822, %v4840
      %v4863 = vadd.f32 %v4823, %v4836
      %v4864 = vadd.f32 %v4824, %v4840
      %v4865 = vadd.f32 %v4825, %v4836
      %v4866 = vadd.f32 %v4826, %v4840
      %v4867 = vadd.f32 %v4827, %v4836
      %v4868 = vadd.f32 %v4828, %v4840
      %v4869 = vadd.f32 %v4829, %v4836
      %v4870 = vadd.f32 %v4830, %v4840
      %v4871 = vmax.f32 %v4843, 0.0
      %v4872 = vmax.f32 %v4844, 0.0
      %v4873 = vmax.f32 %v4845, 0.0
      %v4874 = vmax.f32 %v4846, 0.0
      %v4875 = vmax.f32 %v4847, 0.0
      %v4876 = vmax.f32 %v4848, 0.0
      %v4877 = vmax.f32 %v4849, 0.0
      %v4878 = vmax.f32 %v4850, 0.0
      %v4879 = vmax.f32 %v4851, 0.0
      %v4880 = vmax.f32 %v4852, 0.0
      %v4881 = vmax.f32 %v4853, 0.0
      %v4882 = vmax.f32 %v4854, 0.0
      %v4883 = vmax.f32 %v4855, 0.0
      %v4884 = vmax.f32 %v4856, 0.0
      %v4885 = vmax.f32 %v4857, 0.0
      %v4886 = vmax.f32 %v4858, 0.0
      %v4887 = vmax.f32 %v4859, 0.0
      %v4888 = vmax.f32 %v4860, 0.0
      %v4889 = vmax.f32 %v4861, 0.0
      %v4890 = vmax.f32 %v4862, 0.0
      %v4891 = vmax.f32 %v4863, 0.0
      %v4892 = vmax.f32 %v4864, 0.0
      %v4893 = vmax.f32 %v4865, 0.0
      %v4894 = vmax.f32 %v4866, 0.0
      %v4895 = vmax.f32 %v4867, 0.0
      %v4896 = vmax.f32 %v4868, 0.0
      %v4897 = vmax.f32 %v4869, 0.0
      %v4898 = vmax.f32 %v4870, 0.0
      %v4899 = vpack.c.bf16 %v4873, %v4871
      %v4900 = vpack.c.bf16 %v4874, %v4872
      %v4901 = vpack.c.bf16 %v4877, %v4875
      %v4902 = vpack.c.bf16 %v4878, %v4876
      %v4903 = vpack.c.bf16 %v4881, %v4879
      %v4904 = vpack.c.bf16 %v4882, %v4880
      %v4905 = vpack.c.bf16 %v4885, %v4883
      %v4906 = vpack.c.bf16 %v4886, %v4884
      %v4907 = vpack.c.bf16 %v4889, %v4887
      %v4908 = vpack.c.bf16 %v4890, %v4888
      %v4909 = vpack.c.bf16 %v4893, %v4891
      %v4910 = vpack.c.bf16 %v4894, %v4892
      %v4911 = vpack.c.bf16 %v4897, %v4895
      %v4912 = vpack.c.bf16 %v4898, %v4896
      %v4913 = vld [vmem:[%s5] sm:$0xf]
      %v4914 = vld [vmem:[%s5 + $0x4] sm:$0xf]
      %v4915 = vld [vmem:[%s5 + $0x8] sm:$0xf]
      %v4916 = vld [vmem:[%s5 + $0xc] sm:$0xf]
      %v4917 = vld [vmem:[%s5 + $0x10] sm:$0xf]
      %v4918 = vld [vmem:[%s5 + $0x14] sm:$0xf]
      %v4919 = vld [vmem:[%s5 + $0x18] sm:$0xf]
      %v4920 = vld [vmem:[%s5 + $0x1c] sm:$0xf]
      %v4921 = vld [vmem:[%s5 + $0x20] sm:$0xf]
      %v4922 = vld [vmem:[%s5 + $0x24] sm:$0xf]
      %v4923 = vld [vmem:[%s5 + $0x28] sm:$0xf]
      %v4924 = vld [vmem:[%s5 + $0x2c] sm:$0xf]
      %v4925 = vld [vmem:[%s5 + $0x30] sm:$0xf]
      %v4926 = vld [vmem:[%s5 + $0x34] sm:$0xf]
      %v4927 = vld [vmem:[%s5 + $0x38] sm:$0xf]
      %v4928 = vld [vmem:[%s5 + $0x3c] sm:$0xf]
      %v4929 = vld [vmem:[%s5 + $0x40] sm:$0xf]
      %v4930 = vld [vmem:[%s5 + $0x44] sm:$0xf]
      %v4931 = vld [vmem:[%s5 + $0x48] sm:$0xf]
      %v4932 = vld [vmem:[%s5 + $0x4c] sm:$0xf]
      %v4953 = vunpack.c.l.b16 %v4913
      %v4954 = vunpack.c.l.b16 %v4914
      %v4955 = vunpack.c.l.b16 %v4915
      %v4956 = vunpack.c.l.b16 %v4916
      %v4957 = vunpack.c.l.b16 %v4917
      %v4958 = vunpack.c.l.b16 %v4918
      %v4959 = vunpack.c.l.b16 %v4919
      %v4960 = vunpack.c.l.b16 %v4920
      %v4961 = vunpack.c.l.b16 %v4921
      %v4962 = vunpack.c.l.b16 %v4922
      %v4963 = vunpack.c.l.b16 %v4923
      %v4964 = vunpack.c.l.b16 %v4924
      %v4965 = vunpack.c.l.b16 %v4925
      %v4966 = vunpack.c.l.b16 %v4926
      %v4967 = vunpack.c.l.b16 %v4927
      %v4968 = vunpack.c.l.b16 %v4928
      %v4969 = vunpack.c.l.b16 %v4929
      %v4970 = vunpack.c.l.b16 %v4930
      %v4971 = vunpack.c.l.b16 %v4931
      %v4972 = vunpack.c.l.b16 %v4932
      %v4973 = vpack.c.b16 %v4954, %v4953
      %v4974 = vpack.c.b16 %v4956, %v4955
      %v4975 = vpack.c.b16 %v4958, %v4957
      %v4976 = vpack.c.b16 %v4960, %v4959
      %v4977 = vpack.c.b16 %v4962, %v4961
      %v4978 = vpack.c.b16 %v4964, %v4963
      %v4979 = vpack.c.b16 %v4966, %v4965
      %v4980 = vpack.c.b16 %v4968, %v4967
      %v4981 = vpack.c.b16 %v4970, %v4969
      %v4982 = vpack.c.b16 %v4972, %v4971
      %vm4993 = vcmask 261120
      %v4995 = vsel %vm4993, %v4900, 0
      %v4998 = vsel %vm4993, %v4902, 0
      %v5001 = vsel %vm4993, %v4904, 0
      %v5004 = vsel %vm4993, %v4906, 0
      %v5007 = vsel %vm4993, %v4908, 0
      %v5010 = vsel %vm4993, %v4910, 0
      %v5013 = vsel %vm4993, %v4912, 0
      %5015 = vmatprep.subr.bf16.mxu0 0
      %5016 = vmatpush1.bf16.msra.mxu0 %v4973
      %5017 = vmatprep.subr.bf16.mxu0 0
      %5018 = vmatpush1.bf16.msra.mxu0 %v4974
      %5019 = vmatprep.subr.bf16.mxu0 0
      %5020 = vmatpush1.bf16.msra.mxu0 %v4975
      %5021 = vmatprep.subr.bf16.mxu0 0
      %5022 = vmatpush1.bf16.msra.mxu0 %v4976
      %5023 = vmatprep.subr.bf16.mxu0 0
      %5024 = vmatpush1.bf16.msra.mxu0 %v4977
      %5025 = vmatprep.subr.bf16.mxu0 0
      %5026 = vmatpush1.bf16.msra.mxu0 %v4978
      %5027 = vmatprep.subr.bf16.mxu0 0
      %5028 = vmatpush1.bf16.msra.mxu0 %v4979
      %5029 = vmatprep.subr.bf16.mxu0 0
      %5030 = vmatpush1.bf16.msra.mxu0 %v4980
      %5031 = vmatprep.subr.bf16.mxu0 0
      %5032 = vmatpush1.bf16.msra.mxu0 %v4981
      %5033 = vmatprep.subr.bf16.mxu0 0
      %5034 = vmatpush1.bf16.msra.mxu0 %v4982
      %5035 = vmatprep.subr.bf16.mxu0 0
      %5036 = vmatpush1.bf16.msra.mxu0 0
      %5037 = vmatprep.subr.bf16.mxu0 0
      %5038 = vmatpush1.bf16.msra.mxu0 0
      %5039 = vmatprep.subr.bf16.mxu0 0
      %5040 = vmatpush1.bf16.msra.mxu0 0
      %5041 = vmatprep.subr.bf16.mxu0 0
      %5042 = vmatpush1.bf16.msra.mxu0 0
      %5043 = vmatprep.subr.bf16.mxu0 0
      %5044 = vmatpush1.bf16.msra.mxu0 0
      %5045 = vmatprep.subr.bf16.mxu0 0
      %5046 = vmatpush1.bf16.msra.mxu0 0
      %5047 = vmatprep.mubr.bf16.mxu0 %v4995
      %5048 = vmatmul.mubr.bf16.gmra.mrb[0].mxu0 %v4899
      %v5049 = vpop.f32.mrb[0].mxu0
      %v5050 = vadd.f32 0.0, %v5049
      %v5051 = vpop.f32.mrb[0].mxu0
      %v5052 = vpop.f32.mrb[0].mxu0
      %v5053 = vadd.f32 0.0, %v5052
      %v5054 = vpop.f32.mrb[0].mxu0
      %5055 = vmatprep.mubr.bf16.mxu0 %v4998
      %5056 = vmatmul.mubr.bf16.gmra.mrb[0].mxu0 %v4901
      %v5057 = vpop.f32.mrb[0].mxu0
      %v5058 = vadd.f32 0.0, %v5057
      %v5059 = vpop.f32.mrb[0].mxu0
      %v5060 = vpop.f32.mrb[0].mxu0
      %v5061 = vadd.f32 0.0, %v5060
      %v5062 = vpop.f32.mrb[0].mxu0
      %5063 = vmatprep.mubr.bf16.mxu0 %v5001
      %5064 = vmatmul.mubr.bf16.gmra.mrb[0].mxu0 %v4903
      %v5065 = vpop.f32.mrb[0].mxu0
      %v5066 = vadd.f32 0.0, %v5065
      %v5067 = vpop.f32.mrb[0].mxu0
      %v5068 = vpop.f32.mrb[0].mxu0
      %v5069 = vadd.f32 0.0, %v5068
      %v5070 = vpop.f32.mrb[0].mxu0
      %5071 = vmatprep.mubr.bf16.mxu0 %v5004
      %5072 = vmatmul.mubr.bf16.gmra.mrb[0].mxu0 %v4905
      %v5073 = vpop.f32.mrb[0].mxu0
      %v5074 = vadd.f32 0.0, %v5073
      %v5075 = vpop.f32.mrb[0].mxu0
      %v5076 = vpop.f32.mrb[0].mxu0
      %v5077 = vadd.f32 0.0, %v5076
      %v5078 = vpop.f32.mrb[0].mxu0
      %5079 = vmatprep.mubr.bf16.mxu0 %v5007
      %5080 = vmatmul.mubr.bf16.gmra.mrb[0].mxu0 %v4907
      %v5081 = vpop.f32.mrb[0].mxu0
      %v5082 = vadd.f32 0.0, %v5081
      %v5083 = vpop.f32.mrb[0].mxu0
      %v5084 = vpop.f32.mrb[0].mxu0
      %v5085 = vadd.f32 0.0, %v5084
      %v5086 = vpop.f32.mrb[0].mxu0
      %5087 = vmatprep.mubr.bf16.mxu0 %v5010
      %5088 = vmatmul.mubr.bf16.gmra.mrb[0].mxu0 %v4909
      %v5089 = vpop.f32.mrb[0].mxu0
      %v5090 = vadd.f32 0.0, %v5089
      %v5091 = vpop.f32.mrb[0].mxu0
      %v5092 = vpop.f32.mrb[0].mxu0
      %v5093 = vadd.f32 0.0, %v5092
      %v5094 = vpop.f32.mrb[0].mxu0
      %5095 = vmatprep.mubr.bf16.mxu0 %v5013
      %5096 = vmatmul.mubr.bf16.gmra.mrb[0].mxu0 %v4911
      %v5097 = vpop.f32.mrb[0].mxu0
      %v5098 = vadd.f32 0.0, %v5097
      %v5099 = vpop.f32.mrb[0].mxu0
      %v5100 = vpop.f32.mrb[0].mxu0
      %v5101 = vadd.f32 0.0, %v5100
      %v5102 = vpop.f32.mrb[0].mxu0
      %5103 = vdwg.mxu0
      %s5104 = scalar_lea.vmem %s5, 80
      %v5105 = vld [vmem:[%s5104] sm:$0xf]
      %v5106 = vld [vmem:[%s5104 + $0x4] sm:$0xf]
      %v5107 = vld [vmem:[%s5104 + $0x8] sm:$0xf]
      %v5108 = vld [vmem:[%s5104 + $0xc] sm:$0xf]
      %v5109 = vld [vmem:[%s5104 + $0x10] sm:$0xf]
      %v5110 = vld [vmem:[%s5104 + $0x14] sm:$0xf]
      %v5111 = vld [vmem:[%s5104 + $0x18] sm:$0xf]
      %v5112 = vld [vmem:[%s5104 + $0x1c] sm:$0xf]
      %v5113 = vld [vmem:[%s5104 + $0x20] sm:$0xf]
      %v5114 = vld [vmem:[%s5104 + $0x24] sm:$0xf]
      %v5115 = vld [vmem:[%s5104 + $0x28] sm:$0xf]
      %v5116 = vld [vmem:[%s5104 + $0x2c] sm:$0xf]
      %v5117 = vld [vmem:[%s5104 + $0x30] sm:$0xf]
      %v5118 = vld [vmem:[%s5104 + $0x34] sm:$0xf]
      %v5119 = vld [vmem:[%s5104 + $0x38] sm:$0xf]
      %v5120 = vld [vmem:[%s5104 + $0x3c] sm:$0xf]
      %v5121 = vld [vmem:[%s5104 + $0x40] sm:$0xf]
      %v5122 = vld [vmem:[%s5104 + $0x44] sm:$0xf]
      %v5123 = vld [vmem:[%s5104 + $0x48] sm:$0xf]
      %v5124 = vld [vmem:[%s5104 + $0x4c] sm:$0xf]
      %v5145 = vunpack.c.l.b16 %v5105
      %v5146 = vunpack.c.l.b16 %v5106
      %v5147 = vunpack.c.l.b16 %v5107
      %v5148 = vunpack.c.l.b16 %v5108
      %v5149 = vunpack.c.l.b16 %v5109
      %v5150 = vunpack.c.l.b16 %v5110
      %v5151 = vunpack.c.l.b16 %v5111
      %v5152 = vunpack.c.l.b16 %v5112
      %v5153 = vunpack.c.l.b16 %v5113
      %v5154 = vunpack.c.l.b16 %v5114
      %v5155 = vunpack.c.l.b16 %v5115
      %v5156 = vunpack.c.l.b16 %v5116
      %v5157 = vunpack.c.l.b16 %v5117
      %v5158 = vunpack.c.l.b16 %v5118
      %v5159 = vunpack.c.l.b16 %v5119
      %v5160 = vunpack.c.l.b16 %v5120
      %v5161 = vunpack.c.l.b16 %v5121
      %v5162 = vunpack.c.l.b16 %v5122
      %v5163 = vunpack.c.l.b16 %v5123
      %v5164 = vunpack.c.l.b16 %v5124
      %v5165 = vpack.c.b16 %v5146, %v5145
      %v5166 = vpack.c.b16 %v5148, %v5147
      %v5167 = vpack.c.b16 %v5150, %v5149
      %v5168 = vpack.c.b16 %v5152, %v5151
      %v5169 = vpack.c.b16 %v5154, %v5153
      %v5170 = vpack.c.b16 %v5156, %v5155
      %v5171 = vpack.c.b16 %v5158, %v5157
      %v5172 = vpack.c.b16 %v5160, %v5159
      %v5173 = vpack.c.b16 %v5162, %v5161
      %v5174 = vpack.c.b16 %v5164, %v5163
      %5185 = vmatprep.subr.bf16.mxu0 0
      %5186 = vmatpush1.bf16.msra.mxu0 %v5165
      %5187 = vmatprep.subr.bf16.mxu0 0
      %5188 = vmatpush1.bf16.msra.mxu0 %v5166
      %5189 = vmatprep.subr.bf16.mxu0 0
      %5190 = vmatpush1.bf16.msra.mxu0 %v5167
      %5191 = vmatprep.subr.bf16.mxu0 0
      %5192 = vmatpush1.bf16.msra.mxu0 %v5168
      %5193 = vmatprep.subr.bf16.mxu0 0
      %5194 = vmatpush1.bf16.msra.mxu0 %v5169
      %5195 = vmatprep.subr.bf16.mxu0 0
      %5196 = vmatpush1.bf16.msra.mxu0 %v5170
      %5197 = vmatprep.subr.bf16.mxu0 0
      %5198 = vmatpush1.bf16.msra.mxu0 %v5171
      %5199 = vmatprep.subr.bf16.mxu0 0
      %5200 = vmatpush1.bf16.msra.mxu0 %v5172
      %5201 = vmatprep.subr.bf16.mxu0 0
      %5202 = vmatpush1.bf16.msra.mxu0 %v5173
      %5203 = vmatprep.subr.bf16.mxu0 0
      %5204 = vmatpush1.bf16.msra.mxu0 %v5174
      %5205 = vmatprep.subr.bf16.mxu0 0
      %5206 = vmatpush1.bf16.msra.mxu0 0
      %5207 = vmatprep.subr.bf16.mxu0 0
      %5208 = vmatpush1.bf16.msra.mxu0 0
      %5209 = vmatprep.subr.bf16.mxu0 0
      %5210 = vmatpush1.bf16.msra.mxu0 0
      %5211 = vmatprep.subr.bf16.mxu0 0
      %5212 = vmatpush1.bf16.msra.mxu0 0
      %5213 = vmatprep.subr.bf16.mxu0 0
      %5214 = vmatpush1.bf16.msra.mxu0 0
      %5215 = vmatprep.subr.bf16.mxu0 0
      %5216 = vmatpush1.bf16.msra.mxu0 0
      %5217 = vmatprep.mubr.bf16.mxu0 %v4995
      %5218 = vmatmul.mubr.bf16.gmra.mrb[0].mxu0 %v4899
      %v5219 = vpop.f32.mrb[0].mxu0
      %v5220 = vadd.f32 0.0, %v5219
      %v5221 = vpop.f32.mrb[0].mxu0
      %v5222 = vpop.f32.mrb[0].mxu0
      %v5223 = vadd.f32 0.0, %v5222
      %v5224 = vpop.f32.mrb[0].mxu0
      %5225 = vmatprep.mubr.bf16.mxu0 %v4998
      %5226 = vmatmul.mubr.bf16.gmra.mrb[0].mxu0 %v4901
      %v5227 = vpop.f32.mrb[0].mxu0
      %v5228 = vadd.f32 0.0, %v5227
      %v5229 = vpop.f32.mrb[0].mxu0
      %v5230 = vpop.f32.mrb[0].mxu0
      %v5231 = vadd.f32 0.0, %v5230
      %v5232 = vpop.f32.mrb[0].mxu0
      %5233 = vmatprep.mubr.bf16.mxu0 %v5001
      %5234 = vmatmul.mubr.bf16.gmra.mrb[0].mxu0 %v4903
      %v5235 = vpop.f32.mrb[0].mxu0
      %v5236 = vadd.f32 0.0, %v5235
      %v5237 = vpop.f32.mrb[0].mxu0
      %v5238 = vpop.f32.mrb[0].mxu0
      %v5239 = vadd.f32 0.0, %v5238
      %v5240 = vpop.f32.mrb[0].mxu0
      %5241 = vmatprep.mubr.bf16.mxu0 %v5004
      %5242 = vmatmul.mubr.bf16.gmra.mrb[0].mxu0 %v4905
      %v5243 = vpop.f32.mrb[0].mxu0
      %v5244 = vadd.f32 0.0, %v5243
      %v5245 = vpop.f32.mrb[0].mxu0
      %v5246 = vpop.f32.mrb[0].mxu0
      %v5247 = vadd.f32 0.0, %v5246
      %v5248 = vpop.f32.mrb[0].mxu0
      %5249 = vmatprep.mubr.bf16.mxu0 %v5007
      %5250 = vmatmul.mubr.bf16.gmra.mrb[0].mxu0 %v4907
      %v5251 = vpop.f32.mrb[0].mxu0
      %v5252 = vadd.f32 0.0, %v5251
      %v5253 = vpop.f32.mrb[0].mxu0
      %v5254 = vpop.f32.mrb[0].mxu0
      %v5255 = vadd.f32 0.0, %v5254
      %v5256 = vpop.f32.mrb[0].mxu0
      %5257 = vmatprep.mubr.bf16.mxu0 %v5010
      %5258 = vmatmul.mubr.bf16.gmra.mrb[0].mxu0 %v4909
      %v5259 = vpop.f32.mrb[0].mxu0
      %v5260 = vadd.f32 0.0, %v5259
      %v5261 = vpop.f32.mrb[0].mxu0
      %v5262 = vpop.f32.mrb[0].mxu0
      %v5263 = vadd.f32 0.0, %v5262
      %v5264 = vpop.f32.mrb[0].mxu0
      %5265 = vmatprep.mubr.bf16.mxu0 %v5013
      %5266 = vmatmul.mubr.bf16.gmra.mrb[0].mxu0 %v4911
      %v5267 = vpop.f32.mrb[0].mxu0
      %v5268 = vadd.f32 0.0, %v5267
      %v5269 = vpop.f32.mrb[0].mxu0
      %v5270 = vpop.f32.mrb[0].mxu0
      %v5271 = vadd.f32 0.0, %v5270
      %v5272 = vpop.f32.mrb[0].mxu0
      %5273 = vdwg.mxu0
      %v5274 = vmax.f32 %v5050, %v5220
      %v5275 = vmax.f32 %v5053, %v5223
      %v5276 = vmax.f32 %v5058, %v5228
      %v5277 = vmax.f32 %v5061, %v5231
      %v5278 = vmax.f32 %v5066, %v5236
      %v5279 = vmax.f32 %v5069, %v5239
      %v5280 = vmax.f32 %v5074, %v5244
      %v5281 = vmax.f32 %v5077, %v5247
      %v5282 = vmax.f32 %v5082, %v5252
      %v5283 = vmax.f32 %v5085, %v5255
      %v5284 = vmax.f32 %v5090, %v5260
      %v5285 = vmax.f32 %v5093, %v5263
      %v5286 = vmax.f32 %v5098, %v5268
      %v5287 = vmax.f32 %v5101, %v5271
      %v5288 = vrot.slane %v5274, 1
      %v5289 = vrot.slane %v5275, 1
      %v5290 = vrot.slane %v5276, 1
      %v5291 = vrot.slane %v5277, 1
      %v5292 = vrot.slane %v5278, 1
      %v5293 = vrot.slane %v5279, 1
      %v5294 = vrot.slane %v5280, 1
      %v5295 = vrot.slane %v5281, 1
      %v5296 = vrot.slane %v5282, 1
      %v5297 = vrot.slane %v5283, 1
      %v5298 = vrot.slane %v5284, 1
      %v5299 = vrot.slane %v5285, 1
      %v5300 = vrot.slane %v5286, 1
      %v5301 = vrot.slane %v5287, 1
      %v5302 = vsel %vm536, %v5300, %v5301
      %v5303 = vsel %vm536, %v5299, %v5300
      %v5304 = vsel %vm536, %v5298, %v5299
      %v5305 = vsel %vm536, %v5297, %v5298
      %v5306 = vsel %vm536, %v5296, %v5297
      %v5307 = vsel %vm536, %v5295, %v5296
      %v5308 = vsel %vm536, %v5294, %v5295
      %v5309 = vsel %vm536, %v5293, %v5294
      %v5310 = vsel %vm536, %v5292, %v5293
      %v5311 = vsel %vm536, %v5291, %v5292
      %v5312 = vsel %vm536, %v5290, %v5291
      %v5313 = vsel %vm536, %v5289, %v5290
      %v5314 = vsel %vm536, %v5288, %v5289
      %v5315 = vsel %vm536, %v5301, %v5288
      %v5316 = vmax.f32 %v5274, %v5314
      %v5317 = vmax.f32 %v5275, %v5313
      %v5318 = vmax.f32 %v5276, %v5312
      %v5319 = vmax.f32 %v5277, %v5311
      %v5320 = vmax.f32 %v5278, %v5310
      %v5321 = vmax.f32 %v5279, %v5309
      %v5322 = vmax.f32 %v5280, %v5308
      %v5323 = vmax.f32 %v5281, %v5307
      %v5324 = vmax.f32 %v5282, %v5306
      %v5325 = vmax.f32 %v5283, %v5305
      %v5326 = vmax.f32 %v5284, %v5304
      %v5327 = vmax.f32 %v5285, %v5303
      %v5328 = vmax.f32 %v5286, %v5302
      %v5329 = vmax.f32 %v5287, %v5315
      %v5330 = vld [vmem:[%s6] sm:$0xf]
      %v5331 = vld [vmem:[%s6 + $0x4] sm:$0xf]
      %v5332 = vld [vmem:[%s6 + $0x8] sm:$0xf]
      %v5333 = vld [vmem:[%s6 + $0xc] sm:$0xf]
      %v5334 = vld [vmem:[%s6 + $0x10] sm:$0xf]
      %v5335 = vpack.c.bf16 %v5317, %v5316
      %v5336 = vpack.c.bf16 %v5319, %v5318
      %v5337 = vpack.c.bf16 %v5321, %v5320
      %v5338 = vpack.c.bf16 %v5323, %v5322
      %v5339 = vpack.c.bf16 %v5325, %v5324
      %v5340 = vpack.c.bf16 %v5327, %v5326
      %v5341 = vpack.c.bf16 %v5329, %v5328
      %v5347 = vunpack.c.l.b16 %v5330
      %v5348 = vunpack.c.l.b16 %v5331
      %v5349 = vunpack.c.l.b16 %v5332
      %v5350 = vunpack.c.l.b16 %v5333
      %v5351 = vunpack.c.l.b16 %v5334
      %v5352 = vpack.c.b16 %v5348, %v5347
      %v5353 = vpack.c.b16 %v5350, %v5349
      %v5354 = vpack.c.b16 %v5351, %v5351
      %vm5355 = vcmask 916480
      %v5357 = vsel %vm5355, %v5352, 0
      %v5360 = vsel %vm5355, %v5353, 0
      %v5363 = vsel %vm5355, %v5354, 0
      %5365 = vmatprep.subr.bf16.mxu0 0
      %5366 = vmatpush1.bf16.msra.mxu0 %v5335
      %5367 = vmatprep.subr.bf16.mxu0 0
      %5368 = vmatpush1.bf16.msra.mxu0 %v5336
      %5369 = vmatprep.subr.bf16.mxu0 0
      %5370 = vmatpush1.bf16.msra.mxu0 %v5337
      %5371 = vmatprep.subr.bf16.mxu0 0
      %5372 = vmatpush1.bf16.msra.mxu0 %v5338
      %5373 = vmatprep.subr.bf16.mxu0 0
      %5374 = vmatpush1.bf16.msra.mxu0 %v5339
      %5375 = vmatprep.subr.bf16.mxu0 0
      %5376 = vmatpush1.bf16.msra.mxu0 %v5340
      %5377 = vmatprep.subr.bf16.mxu0 0
      %5378 = vmatpush1.bf16.msra.mxu0 %v5341
      %5379 = vmatprep.subr.bf16.mxu0 0
      %5380 = vmatpush1.bf16.msra.mxu0 0
      %5381 = vmatprep.subr.bf16.mxu0 0
      %5382 = vmatpush1.bf16.msra.mxu0 0
      %5383 = vmatprep.subr.bf16.mxu0 0
      %5384 = vmatpush1.bf16.msra.mxu0 0
      %5385 = vmatprep.subr.bf16.mxu0 0
      %5386 = vmatpush1.bf16.msra.mxu0 0
      %5387 = vmatprep.subr.bf16.mxu0 0
      %5388 = vmatpush1.bf16.msra.mxu0 0
      %5389 = vmatprep.subr.bf16.mxu0 0
      %5390 = vmatpush1.bf16.msra.mxu0 0
      %5391 = vmatprep.subr.bf16.mxu0 0
      %5392 = vmatpush1.bf16.msra.mxu0 0
      %5393 = vmatprep.subr.bf16.mxu0 0
      %5394 = vmatpush1.bf16.msra.mxu0 0
      %5395 = vmatprep.subr.bf16.mxu0 0
      %5396 = vmatpush1.bf16.msra.mxu0 0
      %5397 = vmatprep.mubr.bf16.mxu0 0
      %5398 = vmatmul.mubr.bf16.gmra.mrb[0].mxu0 %v5357
      %v5399 = vpop.f32.mrb[0].mxu0
      %v5400 = vadd.f32 0.0, %v5399
      %v5401 = vpop.f32.mrb[0].mxu0
      %v5402 = vpop.f32.mrb[0].mxu0
      %v5403 = vadd.f32 0.0, %v5402
      %v5404 = vpop.f32.mrb[0].mxu0
      %5405 = vmatprep.mubr.bf16.mxu0 0
      %5406 = vmatmul.mubr.bf16.gmra.mrb[0].mxu0 %v5360
      %v5407 = vpop.f32.mrb[0].mxu0
      %v5408 = vadd.f32 0.0, %v5407
      %v5409 = vpop.f32.mrb[0].mxu0
      %v5410 = vpop.f32.mrb[0].mxu0
      %v5411 = vadd.f32 0.0, %v5410
      %v5412 = vpop.f32.mrb[0].mxu0
      %5413 = vmatprep.mubr.bf16.mxu0 0
      %5414 = vmatmul.mubr.bf16.gmra.mrb[0].mxu0 %v5363
      %v5415 = vpop.f32.mrb[0].mxu0
      %v5416 = vadd.f32 0.0, %v5415
      %v5417 = vpop.f32.mrb[0].mxu0
      %v5418 = vpop.f32.mrb[0].mxu0
      %v5419 = vpop.f32.mrb[0].mxu0
      %5420 = vdwg.mxu0
      %v5421 = vpack.c.bf16 %v5403, %v5400
      %v5422 = vpack.c.bf16 %v5411, %v5408
      %v5423 = vpack.c.bf16 %v5416, %v5416
      %v5424 = vld [vmem:[%s7] sm:$0xf]
      %v5425 = vld [vmem:[%s7 + $0x4] sm:$0xf]
      %v5426 = vld [vmem:[%s7 + $0x8] sm:$0xf]
      %v5427 = vld [vmem:[%s7 + $0xc] sm:$0xf]
      %v5428 = vld [vmem:[%s7 + $0x10] sm:$0xf]
      %v5429 = vld [vmem:[%s7 + $0x14] sm:$0xf]
      %v5430 = vld [vmem:[%s7 + $0x18] sm:$0xf]
      %v5431 = vld [vmem:[%s7 + $0x1c] sm:$0xf]
      %v5432 = vld [vmem:[%s7 + $0x20] sm:$0xf]
      %v5433 = vld [vmem:[%s7 + $0x24] sm:$0xf]
      %v5434 = vrot.slane %v5400, 1
      %v5435 = vrot.slane %v5403, 1
      %v5436 = vrot.slane %v5408, 1
      %v5437 = vrot.slane %v5411, 1
      %v5438 = vrot.slane %v5416, 1
      %v5439 = vsel %vm536, %v5437, %v5438
      %v5440 = vsel %vm536, %v5436, %v5437
      %v5441 = vsel %vm536, %v5435, %v5436
      %v5442 = vsel %vm536, %v5434, %v5435
      %v5443 = vsel %vm536, %v5438, %v5434
      %v5444 = vpack.c.bf16 %v5441, %v5442
      %v5445 = vpack.c.bf16 %v5439, %v5440
      %v5446 = vpack.c.bf16 %v5443, %v5443
      %s5447 = scalar_lea.vmem %s7, 40
      %v5448 = vld [vmem:[%s5447] sm:$0xf]
      %v5449 = vld [vmem:[%s5447 + $0x4] sm:$0xf]
      %v5450 = vld [vmem:[%s5447 + $0x8] sm:$0xf]
      %v5451 = vld [vmem:[%s5447 + $0xc] sm:$0xf]
      %v5452 = vld [vmem:[%s5447 + $0x10] sm:$0xf]
      %v5453 = vld [vmem:[%s5447 + $0x14] sm:$0xf]
      %v5454 = vld [vmem:[%s5447 + $0x18] sm:$0xf]
      %v5455 = vld [vmem:[%s5447 + $0x1c] sm:$0xf]
      %v5456 = vld [vmem:[%s5447 + $0x20] sm:$0xf]
      %v5457 = vld [vmem:[%s5447 + $0x24] sm:$0xf]
      %v5468 = vunpack.c.l.b16 %v5448
      %v5469 = vunpack.c.l.b16 %v5449
      %v5470 = vunpack.c.l.b16 %v5450
      %v5471 = vunpack.c.l.b16 %v5451
      %v5472 = vunpack.c.l.b16 %v5452
      %v5473 = vunpack.c.l.b16 %v5453
      %v5474 = vunpack.c.l.b16 %v5454
      %v5475 = vunpack.c.l.b16 %v5455
      %v5476 = vunpack.c.l.b16 %v5456
      %v5477 = vunpack.c.l.b16 %v5457
      %v5478 = vpack.c.b16 %v5469, %v5468
      %v5479 = vpack.c.b16 %v5471, %v5470
      %v5480 = vpack.c.b16 %v5473, %v5472
      %v5481 = vpack.c.b16 %v5475, %v5474
      %v5482 = vpack.c.b16 %v5477, %v5476
      %vm5488 = vcmask 654336
      %v5490 = vsel %vm5488, %v5444, 0
      %v5493 = vsel %vm5488, %v5445, 0
      %v5496 = vsel %vm5488, %v5446, 0
      %5498 = vmatprep.subr.bf16.mxu0 0
      %5499 = vmatpush1.bf16.msra.mxu0 %v5478
      %5500 = vmatprep.subr.bf16.mxu0 0
      %5501 = vmatpush1.bf16.msra.mxu0 %v5479
      %5502 = vmatprep.subr.bf16.mxu0 0
      %5503 = vmatpush1.bf16.msra.mxu0 %v5480
      %5504 = vmatprep.subr.bf16.mxu0 0
      %5505 = vmatpush1.bf16.msra.mxu0 %v5481
      %5506 = vmatprep.subr.bf16.mxu0 0
      %5507 = vmatpush1.bf16.msra.mxu0 %v5482
      %5508 = vmatprep.subr.bf16.mxu0 0
      %5509 = vmatpush1.bf16.msra.mxu0 0
      %5510 = vmatprep.subr.bf16.mxu0 0
      %5511 = vmatpush1.bf16.msra.mxu0 0
      %5512 = vmatprep.subr.bf16.mxu0 0
      %5513 = vmatpush1.bf16.msra.mxu0 0
      %5514 = vmatprep.subr.bf16.mxu0 0
      %5515 = vmatpush1.bf16.msra.mxu0 0
      %5516 = vmatprep.subr.bf16.mxu0 0
      %5517 = vmatpush1.bf16.msra.mxu0 0
      %5518 = vmatprep.subr.bf16.mxu0 0
      %5519 = vmatpush1.bf16.msra.mxu0 0
      %5520 = vmatprep.subr.bf16.mxu0 0
      %5521 = vmatpush1.bf16.msra.mxu0 0
      %5522 = vmatprep.subr.bf16.mxu0 0
      %5523 = vmatpush1.bf16.msra.mxu0 0
      %5524 = vmatprep.subr.bf16.mxu0 0
      %5525 = vmatpush1.bf16.msra.mxu0 0
      %5526 = vmatprep.subr.bf16.mxu0 0
      %5527 = vmatpush1.bf16.msra.mxu0 0
      %5528 = vmatprep.subr.bf16.mxu0 0
      %5529 = vmatpush1.bf16.msra.mxu0 0
      %5530 = vmatprep.mubr.bf16.mxu0 0
      %5531 = vmatmul.mubr.bf16.gmra.mrb[0].mxu0 %v5490
      %v5532 = vpop.f32.mrb[0].mxu0
      %v5533 = vadd.f32 0.0, %v5532
      %v5534 = vpop.f32.mrb[0].mxu0
      %v5535 = vpop.f32.mrb[0].mxu0
      %v5536 = vadd.f32 0.0, %v5535
      %v5537 = vpop.f32.mrb[0].mxu0
      %5538 = vmatprep.mubr.bf16.mxu0 0
      %5539 = vmatmul.mubr.bf16.gmra.mrb[0].mxu0 %v5493
      %v5540 = vpop.f32.mrb[0].mxu0
      %v5541 = vadd.f32 0.0, %v5540
      %v5542 = vpop.f32.mrb[0].mxu0
      %v5543 = vpop.f32.mrb[0].mxu0
      %v5544 = vadd.f32 0.0, %v5543
      %v5545 = vpop.f32.mrb[0].mxu0
      %5546 = vmatprep.mubr.bf16.mxu0 0
      %5547 = vmatmul.mubr.bf16.gmra.mrb[0].mxu0 %v5496
      %v5548 = vpop.f32.mrb[0].mxu0
      %v5549 = vadd.f32 0.0, %v5548
      %v5550 = vpop.f32.mrb[0].mxu0
      %v5551 = vpop.f32.mrb[0].mxu0
      %v5552 = vpop.f32.mrb[0].mxu0
      %5553 = vdwg.mxu0
      %v5564 = vunpack.c.l.b16 %v5424
      %v5565 = vunpack.c.l.b16 %v5425
      %v5566 = vunpack.c.l.b16 %v5426
      %v5567 = vunpack.c.l.b16 %v5427
      %v5568 = vunpack.c.l.b16 %v5428
      %v5569 = vunpack.c.l.b16 %v5429
      %v5570 = vunpack.c.l.b16 %v5430
      %v5571 = vunpack.c.l.b16 %v5431
      %v5572 = vunpack.c.l.b16 %v5432
      %v5573 = vunpack.c.l.b16 %v5433
      %v5574 = vpack.c.b16 %v5565, %v5564
      %v5575 = vpack.c.b16 %v5567, %v5566
      %v5576 = vpack.c.b16 %v5569, %v5568
      %v5577 = vpack.c.b16 %v5571, %v5570
      %v5578 = vpack.c.b16 %v5573, %v5572
      %v5585 = vsel %vm5488, %v5421, 0
      %v5588 = vsel %vm5488, %v5422, 0
      %v5591 = vsel %vm5488, %v5423, 0
      %5593 = vmatprep.subr.bf16.mxu0 0
      %5594 = vmatpush1.bf16.msra.mxu0 %v5574
      %5595 = vmatprep.subr.bf16.mxu0 0
      %5596 = vmatpush1.bf16.msra.mxu0 %v5575
      %5597 = vmatprep.subr.bf16.mxu0 0
      %5598 = vmatpush1.bf16.msra.mxu0 %v5576
      %5599 = vmatprep.subr.bf16.mxu0 0
      %5600 = vmatpush1.bf16.msra.mxu0 %v5577
      %5601 = vmatprep.subr.bf16.mxu0 0
      %5602 = vmatpush1.bf16.msra.mxu0 %v5578
      %5603 = vmatprep.subr.bf16.mxu0 0
      %5604 = vmatpush1.bf16.msra.mxu0 0
      %5605 = vmatprep.subr.bf16.mxu0 0
      %5606 = vmatpush1.bf16.msra.mxu0 0
      %5607 = vmatprep.subr.bf16.mxu0 0
      %5608 = vmatpush1.bf16.msra.mxu0 0
      %5609 = vmatprep.subr.bf16.mxu0 0
      %5610 = vmatpush1.bf16.msra.mxu0 0
      %5611 = vmatprep.subr.bf16.mxu0 0
      %5612 = vmatpush1.bf16.msra.mxu0 0
      %5613 = vmatprep.subr.bf16.mxu0 0
      %5614 = vmatpush1.bf16.msra.mxu0 0
      %5615 = vmatprep.subr.bf16.mxu0 0
      %5616 = vmatpush1.bf16.msra.mxu0 0
      %5617 = vmatprep.subr.bf16.mxu0 0
      %5618 = vmatpush1.bf16.msra.mxu0 0
      %5619 = vmatprep.subr.bf16.mxu0 0
      %5620 = vmatpush1.bf16.msra.mxu0 0
      %5621 = vmatprep.subr.bf16.mxu0 0
      %5622 = vmatpush1.bf16.msra.mxu0 0
      %5623 = vmatprep.subr.bf16.mxu0 0
      %5624 = vmatpush1.bf16.msra.mxu0 0
      %5625 = vmatprep.mubr.bf16.mxu0 0
      %5626 = vmatmul.mubr.bf16.gmra.mrb[0].mxu0 %v5585
      %v5627 = vpop.f32.mrb[0].mxu0
      %v5628 = vadd.f32 %v5533, %v5627
      %v5629 = vpop.f32.mrb[0].mxu0
      %v5630 = vpop.f32.mrb[0].mxu0
      %v5631 = vadd.f32 %v5536, %v5630
      %v5632 = vpop.f32.mrb[0].mxu0
      %5633 = vmatprep.mubr.bf16.mxu0 0
      %5634 = vmatmul.mubr.bf16.gmra.mrb[0].mxu0 %v5588
      %v5635 = vpop.f32.mrb[0].mxu0
      %v5636 = vadd.f32 %v5541, %v5635
      %v5637 = vpop.f32.mrb[0].mxu0
      %v5638 = vpop.f32.mrb[0].mxu0
      %v5639 = vadd.f32 %v5544, %v5638
      %v5640 = vpop.f32.mrb[0].mxu0
      %5641 = vmatprep.mubr.bf16.mxu0 0
      %5642 = vmatmul.mubr.bf16.gmra.mrb[0].mxu0 %v5591
      %v5643 = vpop.f32.mrb[0].mxu0
      %v5644 = vadd.f32 %v5549, %v5643
      %v5645 = vpop.f32.mrb[0].mxu0
      %v5646 = vpop.f32.mrb[0].mxu0
      %v5647 = vpop.f32.mrb[0].mxu0
      %5648 = vdwg.mxu0
      %v5649 = vrot.slane %v5400, 2
      %v5650 = vrot.slane %v5403, 2
      %v5651 = vrot.slane %v5408, 2
      %v5652 = vrot.slane %v5411, 2
      %v5653 = vrot.slane %v5416, 2
      %v5654 = vsel %vm1233, %v5652, %v5653
      %v5655 = vsel %vm1233, %v5651, %v5652
      %v5656 = vsel %vm1233, %v5650, %v5651
      %v5657 = vsel %vm1233, %v5649, %v5650
      %v5658 = vsel %vm1233, %v5653, %v5649
      %v5659 = vpack.c.bf16 %v5656, %v5657
      %v5660 = vpack.c.bf16 %v5654, %v5655
      %v5661 = vpack.c.bf16 %v5658, %v5658
      %s5662 = scalar_lea.vmem %s7, 80
      %v5663 = vld [vmem:[%s5662] sm:$0xf]
      %v5664 = vld [vmem:[%s5662 + $0x4] sm:$0xf]
      %v5665 = vld [vmem:[%s5662 + $0x8] sm:$0xf]
      %v5666 = vld [vmem:[%s5662 + $0xc] sm:$0xf]
      %v5667 = vld [vmem:[%s5662 + $0x10] sm:$0xf]
      %v5668 = vld [vmem:[%s5662 + $0x14] sm:$0xf]
      %v5669 = vld [vmem:[%s5662 + $0x18] sm:$0xf]
      %v5670 = vld [vmem:[%s5662 + $0x1c] sm:$0xf]
      %v5671 = vld [vmem:[%s5662 + $0x20] sm:$0xf]
      %v5672 = vld [vmem:[%s5662 + $0x24] sm:$0xf]
      %v5683 = vunpack.c.l.b16 %v5663
      %v5684 = vunpack.c.l.b16 %v5664
      %v5685 = vunpack.c.l.b16 %v5665
      %v5686 = vunpack.c.l.b16 %v5666
      %v5687 = vunpack.c.l.b16 %v5667
      %v5688 = vunpack.c.l.b16 %v5668
      %v5689 = vunpack.c.l.b16 %v5669
      %v5690 = vunpack.c.l.b16 %v5670
      %v5691 = vunpack.c.l.b16 %v5671
      %v5692 = vunpack.c.l.b16 %v5672
      %v5693 = vpack.c.b16 %v5684, %v5683
      %v5694 = vpack.c.b16 %v5686, %v5685
      %v5695 = vpack.c.b16 %v5688, %v5687
      %v5696 = vpack.c.b16 %v5690, %v5689
      %v5697 = vpack.c.b16 %v5692, %v5691
      %v5704 = vsel %vm5488, %v5659, 0
      %v5707 = vsel %vm5488, %v5660, 0
      %v5710 = vsel %vm5488, %v5661, 0
      %5712 = vmatprep.subr.bf16.mxu0 0
      %5713 = vmatpush1.bf16.msra.mxu0 %v5693
      %5714 = vmatprep.subr.bf16.mxu0 0
      %5715 = vmatpush1.bf16.msra.mxu0 %v5694
      %5716 = vmatprep.subr.bf16.mxu0 0
      %5717 = vmatpush1.bf16.msra.mxu0 %v5695
      %5718 = vmatprep.subr.bf16.mxu0 0
      %5719 = vmatpush1.bf16.msra.mxu0 %v5696
      %5720 = vmatprep.subr.bf16.mxu0 0
      %5721 = vmatpush1.bf16.msra.mxu0 %v5697
      %5722 = vmatprep.subr.bf16.mxu0 0
      %5723 = vmatpush1.bf16.msra.mxu0 0
      %5724 = vmatprep.subr.bf16.mxu0 0
      %5725 = vmatpush1.bf16.msra.mxu0 0
      %5726 = vmatprep.subr.bf16.mxu0 0
      %5727 = vmatpush1.bf16.msra.mxu0 0
      %5728 = vmatprep.subr.bf16.mxu0 0
      %5729 = vmatpush1.bf16.msra.mxu0 0
      %5730 = vmatprep.subr.bf16.mxu0 0
      %5731 = vmatpush1.bf16.msra.mxu0 0
      %5732 = vmatprep.subr.bf16.mxu0 0
      %5733 = vmatpush1.bf16.msra.mxu0 0
      %5734 = vmatprep.subr.bf16.mxu0 0
      %5735 = vmatpush1.bf16.msra.mxu0 0
      %5736 = vmatprep.subr.bf16.mxu0 0
      %5737 = vmatpush1.bf16.msra.mxu0 0
      %5738 = vmatprep.subr.bf16.mxu0 0
      %5739 = vmatpush1.bf16.msra.mxu0 0
      %5740 = vmatprep.subr.bf16.mxu0 0
      %5741 = vmatpush1.bf16.msra.mxu0 0
      %5742 = vmatprep.subr.bf16.mxu0 0
      %5743 = vmatpush1.bf16.msra.mxu0 0
      %5744 = vmatprep.mubr.bf16.mxu0 0
      %5745 = vmatmul.mubr.bf16.gmra.mrb[0].mxu0 %v5704
      %v5746 = vpop.f32.mrb[0].mxu0
      %v5747 = vadd.f32 0.0, %v5746
      %v5748 = vpop.f32.mrb[0].mxu0
      %v5749 = vpop.f32.mrb[0].mxu0
      %v5750 = vadd.f32 0.0, %v5749
      %v5751 = vpop.f32.mrb[0].mxu0
      %5752 = vmatprep.mubr.bf16.mxu0 0
      %5753 = vmatmul.mubr.bf16.gmra.mrb[0].mxu0 %v5707
      %v5754 = vpop.f32.mrb[0].mxu0
      %v5755 = vadd.f32 0.0, %v5754
      %v5756 = vpop.f32.mrb[0].mxu0
      %v5757 = vpop.f32.mrb[0].mxu0
      %v5758 = vadd.f32 0.0, %v5757
      %v5759 = vpop.f32.mrb[0].mxu0
      %5760 = vmatprep.mubr.bf16.mxu0 0
      %5761 = vmatmul.mubr.bf16.gmra.mrb[0].mxu0 %v5710
      %v5762 = vpop.f32.mrb[0].mxu0
      %v5763 = vadd.f32 0.0, %v5762
      %v5764 = vpop.f32.mrb[0].mxu0
      %v5765 = vpop.f32.mrb[0].mxu0
      %v5766 = vpop.f32.mrb[0].mxu0
      %5767 = vdwg.mxu0
      %v5768 = vadd.f32 %v5628, %v5747
      %v5769 = vadd.f32 %v5631, %v5750
      %v5770 = vadd.f32 %v5636, %v5755
      %v5771 = vadd.f32 %v5639, %v5758
      %v5772 = vadd.f32 %v5644, %v5763
      %v5773 = vrot.slane %v5400, 3
      %v5774 = vrot.slane %v5403, 3
      %v5775 = vrot.slane %v5408, 3
      %v5776 = vrot.slane %v5411, 3
      %v5777 = vrot.slane %v5416, 3
      %v5778 = vsel %vm1692, %v5776, %v5777
      %v5779 = vsel %vm1692, %v5775, %v5776
      %v5780 = vsel %vm1692, %v5774, %v5775
      %v5781 = vsel %vm1692, %v5773, %v5774
      %v5782 = vsel %vm1692, %v5777, %v5773
      %v5783 = vpack.c.bf16 %v5780, %v5781
      %v5784 = vpack.c.bf16 %v5778, %v5779
      %v5785 = vpack.c.bf16 %v5782, %v5782
      %s5786 = scalar_lea.vmem %s7, 120
      %v5787 = vld [vmem:[%s5786] sm:$0xf]
      %v5788 = vld [vmem:[%s5786 + $0x4] sm:$0xf]
      %v5789 = vld [vmem:[%s5786 + $0x8] sm:$0xf]
      %v5790 = vld [vmem:[%s5786 + $0xc] sm:$0xf]
      %v5791 = vld [vmem:[%s5786 + $0x10] sm:$0xf]
      %v5792 = vld [vmem:[%s5786 + $0x14] sm:$0xf]
      %v5793 = vld [vmem:[%s5786 + $0x18] sm:$0xf]
      %v5794 = vld [vmem:[%s5786 + $0x1c] sm:$0xf]
      %v5795 = vld [vmem:[%s5786 + $0x20] sm:$0xf]
      %v5796 = vld [vmem:[%s5786 + $0x24] sm:$0xf]
      %v5807 = vunpack.c.l.b16 %v5787
      %v5808 = vunpack.c.l.b16 %v5788
      %v5809 = vunpack.c.l.b16 %v5789
      %v5810 = vunpack.c.l.b16 %v5790
      %v5811 = vunpack.c.l.b16 %v5791
      %v5812 = vunpack.c.l.b16 %v5792
      %v5813 = vunpack.c.l.b16 %v5793
      %v5814 = vunpack.c.l.b16 %v5794
      %v5815 = vunpack.c.l.b16 %v5795
      %v5816 = vunpack.c.l.b16 %v5796
      %v5817 = vpack.c.b16 %v5808, %v5807
      %v5818 = vpack.c.b16 %v5810, %v5809
      %v5819 = vpack.c.b16 %v5812, %v5811
      %v5820 = vpack.c.b16 %v5814, %v5813
      %v5821 = vpack.c.b16 %v5816, %v5815
      %v5828 = vsel %vm5488, %v5783, 0
      %v5831 = vsel %vm5488, %v5784, 0
      %v5834 = vsel %vm5488, %v5785, 0
      %5836 = vmatprep.subr.bf16.mxu0 0
      %5837 = vmatpush1.bf16.msra.mxu0 %v5817
      %5838 = vmatprep.subr.bf16.mxu0 0
      %5839 = vmatpush1.bf16.msra.mxu0 %v5818
      %5840 = vmatprep.subr.bf16.mxu0 0
      %5841 = vmatpush1.bf16.msra.mxu0 %v5819
      %5842 = vmatprep.subr.bf16.mxu0 0
      %5843 = vmatpush1.bf16.msra.mxu0 %v5820
      %5844 = vmatprep.subr.bf16.mxu0 0
      %5845 = vmatpush1.bf16.msra.mxu0 %v5821
      %5846 = vmatprep.subr.bf16.mxu0 0
      %5847 = vmatpush1.bf16.msra.mxu0 0
      %5848 = vmatprep.subr.bf16.mxu0 0
      %5849 = vmatpush1.bf16.msra.mxu0 0
      %5850 = vmatprep.subr.bf16.mxu0 0
      %5851 = vmatpush1.bf16.msra.mxu0 0
      %5852 = vmatprep.subr.bf16.mxu0 0
      %5853 = vmatpush1.bf16.msra.mxu0 0
      %5854 = vmatprep.subr.bf16.mxu0 0
      %5855 = vmatpush1.bf16.msra.mxu0 0
      %5856 = vmatprep.subr.bf16.mxu0 0
      %5857 = vmatpush1.bf16.msra.mxu0 0
      %5858 = vmatprep.subr.bf16.mxu0 0
      %5859 = vmatpush1.bf16.msra.mxu0 0
      %5860 = vmatprep.subr.bf16.mxu0 0
      %5861 = vmatpush1.bf16.msra.mxu0 0
      %5862 = vmatprep.subr.bf16.mxu0 0
      %5863 = vmatpush1.bf16.msra.mxu0 0
      %5864 = vmatprep.subr.bf16.mxu0 0
      %5865 = vmatpush1.bf16.msra.mxu0 0
      %5866 = vmatprep.subr.bf16.mxu0 0
      %5867 = vmatpush1.bf16.msra.mxu0 0
      %5868 = vmatprep.mubr.bf16.mxu0 0
      %5869 = vmatmul.mubr.bf16.gmra.mrb[0].mxu0 %v5828
      %v5870 = vpop.f32.mrb[0].mxu0
      %v5871 = vadd.f32 0.0, %v5870
      %v5872 = vpop.f32.mrb[0].mxu0
      %v5873 = vpop.f32.mrb[0].mxu0
      %v5874 = vadd.f32 0.0, %v5873
      %v5875 = vpop.f32.mrb[0].mxu0
      %5876 = vmatprep.mubr.bf16.mxu0 0
      %5877 = vmatmul.mubr.bf16.gmra.mrb[0].mxu0 %v5831
      %v5878 = vpop.f32.mrb[0].mxu0
      %v5879 = vadd.f32 0.0, %v5878
      %v5880 = vpop.f32.mrb[0].mxu0
      %v5881 = vpop.f32.mrb[0].mxu0
      %v5882 = vadd.f32 0.0, %v5881
      %v5883 = vpop.f32.mrb[0].mxu0
      %5884 = vmatprep.mubr.bf16.mxu0 0
      %5885 = vmatmul.mubr.bf16.gmra.mrb[0].mxu0 %v5834
      %v5886 = vpop.f32.mrb[0].mxu0
      %v5887 = vadd.f32 0.0, %v5886
      %v5888 = vpop.f32.mrb[0].mxu0
      %v5889 = vpop.f32.mrb[0].mxu0
      %v5890 = vpop.f32.mrb[0].mxu0
      %5891 = vdwg.mxu0
      %v5892 = vadd.f32 %v5768, %v5871
      %v5893 = vadd.f32 %v5769, %v5874
      %v5894 = vadd.f32 %v5770, %v5879
      %v5895 = vadd.f32 %v5771, %v5882
      %v5896 = vadd.f32 %v5772, %v5887
      %v5897 = vrot.slane %v5400, 4
      %v5898 = vrot.slane %v5403, 4
      %v5899 = vrot.slane %v5408, 4
      %v5900 = vrot.slane %v5411, 4
      %v5901 = vrot.slane %v5416, 4
      %v5902 = vsel %vm2151, %v5900, %v5901
      %v5903 = vsel %vm2151, %v5899, %v5900
      %v5904 = vsel %vm2151, %v5898, %v5899
      %v5905 = vsel %vm2151, %v5897, %v5898
      %v5906 = vsel %vm2151, %v5901, %v5897
      %v5907 = vpack.c.bf16 %v5904, %v5905
      %v5908 = vpack.c.bf16 %v5902, %v5903
      %v5909 = vpack.c.bf16 %v5906, %v5906
      %s5910 = scalar_lea.vmem %s7, 160
      %v5911 = vld [vmem:[%s5910] sm:$0xf]
      %v5912 = vld [vmem:[%s5910 + $0x4] sm:$0xf]
      %v5913 = vld [vmem:[%s5910 + $0x8] sm:$0xf]
      %v5914 = vld [vmem:[%s5910 + $0xc] sm:$0xf]
      %v5915 = vld [vmem:[%s5910 + $0x10] sm:$0xf]
      %v5916 = vld [vmem:[%s5910 + $0x14] sm:$0xf]
      %v5917 = vld [vmem:[%s5910 + $0x18] sm:$0xf]
      %v5918 = vld [vmem:[%s5910 + $0x1c] sm:$0xf]
      %v5919 = vld [vmem:[%s5910 + $0x20] sm:$0xf]
      %v5920 = vld [vmem:[%s5910 + $0x24] sm:$0xf]
      %v5931 = vunpack.c.l.b16 %v5911
      %v5932 = vunpack.c.l.b16 %v5912
      %v5933 = vunpack.c.l.b16 %v5913
      %v5934 = vunpack.c.l.b16 %v5914
      %v5935 = vunpack.c.l.b16 %v5915
      %v5936 = vunpack.c.l.b16 %v5916
      %v5937 = vunpack.c.l.b16 %v5917
      %v5938 = vunpack.c.l.b16 %v5918
      %v5939 = vunpack.c.l.b16 %v5919
      %v5940 = vunpack.c.l.b16 %v5920
      %v5941 = vpack.c.b16 %v5932, %v5931
      %v5942 = vpack.c.b16 %v5934, %v5933
      %v5943 = vpack.c.b16 %v5936, %v5935
      %v5944 = vpack.c.b16 %v5938, %v5937
      %v5945 = vpack.c.b16 %v5940, %v5939
      %v5952 = vsel %vm5488, %v5907, 0
      %v5955 = vsel %vm5488, %v5908, 0
      %v5958 = vsel %vm5488, %v5909, 0
      %5960 = vmatprep.subr.bf16.mxu0 0
      %5961 = vmatpush1.bf16.msra.mxu0 %v5941
      %5962 = vmatprep.subr.bf16.mxu0 0
      %5963 = vmatpush1.bf16.msra.mxu0 %v5942
      %5964 = vmatprep.subr.bf16.mxu0 0
      %5965 = vmatpush1.bf16.msra.mxu0 %v5943
      %5966 = vmatprep.subr.bf16.mxu0 0
      %5967 = vmatpush1.bf16.msra.mxu0 %v5944
      %5968 = vmatprep.subr.bf16.mxu0 0
      %5969 = vmatpush1.bf16.msra.mxu0 %v5945
      %5970 = vmatprep.subr.bf16.mxu0 0
      %5971 = vmatpush1.bf16.msra.mxu0 0
      %5972 = vmatprep.subr.bf16.mxu0 0
      %5973 = vmatpush1.bf16.msra.mxu0 0
      %5974 = vmatprep.subr.bf16.mxu0 0
      %5975 = vmatpush1.bf16.msra.mxu0 0
      %5976 = vmatprep.subr.bf16.mxu0 0
      %5977 = vmatpush1.bf16.msra.mxu0 0
      %5978 = vmatprep.subr.bf16.mxu0 0
      %5979 = vmatpush1.bf16.msra.mxu0 0
      %5980 = vmatprep.subr.bf16.mxu0 0
      %5981 = vmatpush1.bf16.msra.mxu0 0
      %5982 = vmatprep.subr.bf16.mxu0 0
      %5983 = vmatpush1.bf16.msra.mxu0 0
      %5984 = vmatprep.subr.bf16.mxu0 0
      %5985 = vmatpush1.bf16.msra.mxu0 0
      %5986 = vmatprep.subr.bf16.mxu0 0
      %5987 = vmatpush1.bf16.msra.mxu0 0
      %5988 = vmatprep.subr.bf16.mxu0 0
      %5989 = vmatpush1.bf16.msra.mxu0 0
      %5990 = vmatprep.subr.bf16.mxu0 0
      %5991 = vmatpush1.bf16.msra.mxu0 0
      %5992 = vmatprep.mubr.bf16.mxu0 0
      %5993 = vmatmul.mubr.bf16.gmra.mrb[0].mxu0 %v5952
      %v5994 = vpop.f32.mrb[0].mxu0
      %v5995 = vadd.f32 0.0, %v5994
      %v5996 = vpop.f32.mrb[0].mxu0
      %v5997 = vpop.f32.mrb[0].mxu0
      %v5998 = vadd.f32 0.0, %v5997
      %v5999 = vpop.f32.mrb[0].mxu0
      %6000 = vmatprep.mubr.bf16.mxu0 0
      %6001 = vmatmul.mubr.bf16.gmra.mrb[0].mxu0 %v5955
      %v6002 = vpop.f32.mrb[0].mxu0
      %v6003 = vadd.f32 0.0, %v6002
      %v6004 = vpop.f32.mrb[0].mxu0
      %v6005 = vpop.f32.mrb[0].mxu0
      %v6006 = vadd.f32 0.0, %v6005
      %v6007 = vpop.f32.mrb[0].mxu0
      %6008 = vmatprep.mubr.bf16.mxu0 0
      %6009 = vmatmul.mubr.bf16.gmra.mrb[0].mxu0 %v5958
      %v6010 = vpop.f32.mrb[0].mxu0
      %v6011 = vadd.f32 0.0, %v6010
      %v6012 = vpop.f32.mrb[0].mxu0
      %v6013 = vpop.f32.mrb[0].mxu0
      %v6014 = vpop.f32.mrb[0].mxu0
      %6015 = vdwg.mxu0
      %v6016 = vadd.f32 %v5892, %v5995
      %v6017 = vadd.f32 %v5893, %v5998
      %v6018 = vadd.f32 %v5894, %v6003
      %v6019 = vadd.f32 %v5895, %v6006
      %v6020 = vadd.f32 %v5896, %v6011
      %v6021 = vld [vmem:[%s8] sm:$0xf]
      %v6022 = vpack.c.bf16 %v6017, %v6016
      %v6023 = vpack.c.bf16 %v6019, %v6018
      %v6024 = vpack.c.bf16 %v6020, %v6020
      %v6025 = vld [vmem:[%s12 + $0x4] sm:$0x1]
      %v6027 = vlaneseq
      %v6028 = vshrl.u32 %v6027, 7
      %v6029 = vsub.s32 0, %v6028
      %v6030 = vrot.slane %v6025, %v6029
      %v6033 = vsel %vm2834, %v6021, 0
      %v6036 = vsel %vm2883, %v6024, 0
      %6038 = vmatprep.subr.bf16.mxu0 0
      %6039 = vmatpush1.bf16.msra.mxu0 %v6022
      %6040 = vmatprep.subr.bf16.mxu0 0
      %6041 = vmatpush1.bf16.msra.mxu0 %v6023
      %6042 = vmatprep.subr.bf16.mxu0 0
      %6043 = vmatpush1.bf16.msra.mxu0 %v6036
      %6044 = vmatprep.subr.bf16.mxu0 0
      %6045 = vmatpush1.bf16.msra.mxu0 0
      %6046 = vmatprep.subr.bf16.mxu0 0
      %6047 = vmatpush1.bf16.msra.mxu0 0
      %6048 = vmatprep.subr.bf16.mxu0 0
      %6049 = vmatpush1.bf16.msra.mxu0 0
      %6050 = vmatprep.subr.bf16.mxu0 0
      %6051 = vmatpush1.bf16.msra.mxu0 0
      %6052 = vmatprep.subr.bf16.mxu0 0
      %6053 = vmatpush1.bf16.msra.mxu0 0
      %6054 = vmatprep.subr.bf16.mxu0 0
      %6055 = vmatpush1.bf16.msra.mxu0 0
      %6056 = vmatprep.subr.bf16.mxu0 0
      %6057 = vmatpush1.bf16.msra.mxu0 0
      %6058 = vmatprep.subr.bf16.mxu0 0
      %6059 = vmatpush1.bf16.msra.mxu0 0
      %6060 = vmatprep.subr.bf16.mxu0 0
      %6061 = vmatpush1.bf16.msra.mxu0 0
      %6062 = vmatprep.subr.bf16.mxu0 0
      %6063 = vmatpush1.bf16.msra.mxu0 0
      %6064 = vmatprep.subr.bf16.mxu0 0
      %6065 = vmatpush1.bf16.msra.mxu0 0
      %6066 = vmatprep.subr.bf16.mxu0 0
      %6067 = vmatpush1.bf16.msra.mxu0 0
      %6068 = vmatprep.subr.bf16.mxu0 0
      %6069 = vmatpush1.bf16.msra.mxu0 0
      %6070 = vmatprep.mubr.bf16.mxu0 0
      %6071 = vmatmul.mubr.bf16.gmra.mrb[0].mxu0 %v6033
      %v6072 = vpop.f32.mrb[0].mxu0
      %v6073 = vadd.f32 %v6030, %v6072
      %v6074 = vpop.f32.mrb[0].mxu0
      %v6075 = vpop.f32.mrb[0].mxu0
      %v6076 = vpop.f32.mrb[0].mxu0
      %6077 = vdwg.mxu0
      %v6078 = vmax.f32 %v6073, 0.0
      %v6079 = vpack.c.bf16 %v6078, %v6078
      %v6080 = vld [vmem:[%s9] sm:$0xf]
      %v6081 = vld [vmem:[%s9 + $0x4] sm:$0xf]
      %v6082 = vld [vmem:[%s9 + $0x8] sm:$0xf]
      %v6083 = vld [vmem:[%s9 + $0xc] sm:$0xf]
      %v6084 = vld [vmem:[%s9 + $0x10] sm:$0xf]
      %v6085 = vld [vmem:[%s9 + $0x14] sm:$0xf]
      %v6086 = vld [vmem:[%s9 + $0x18] sm:$0xf]
      %v6087 = vld [vmem:[%s9 + $0x1c] sm:$0xf]
      %v6088 = vld [vmem:[%s9 + $0x20] sm:$0xf]
      %v6089 = vld [vmem:[%s9 + $0x24] sm:$0xf]
      %v6090 = vld [vmem:[%s9 + $0x28] sm:$0xf]
      %v6091 = vld [vmem:[%s9 + $0x2c] sm:$0xf]
      %v6092 = vld [vmem:[%s9 + $0x30] sm:$0xf]
      %v6093 = vld [vmem:[%s9 + $0x34] sm:$0xf]
      %v6094 = vld [vmem:[%s9 + $0x38] sm:$0xf]
      %v6095 = vld [vmem:[%s12 + $0x5] sm:$0x1]
      %v6097 = vlaneseq
      %v6098 = vshrl.u32 %v6097, 7
      %v6099 = vsub.s32 0, %v6098
      %v6100 = vrot.slane %v6095, %v6099
      %v6117 = vunpack.c.l.b16 %v6080
      %v6118 = vunpack.c.l.b16 %v6081
      %v6119 = vunpack.c.l.b16 %v6082
      %v6120 = vunpack.c.l.b16 %v6083
      %v6121 = vunpack.c.l.b16 %v6084
      %v6122 = vunpack.c.l.b16 %v6085
      %v6123 = vunpack.c.l.b16 %v6086
      %v6124 = vunpack.c.l.b16 %v6087
      %v6125 = vunpack.c.l.b16 %v6088
      %v6126 = vunpack.c.l.b16 %v6089
      %v6127 = vunpack.c.l.b16 %v6090
      %v6128 = vunpack.c.l.b16 %v6091
      %v6129 = vunpack.c.l.b16 %v6092
      %v6130 = vunpack.c.l.b16 %v6093
      %v6131 = vunpack.c.l.b16 %v6094
      %v6132 = vpack.c.b16 %v6118, %v6117
      %v6133 = vpack.c.b16 %v6120, %v6119
      %v6134 = vpack.c.b16 %v6122, %v6121
      %v6135 = vpack.c.b16 %v6124, %v6123
      %v6136 = vpack.c.b16 %v6126, %v6125
      %v6137 = vpack.c.b16 %v6128, %v6127
      %v6138 = vpack.c.b16 %v6130, %v6129
      %v6139 = vpack.c.b16 %v6131, %v6131
      %vm6147 = vcmask 982016
      %v6149 = vsel %vm6147, %v6079, 0
      %v6152 = vsel %vm2883, %v6139, 0
      %6154 = vmatprep.subr.bf16.mxu0 0
      %6155 = vmatpush1.bf16.msra.mxu0 %v6132
      %6156 = vmatprep.subr.bf16.mxu0 0
      %6157 = vmatpush1.bf16.msra.mxu0 %v6133
      %6158 = vmatprep.subr.bf16.mxu0 0
      %6159 = vmatpush1.bf16.msra.mxu0 %v6134
      %6160 = vmatprep.subr.bf16.mxu0 0
      %6161 = vmatpush1.bf16.msra.mxu0 %v6135
      %6162 = vmatprep.subr.bf16.mxu0 0
      %6163 = vmatpush1.bf16.msra.mxu0 %v6136
      %6164 = vmatprep.subr.bf16.mxu0 0
      %6165 = vmatpush1.bf16.msra.mxu0 %v6137
      %6166 = vmatprep.subr.bf16.mxu0 0
      %6167 = vmatpush1.bf16.msra.mxu0 %v6138
      %6168 = vmatprep.subr.bf16.mxu0 0
      %6169 = vmatpush1.bf16.msra.mxu0 %v6152
      %6170 = vmatprep.subr.bf16.mxu0 0
      %6171 = vmatpush1.bf16.msra.mxu0 0
      %6172 = vmatprep.subr.bf16.mxu0 0
      %6173 = vmatpush1.bf16.msra.mxu0 0
      %6174 = vmatprep.subr.bf16.mxu0 0
      %6175 = vmatpush1.bf16.msra.mxu0 0
      %6176 = vmatprep.subr.bf16.mxu0 0
      %6177 = vmatpush1.bf16.msra.mxu0 0
      %6178 = vmatprep.subr.bf16.mxu0 0
      %6179 = vmatpush1.bf16.msra.mxu0 0
      %6180 = vmatprep.subr.bf16.mxu0 0
      %6181 = vmatpush1.bf16.msra.mxu0 0
      %6182 = vmatprep.subr.bf16.mxu0 0
      %6183 = vmatpush1.bf16.msra.mxu0 0
      %6184 = vmatprep.subr.bf16.mxu0 0
      %6185 = vmatpush1.bf16.msra.mxu0 0
      %6186 = vmatprep.mubr.bf16.mxu0 0
      %6187 = vmatmul.mubr.bf16.gmra.mrb[0].mxu0 %v6149
      %v6188 = vpop.f32.mrb[0].mxu0
      %v6189 = vadd.f32 %v6100, %v6188
      %v6190 = vpop.f32.mrb[0].mxu0
      %v6191 = vpop.f32.mrb[0].mxu0
      %v6192 = vpop.f32.mrb[0].mxu0
      %6193 = vdwg.mxu0
      %v6194 = vmax.f32 %v6189, 0.0
      %v6195 = vpack.c.bf16 %v6194, %v6194
      %v6196 = vld [vmem:[%s10] sm:$0xf]
      %v6197 = vld [vmem:[%s10 + $0x4] sm:$0xf]
      %v6198 = vld [vmem:[%s10 + $0x8] sm:$0xf]
      %v6199 = vld [vmem:[%s10 + $0xc] sm:$0xf]
      %v6200 = vld [vmem:[%s10 + $0x10] sm:$0xf]
      %v6201 = vld [vmem:[%s10 + $0x14] sm:$0xf]
      %v6202 = vld [vmem:[%s10 + $0x18] sm:$0xf]
      %v6203 = vld [vmem:[%s10 + $0x1c] sm:$0xf]
      %v6204 = vld [vmem:[%s10 + $0x20] sm:$0xf]
      %v6205 = vld [vmem:[%s10 + $0x24] sm:$0xf]
      %v6206 = vld [vmem:[%s10 + $0x28] sm:$0x3]
      %v6207 = vld [vmem:[%s12 + $0x6] sm:$0x1]
      %v6209 = vlaneseq
      %v6210 = vshrl.u32 %v6209, 7
      %v6211 = vsub.s32 0, %v6210
      %v6212 = vrot.slane %v6207, %v6211
      %v6225 = vunpack.c.l.b16 %v6196
      %v6226 = vunpack.c.l.b16 %v6197
      %v6227 = vunpack.c.l.b16 %v6198
      %v6228 = vunpack.c.l.b16 %v6199
      %v6229 = vunpack.c.l.b16 %v6200
      %v6230 = vunpack.c.l.b16 %v6201
      %v6231 = vunpack.c.l.b16 %v6202
      %v6232 = vunpack.c.l.b16 %v6203
      %v6233 = vunpack.c.l.b16 %v6204
      %v6234 = vunpack.c.l.b16 %v6205
      %v6235 = vunpack.c.l.b16 %v6206
      %v6236 = vpack.c.b16 %v6226, %v6225
      %v6237 = vpack.c.b16 %v6228, %v6227
      %v6238 = vpack.c.b16 %v6230, %v6229
      %v6239 = vpack.c.b16 %v6232, %v6231
      %v6240 = vpack.c.b16 %v6234, %v6233
      %v6241 = vpack.c.b16 %v6235, %v6235
      %v6248 = vsel %vm3734, %v6195, 0
      %v6251 = vsel %vm3756, %v6241, 0
      %6253 = vmatprep.subr.bf16.mxu0 0
      %6254 = vmatpush1.bf16.msra.mxu0 %v6236
      %6255 = vmatprep.subr.bf16.mxu0 0
      %6256 = vmatpush1.bf16.msra.mxu0 %v6237
      %6257 = vmatprep.subr.bf16.mxu0 0
      %6258 = vmatpush1.bf16.msra.mxu0 %v6238
      %6259 = vmatprep.subr.bf16.mxu0 0
      %6260 = vmatpush1.bf16.msra.mxu0 %v6239
      %6261 = vmatprep.subr.bf16.mxu0 0
      %6262 = vmatpush1.bf16.msra.mxu0 %v6240
      %6263 = vmatprep.subr.bf16.mxu0 0
      %6264 = vmatpush1.bf16.msra.mxu0 %v6251
      %6265 = vmatprep.subr.bf16.mxu0 0
      %6266 = vmatpush1.bf16.msra.mxu0 0
      %6267 = vmatprep.subr.bf16.mxu0 0
      %6268 = vmatpush1.bf16.msra.mxu0 0
      %6269 = vmatprep.subr.bf16.mxu0 0
      %6270 = vmatpush1.bf16.msra.mxu0 0
      %6271 = vmatprep.subr.bf16.mxu0 0
      %6272 = vmatpush1.bf16.msra.mxu0 0
      %6273 = vmatprep.subr.bf16.mxu0 0
      %6274 = vmatpush1.bf16.msra.mxu0 0
      %6275 = vmatprep.subr.bf16.mxu0 0
      %6276 = vmatpush1.bf16.msra.mxu0 0
      %6277 = vmatprep.subr.bf16.mxu0 0
      %6278 = vmatpush1.bf16.msra.mxu0 0
      %6279 = vmatprep.subr.bf16.mxu0 0
      %6280 = vmatpush1.bf16.msra.mxu0 0
      %6281 = vmatprep.subr.bf16.mxu0 0
      %6282 = vmatpush1.bf16.msra.mxu0 0
      %6283 = vmatprep.subr.bf16.mxu0 0
      %6284 = vmatpush1.bf16.msra.mxu0 0
      %6285 = vmatprep.mubr.bf16.mxu0 0
      %6286 = vmatmul.mubr.bf16.gmra.mrb[0].mxu0 %v6248
      %v6287 = vpop.f32.mrb[0].mxu0
      %v6288 = vadd.f32 %v6212, %v6287
      %v6289 = vpop.f32.mrb[0].mxu0
      %v6290 = vpop.f32.mrb[0].mxu0
      %v6291 = vpop.f32.mrb[0].mxu0
      %6292 = vdwg.mxu0
      %v6293 = vmax.f32 %v6288, 0.0
      %v6294 = vpack.c.bf16 %v6293, %v6293
      %v6295 = vld [vmem:[%s11] sm:$0xf]
      %v6296 = vld [vmem:[%s11 + $0x4] sm:$0xf]
      %v6297 = vld [vmem:[%s11 + $0x8] sm:$0xf]
      %v6298 = vld [vmem:[%s11 + $0xc] sm:$0xf]
      %v6299 = vld [vmem:[%s11 + $0x10] sm:$0xf]
      %v6300 = vld [vmem:[%s11 + $0x14] sm:$0xf]
      %v6301 = vld [vmem:[%s11 + $0x18] sm:$0xf]
      %v6302 = vld [vmem:[%s11 + $0x1c] sm:$0xf]
      %v6303 = vld [vmem:[%s11 + $0x20] sm:$0xf]
      %v6304 = vld [vmem:[%s11 + $0x24] sm:$0xf]
      %v6305 = vld [vmem:[%s11 + $0x28] sm:$0x3]
      %v6306 = vld [vmem:[%s12 + $0x7] sm:$0x1]
      %v6308 = vlaneseq
      %v6309 = vshrl.u32 %v6308, 7
      %v6310 = vsub.s32 0, %v6309
      %v6311 = vrot.slane %v6306, %v6310
      %v6324 = vunpack.c.l.b16 %v6295
      %v6325 = vunpack.c.l.b16 %v6296
      %v6326 = vunpack.c.l.b16 %v6297
      %v6327 = vunpack.c.l.b16 %v6298
      %v6328 = vunpack.c.l.b16 %v6299
      %v6329 = vunpack.c.l.b16 %v6300
      %v6330 = vunpack.c.l.b16 %v6301
      %v6331 = vunpack.c.l.b16 %v6302
      %v6332 = vunpack.c.l.b16 %v6303
      %v6333 = vunpack.c.l.b16 %v6304
      %v6334 = vunpack.c.l.b16 %v6305
      %v6335 = vpack.c.b16 %v6325, %v6324
      %v6336 = vpack.c.b16 %v6327, %v6326
      %v6337 = vpack.c.b16 %v6329, %v6328
      %v6338 = vpack.c.b16 %v6331, %v6330
      %v6339 = vpack.c.b16 %v6333, %v6332
      %v6340 = vpack.c.b16 %v6334, %v6334
      %v6347 = vsel %vm3734, %v6294, 0
      %v6350 = vsel %vm3756, %v6340, 0
      %6352 = vmatprep.subr.bf16.mxu0 0
      %6353 = vmatpush1.bf16.msra.mxu0 %v6335
      %6354 = vmatprep.subr.bf16.mxu0 0
      %6355 = vmatpush1.bf16.msra.mxu0 %v6336
      %6356 = vmatprep.subr.bf16.mxu0 0
      %6357 = vmatpush1.bf16.msra.mxu0 %v6337
      %6358 = vmatprep.subr.bf16.mxu0 0
      %6359 = vmatpush1.bf16.msra.mxu0 %v6338
      %6360 = vmatprep.subr.bf16.mxu0 0
      %6361 = vmatpush1.bf16.msra.mxu0 %v6339
      %6362 = vmatprep.subr.bf16.mxu0 0
      %6363 = vmatpush1.bf16.msra.mxu0 %v6350
      %6364 = vmatprep.subr.bf16.mxu0 0
      %6365 = vmatpush1.bf16.msra.mxu0 0
      %6366 = vmatprep.subr.bf16.mxu0 0
      %6367 = vmatpush1.bf16.msra.mxu0 0
      %6368 = vmatprep.subr.bf16.mxu0 0
      %6369 = vmatpush1.bf16.msra.mxu0 0
      %6370 = vmatprep.subr.bf16.mxu0 0
      %6371 = vmatpush1.bf16.msra.mxu0 0
      %6372 = vmatprep.subr.bf16.mxu0 0
      %6373 = vmatpush1.bf16.msra.mxu0 0
      %6374 = vmatprep.subr.bf16.mxu0 0
      %6375 = vmatpush1.bf16.msra.mxu0 0
      %6376 = vmatprep.subr.bf16.mxu0 0
      %6377 = vmatpush1.bf16.msra.mxu0 0
      %6378 = vmatprep.subr.bf16.mxu0 0
      %6379 = vmatpush1.bf16.msra.mxu0 0
      %6380 = vmatprep.subr.bf16.mxu0 0
      %6381 = vmatpush1.bf16.msra.mxu0 0
      %6382 = vmatprep.subr.bf16.mxu0 0
      %6383 = vmatpush1.bf16.msra.mxu0 0
      %6384 = vmatprep.mubr.bf16.mxu0 0
      %6385 = vmatmul.mubr.bf16.gmra.mrb[0].mxu0 %v6347
      %v6386 = vpop.f32.mrb[0].mxu0
      %v6387 = vadd.f32 %v6311, %v6386
      %v6388 = vpop.f32.mrb[0].mxu0
      %v6389 = vpop.f32.mrb[0].mxu0
      %v6390 = vpop.f32.mrb[0].mxu0
      %6391 = vdwg.mxu0
      %v6392 = vmul.f32 %v6387, %v6387
      %v6393 = vsel %vm4993, %v6392, 0.0
      %6394 = vadd.xlane.f32.xlu0 %v6393
      %v6395 = vpop.xlane.xlu0 %6394
      %v6396 = vmax.f32 %v6395, 1e-24
      %v6397 = vrsqrt.pop %v6396
      %6398 = vst.msk [vmem:[%s440] sm:$0xff] %vm3734, %v6293
      %v6399 = vmul.f32 %v6387, %v6397
      %6401 = vrot.lane.b32.xlu0 %v6399, 84
      %v6402 = vpop.permute.xlu0 %6401
      %vm6404 = vcmask 949920
      %6405 = vst.msk [vmem:[%s440] sm:$0xff] %vm6404, %v6402
      %vm6406 = vcmask 1048480
      %6407 = vst.msk [vmem:[%s440] sm:$0xff] %vm6406, 0.0
      %p6408 = scmp.lt.s32.totalorder %s24, 1
      %s6409 = scalar_select %p6408, %s24, 1
      %s6410 = smul.addr %s6409, 8
      %s6411 = scalar_lea.vmem %s13, %s6410
      // Predicated region
      $region73: #{forward.1} parent=71 // pred_check
        %p6412 = pneg %p320
      $region74: #{forward.1} parent=71 // pred_check_branch
        %6414 = sbr.rel (%p6412) target = $region76
      $region75: #{forward.1} parent=71 // pred_region
        _
      $region76: #{forward.1} parent=71 // pred_fallthru
        _
    $region72: #{forward.1} parent=5 // pred_fallthru
      _
    %p6415 = scmp.le.s32.totalorder 2, %s19
    // Predicated region
    $region77: #{forward.1} parent=5 // pred_check
      %p6416 = pneg %p6415
    $region78: #{forward.1} parent=5 // pred_check_branch
      %6418 = sbr.rel (%p6416) target = $region80
    $region79: #{forward.1} parent=5 // pred_region
      %s6419 = ssub.s32 %s19, 2
      // Predicated region
      $region81: #{forward.1} parent=79 // pred_check
        %p6420 = pneg %p326
      $region82: #{forward.1} parent=79 // pred_check_branch
        %6422 = sbr.rel (%p6420) target = $region84
      $region83: #{forward.1} parent=79 // pred_region
        %p6423 = scmp.lt.s32.totalorder %s25, 1
        %s6424 = scalar_select %p6423, %s25, 1
        %s6425 = smul.addr %s6424, 8
        %s6426 = scalar_lea.vmem %s13, %s6425
      $region84: #{forward.1} parent=79 // pred_fallthru
        _
    $region80: #{forward.1} parent=5 // pred_fallthru
      _
  $region6: #{forward.1} parent=0 // loop_footer
    %s23 = sadd.s32 1, %s19
  $region7: #{forward.1} parent=0 // loop_footer_branch
    %18 = sbr.rel target = $region3
  $region8: #{forward.1} parent=0 // loop_exit
    _

</llo_original>
